<compile_context>
chip_gen: v5e
topology: v5e:2x2
jax: 0.10.0
libtpu: 0.0.40
codegen_flags: <defaults>
</compile_context>

<pallas_src>
import functools

import jax
import jax.numpy as jnp
import numpy as np
from jax.experimental import pallas as pl
from jax.experimental.pallas import tpu as pltpu

EPS = 1e-5


def _round_up(x, m):
    return ((x + m - 1) // m) * m


@functools.lru_cache(maxsize=None)
def _vmem_limit_bytes():
    """Generation-aware scoped-VMEM limit (128 MiB on v5e/v6e, 64 MiB on v7x)."""
    cap = None
    try:
        info = pltpu.get_tpu_info()
        cap = getattr(info, "vmem_capacity_bytes", None)
    except Exception:
        cap = None
    if not cap:
        cap = 64 * 1024 * 1024
    return int(max(min(cap - 16 * 1024 * 1024, 112 * 1024 * 1024),
                   32 * 1024 * 1024))


# ----------------------------------------------------------------------------
# Fused bottleneck-block kernel (one image per grid step)
# ----------------------------------------------------------------------------
def _bottleneck_kernel(*refs, Wp, pad, has_proj):
    """refs = (x, w1, b1, w2, b2, w3, b3, [ws, bs,] mask, out, h1p_scratch).

    x      : (Md, Cin)  bf16, slab layout (row-major at width Wp, pad cols garbage)
    w*     : bf16 weights with the BN scale folded into the output channels
    b*     : (1, C) f32 folded BN biases
    mask   : (Md, 1) f32, 1.0 at valid columns, 0.0 at the Wp-Wo pad columns
    h1p    : (Pp, mid) f32 VMEM scratch = zero halo | h1 | zero halo
    """
    if has_proj:
        (x_ref, w1_ref, b1_ref, w2_ref, b2_ref, w3_ref, b3_ref,
         ws_ref, bs_ref, mask_ref, o_ref, h1p_ref) = refs
    else:
        (x_ref, w1_ref, b1_ref, w2_ref, b2_ref, w3_ref, b3_ref,
         mask_ref, o_ref, h1p_ref) = refs

    Md = x_ref.shape[0]
    mid = w1_ref.shape[1]
    Pp = h1p_ref.shape[0]

    x = x_ref[...]                                                # (Md, Cin) bf16

    # conv1 (1x1) + bn1 + relu; pad columns zeroed so conv2 sees true zero padding.
    h1 = jnp.dot(x, w1_ref[...], preferred_element_type=jnp.float32)
    h1 = jnp.maximum(h1 + b1_ref[...], 0.0) * mask_ref[...]
    h1p_ref[0:pad, :] = jnp.zeros((pad, mid), jnp.float32)
    h1p_ref[pad:pad + Md, :] = h1
    h1p_ref[pad + Md:Pp, :] = jnp.zeros((Pp - pad - Md, mid), jnp.float32)

    # conv2 (3x3, pad 1): 9 shifted in-VMEM matmuls accumulated in f32 (no im2col).
    acc = None
    for kh in range(3):
        for kw in range(3):
            start = pad + (kh - 1) * Wp + (kw - 1)
            win = h1p_ref[start:start + Md, :].astype(jnp.bfloat16)
            part = jnp.dot(win, w2_ref[kh * 3 + kw],
                           preferred_element_type=jnp.float32)
            acc = part if acc is None else acc + part
    h2 = jnp.maximum(acc + b2_ref[...], 0.0).astype(jnp.bfloat16)

    # conv3 (1x1) + bn3 + shortcut (projection or identity) + relu, fused epilogue.
    y = jnp.dot(h2, w3_ref[...], preferred_element_type=jnp.float32) + b3_ref[...]
    if has_proj:
        y = y + jnp.dot(x, ws_ref[...], preferred_element_type=jnp.float32) \
              + bs_ref[...]
    else:
        y = y + x.astype(jnp.float32)
    o_ref[...] = jnp.maximum(y, 0.0).astype(o_ref.dtype)


def bottleneck_block(xslab, prep, mask, *, Wp, out_dtype):
    """One fused bottleneck block on slab-layout activations.

    xslab: (n_img, Md, Cin) bf16, mask: (Md, 1) f32.  Returns (n_img, Md, Cout).
    """
    n_img, Md, cin = xslab.shape
    mid = prep["w1"].shape[1]
    cout = prep["w3"].shape[1]
    has_proj = prep["match_short"]
    pad = _round_up(Wp + 1, 8)                    # sublane-aligned halo offset
    Pp = _round_up(pad + Md + Wp + 1, 8)          # scratch rows, multiple of 8

    def _full(shape):
        return pl.BlockSpec(shape, lambda *_: (0,) * len(shape))

    in_specs = [pl.BlockSpec((None, Md, cin), lambda n: (n, 0, 0)),
                _full((cin, mid)), _full((1, mid)),
                _full((9, mid, mid)), _full((1, mid)),
                _full((mid, cout)), _full((1, cout))]
    args = [xslab, prep["w1"], prep["b1"], prep["w2"], prep["b2"],
            prep["w3"], prep["b3"]]
    if has_proj:
        in_specs += [_full((cin, cout)), _full((1, cout))]
        args += [prep["ws"], prep["bs"]]
    in_specs.append(_full((Md, 1)))
    args.append(mask)

    return pl.pallas_call(
        functools.partial(_bottleneck_kernel, Wp=Wp, pad=pad, has_proj=has_proj),
        out_shape=jax.ShapeDtypeStruct((n_img, Md, cout), out_dtype),
        grid=(n_img,),
        in_specs=in_specs,
        out_specs=pl.BlockSpec((None, Md, cout), lambda n: (n, 0, 0)),
        scratch_shapes=[pltpu.VMEM((Pp, mid), jnp.float32)],
        compiler_params=pltpu.CompilerParams(
            dimension_semantics=("parallel",),
            vmem_limit_bytes=_vmem_limit_bytes(),
        ),
    )(*args)


# ----------------------------------------------------------------------------
# Parameters (deterministic, PyTorch layouts) + one-time prep
# ----------------------------------------------------------------------------
def _bn_init(key, c):
    k1, k2, k3, k4 = jax.random.split(key, 4)
    gamma = jax.random.uniform(k1, (c,), jnp.float32, 0.5, 1.5)
    beta = 0.1 * jax.random.normal(k2, (c,), jnp.float32)
    mean = 0.1 * jax.random.normal(k3, (c,), jnp.float32)
    var = jax.random.uniform(k4, (c,), jnp.float32, 0.5, 1.5)
    return gamma, beta, mean, var


def init_block_params(key, in_chn, out_chn, mid_chn, down_stride):
    match_short = (in_chn != out_chn) or (down_stride > 1)
    ks = jax.random.split(key, 8)
    p = {
        # PyTorch weight layout: (out, in, kh, kw)
        "w1": 0.1 * jax.random.normal(ks[0], (mid_chn, in_chn, 1, 1), jnp.float32),
        "w2": 0.1 * jax.random.normal(ks[1], (mid_chn, mid_chn, 3, 3), jnp.float32),
        "w3": 0.1 * jax.random.normal(ks[2], (out_chn, mid_chn, 1, 1), jnp.float32),
        "bn1": _bn_init(ks[3], mid_chn),
        "bn2": _bn_init(ks[4], mid_chn),
        "bn3": _bn_init(ks[5], out_chn),
        "match_short": match_short,
    }
    if match_short:
        p["ws"] = 0.1 * jax.random.normal(ks[6], (out_chn, in_chn, 1, 1), jnp.float32)
        p["bn_s"] = _bn_init(ks[7], out_chn)
    return p


def init_stage_params(key, num_blocks, in_chn, out_chn, mid_chn, down_stride):
    keys = jax.random.split(key, num_blocks)
    blocks = []
    for bi in range(num_blocks):
        cin = in_chn if bi == 0 else out_chn
        stride = down_stride if bi == 0 else 1
        blocks.append(init_block_params(keys[bi], cin, out_chn, mid_chn, stride))
    return blocks


def _fold_bn(bn):
    gamma, beta, mean, var = bn
    scale = gamma / jnp.sqrt(var + EPS)
    bias = beta - mean * scale
    return scale.astype(jnp.float32), bias.astype(jnp.float32)


def prepare_block_params(p):
    """Fold eval-mode BN scale into the conv weights (before the bf16 cast), keep
    only the bias for the epilogue, and transpose weights to matmul layout."""
    mid = p["w1"].shape[0]
    out_chn = p["w3"].shape[0]
    s1, b1 = _fold_bn(p["bn1"])
    s2, b2 = _fold_bn(p["bn2"])
    s3, b3 = _fold_bn(p["bn3"])
    w1 = (p["w1"][:, :, 0, 0] * s1[:, None]).T.astype(jnp.bfloat16)        # (cin, mid)
    w2 = (p["w2"] * s2[:, None, None, None])
    w2 = jnp.transpose(w2, (2, 3, 1, 0)).reshape(9, mid, mid).astype(jnp.bfloat16)
    w3 = (p["w3"][:, :, 0, 0] * s3[:, None]).T.astype(jnp.bfloat16)        # (mid, out)
    prep = {
        "match_short": p["match_short"],
        "w1": w1, "b1": b1.reshape(1, mid),
        "w2": w2, "b2": b2.reshape(1, mid),
        "w3": w3, "b3": b3.reshape(1, out_chn),
    }
    if p["match_short"]:
        ss, bs = _fold_bn(p["bn_s"])
        prep["ws"] = (p["ws"][:, :, 0, 0] * ss[:, None]).T.astype(jnp.bfloat16)
        prep["bs"] = bs.reshape(1, out_chn)
    return prep


# ----------------------------------------------------------------------------
# Stage forward (Pallas)
# ----------------------------------------------------------------------------
def grow_r50_stage_forward(x_nchw, stage_prep, down_stride):
    n_img = x_nchw.shape[0]
    # Single fused XLA pre-pass: NCHW->NHWC + stride subsample + width pad + bf16.
    x = jnp.transpose(x_nchw, (0, 2, 3, 1))
    if down_stride > 1:
        x = x[:, ::down_stride, ::down_stride, :]
    _, Ho, Wo, _ = x.shape
    Wp = Wo + 2                           # flat row width incl. 2 zero pad columns
    Md = (Ho - 1) * Wp + Wo               # slab rows covering every valid pixel
    xslab = jnp.pad(x, ((0, 0), (0, 0), (0, Wp - Wo), (0, 0)))
    xslab = xslab.reshape(n_img, Ho * Wp, -1)[:, :Md].astype(jnp.bfloat16)
    cols = jnp.arange(Md, dtype=jnp.int32) % Wp
    mask = (cols < Wo).astype(jnp.float32).reshape(Md, 1)

    nb = len(stage_prep)
    h = xslab
    for bi, prep in enumerate(stage_prep):
        out_dtype = jnp.float32 if bi == nb - 1 else jnp.bfloat16
        h = bottleneck_block(h, prep, mask, Wp=Wp, out_dtype=out_dtype)

    # Single fused XLA post-pass: slab -> NHWC valid -> NCHW.
    cout = stage_prep[-1]["w3"].shape[1]
    out = jnp.pad(h, ((0, 0), (0, Ho * Wp - Md), (0, 0)))
    out = out.reshape(n_img, Ho, Wp, cout)[:, :, :Wo, :]
    return jnp.transpose(out, (0, 3, 1, 2))


# ----------------------------------------------------------------------------
# Pure-JAX reference (NCHW, eval-mode BN, PyTorch op order); mirrors the kernels'
# bf16 matmul operand precision.  The kernel additionally folds the BN scale into
# the bf16 weights, so tolerances are set at 1e-2.
# ----------------------------------------------------------------------------
def reference_stage_forward(x, stage_params, down_stride):
    def conv(x, w, stride=1, pad=0):
        return jax.lax.conv_general_dilated(
            x.astype(jnp.bfloat16), w.astype(jnp.bfloat16),
            (stride, stride), [(pad, pad), (pad, pad)],
            dimension_numbers=("NCHW", "OIHW", "NCHW"),
            preferred_element_type=jnp.float32)

    def bn(x, params):
        g, b, m, v = params
        sh = (1, -1, 1, 1)
        return (x - m.reshape(sh)) * (g.reshape(sh) / jnp.sqrt(v.reshape(sh) + EPS)) \
            + b.reshape(sh)

    h = x
    for bi, p in enumerate(stage_params):
        stride = down_stride if bi == 0 else 1
        h = h.astype(jnp.bfloat16).astype(jnp.float32)   # blocks exchange bf16
        identity = h
        y = jax.nn.relu(bn(conv(h, p["w1"], stride=stride), p["bn1"]))
        y = jax.nn.relu(bn(conv(y, p["w2"], stride=1, pad=1), p["bn2"]))
        y = bn(conv(y, p["w3"]), p["bn3"])
        if p["match_short"]:
            identity = bn(conv(identity, p["ws"], stride=stride), p["bn_s"])
        h = jax.nn.relu(y + identity)
    return h


# ----------------------------------------------------------------------------
if __name__ == "__main__":
    # Small-but-representative stage: 2 bottleneck blocks, first one downsamples
    # and uses a projection shortcut, second uses the identity shortcut.
    # NOTE: 8/16/32-channel demo shapes are for correctness only; perf should be
    # judged at real R50 channel widths (>=128 lanes).
    num_blocks = 2
    in_chn, out_chn, mid_chn, down_stride = 8, 32, 16, 2
    n_img, H, W = 2, 16, 16

    key = jax.random.PRNGKey(0)
    kx, kp = jax.random.split(key)
    x = jax.random.normal(kx, (n_img, in_chn, H, W), jnp.float32)
    raw_params = init_stage_params(kp, num_blocks, in_chn, out_chn, mid_chn,
                                   down_stride)
    prepped = [prepare_block_params(p) for p in raw_params]

    fwd = jax.jit(lambda xx: grow_r50_stage_forward(xx, prepped, down_stride))
    out = jax.block_until_ready(fwd(x))

    ref = jax.block_until_ready(reference_stage_forward(x, raw_params, down_stride))

    assert out.shape == (n_img, out_chn, H // down_stride, W // down_stride), out.shape
    np.testing.assert_allclose(np.asarray(out), np.asarray(ref),
                               rtol=1e-2, atol=1e-2)

    print("KERNEL_OK")
</pallas_src>

<mosaic_0001>
module attributes {stable_mosaic.version = 11 : i64} {
  func.func @_bottleneck_kernel(%arg0: i32, %arg1: memref<1x78x8xbf16, #tpu.memory_space<vmem>>, %arg2: memref<8x16xbf16, #tpu.memory_space<vmem>>, %arg3: memref<1x16xf32, #tpu.memory_space<vmem>>, %arg4: memref<9x16x16xbf16, #tpu.memory_space<vmem>>, %arg5: memref<1x16xf32, #tpu.memory_space<vmem>>, %arg6: memref<16x32xbf16, #tpu.memory_space<vmem>>, %arg7: memref<1x32xf32, #tpu.memory_space<vmem>>, %arg8: memref<8x32xbf16, #tpu.memory_space<vmem>>, %arg9: memref<1x32xf32, #tpu.memory_space<vmem>>, %arg10: memref<78x1xf32, #tpu.memory_space<vmem>>, %arg11: memref<1x78x32xbf16, #tpu.memory_space<vmem>>, %arg12: memref<112x16xf32, #tpu.memory_space<vmem>>) attributes {dimension_semantics = [#tpu.dimension_semantics<parallel>], iteration_bounds = array<i64: 2>, scalar_prefetch = 0 : i64, scratch_operands = 1 : i64, tpu.core_type = #tpu.core_type<tc>, window_params = [{transform_indices = @transform_0, window_bounds = array<i64: 1, 78, 8>}, {pipeline_mode = #tpu.pipeline_mode<synchronous>, transform_indices = @transform_1, window_bounds = array<i64: 8, 16>}, {pipeline_mode = #tpu.pipeline_mode<synchronous>, transform_indices = @transform_2, window_bounds = array<i64: 1, 16>}, {pipeline_mode = #tpu.pipeline_mode<synchronous>, transform_indices = @transform_3, window_bounds = array<i64: 9, 16, 16>}, {pipeline_mode = #tpu.pipeline_mode<synchronous>, transform_indices = @transform_4, window_bounds = array<i64: 1, 16>}, {pipeline_mode = #tpu.pipeline_mode<synchronous>, transform_indices = @transform_5, window_bounds = array<i64: 16, 32>}, {pipeline_mode = #tpu.pipeline_mode<synchronous>, transform_indices = @transform_6, window_bounds = array<i64: 1, 32>}, {pipeline_mode = #tpu.pipeline_mode<synchronous>, transform_indices = @transform_7, window_bounds = array<i64: 8, 32>}, {pipeline_mode = #tpu.pipeline_mode<synchronous>, transform_indices = @transform_8, window_bounds = array<i64: 1, 32>}, {pipeline_mode = #tpu.pipeline_mode<synchronous>, transform_indices = @transform_9, window_bounds = array<i64: 78, 1>}, {transform_indices = @transform_10, window_bounds = array<i64: 1, 78, 32>}]} {
    %c0 = arith.constant 0 : index
    %c0_0 = arith.constant 0 : index
    %c0_1 = arith.constant 0 : index
    %0 = vector.load %arg1[%c0, %c0_0, %c0_1] : memref<1x78x8xbf16, #tpu.memory_space<vmem>>, vector<1x78x8xbf16>
    %1 = vector.shape_cast %0 : vector<1x78x8xbf16> to vector<78x8xbf16>
    %c0_2 = arith.constant 0 : index
    %c0_3 = arith.constant 0 : index
    %2 = vector.load %arg2[%c0_2, %c0_3] : memref<8x16xbf16, #tpu.memory_space<vmem>>, vector<8x16xbf16>
    %cst = arith.constant dense<0.000000e+00> : vector<78x16xf32>
    %3 = tpu.matmul %1, %2, %cst {dimension_numbers = #tpu.dot_dimension_numbers<[1], [0], [0], [1], [0, 0, 1, 1], [], []>} : vector<78x8xbf16>, vector<8x16xbf16>, vector<78x16xf32> -> vector<78x16xf32>
    %c0_4 = arith.constant 0 : index
    %c0_5 = arith.constant 0 : index
    %4 = vector.load %arg3[%c0_4, %c0_5] : memref<1x16xf32, #tpu.memory_space<vmem>>, vector<1x16xf32>
    %5 = vector.broadcast %4 : vector<1x16xf32> to vector<78x16xf32>
    %6 = arith.addf %3, %5 : vector<78x16xf32>
    %cst_6 = arith.constant 0.000000e+00 : f32
    %7 = vector.broadcast %cst_6 : f32 to vector<78x16xf32>
    %8 = arith.maximumf %6, %7 : vector<78x16xf32>
    %c0_7 = arith.constant 0 : index
    %c0_8 = arith.constant 0 : index
    %9 = vector.load %arg10[%c0_7, %c0_8] : memref<78x1xf32, #tpu.memory_space<vmem>>, vector<78x1xf32>
    %10 = vector.broadcast %9 : vector<78x1xf32> to vector<78x16xf32>
    %11 = arith.mulf %8, %10 : vector<78x16xf32>
    %cst_9 = arith.constant 0.000000e+00 : f32
    %12 = vector.broadcast %cst_9 : f32 to vector<16x16xf32>
    %c0_10 = arith.constant 0 : index
    %c0_11 = arith.constant 0 : index
    %13 = vector.load %arg12[%c0_10, %c0_11] : memref<112x16xf32, #tpu.memory_space<vmem>>, vector<16x16xf32>
    tpu.vector_store %arg12[%c0_10, %c0_11], %12 {strides = array<i32>} : memref<112x16xf32, #tpu.memory_space<vmem>>, vector<16x16xf32>,
    %c16 = arith.constant 16 : index
    %c0_12 = arith.constant 0 : index
    %14 = vector.load %arg12[%c16, %c0_12] : memref<112x16xf32, #tpu.memory_space<vmem>>, vector<78x16xf32>
    tpu.vector_store %arg12[%c16, %c0_12], %11 {strides = array<i32>} : memref<112x16xf32, #tpu.memory_space<vmem>>, vector<78x16xf32>,
    %cst_13 = arith.constant 0.000000e+00 : f32
    %15 = vector.broadcast %cst_13 : f32 to vector<18x16xf32>
    %c94 = arith.constant 94 : index
    %c0_14 = arith.constant 0 : index
    %16 = vector.load %arg12[%c94, %c0_14] : memref<112x16xf32, #tpu.memory_space<vmem>>, vector<18x16xf32>
    tpu.vector_store %arg12[%c94, %c0_14], %15 {strides = array<i32>} : memref<112x16xf32, #tpu.memory_space<vmem>>, vector<18x16xf32>,
    %c5 = arith.constant 5 : index
    %c0_15 = arith.constant 0 : index
    %17 = vector.load %arg12[%c5, %c0_15] : memref<112x16xf32, #tpu.memory_space<vmem>>, vector<78x16xf32>
    %18 = arith.truncf %17 : vector<78x16xf32> to vector<78x16xbf16>
    %c0_16 = arith.constant 0 : index
    %c0_17 = arith.constant 0 : index
    %c0_18 = arith.constant 0 : index
    %19 = vector.load %arg4[%c0_16, %c0_17, %c0_18] : memref<9x16x16xbf16, #tpu.memory_space<vmem>>, vector<1x16x16xbf16>
    %20 = vector.shape_cast %19 : vector<1x16x16xbf16> to vector<16x16xbf16>
    %cst_19 = arith.constant dense<0.000000e+00> : vector<78x16xf32>
    %21 = tpu.matmul %18, %20, %cst_19 {dimension_numbers = #tpu.dot_dimension_numbers<[1], [0], [0], [1], [0, 0, 1, 1], [], []>} : vector<78x16xbf16>, vector<16x16xbf16>, vector<78x16xf32> -> vector<78x16xf32>
    %c6 = arith.constant 6 : index
    %c0_20 = arith.constant 0 : index
    %22 = vector.load %arg12[%c6, %c0_20] : memref<112x16xf32, #tpu.memory_space<vmem>>, vector<78x16xf32>
    %23 = arith.truncf %22 : vector<78x16xf32> to vector<78x16xbf16>
    %c1 = arith.constant 1 : index
    %c0_21 = arith.constant 0 : index
    %c0_22 = arith.constant 0 : index
    %24 = vector.load %arg4[%c1, %c0_21, %c0_22] : memref<9x16x16xbf16, #tpu.memory_space<vmem>>, vector<1x16x16xbf16>
    %25 = vector.shape_cast %24 : vector<1x16x16xbf16> to vector<16x16xbf16>
    %cst_23 = arith.constant dense<0.000000e+00> : vector<78x16xf32>
    %26 = tpu.matmul %23, %25, %cst_23 {dimension_numbers = #tpu.dot_dimension_numbers<[1], [0], [0], [1], [0, 0, 1, 1], [], []>} : vector<78x16xbf16>, vector<16x16xbf16>, vector<78x16xf32> -> vector<78x16xf32>
    %27 = arith.addf %21, %26 : vector<78x16xf32>
    %c7 = arith.constant 7 : index
    %c0_24 = arith.constant 0 : index
    %28 = vector.load %arg12[%c7, %c0_24] : memref<112x16xf32, #tpu.memory_space<vmem>>, vector<78x16xf32>
    %29 = arith.truncf %28 : vector<78x16xf32> to vector<78x16xbf16>
    %c2 = arith.constant 2 : index
    %c0_25 = arith.constant 0 : index
    %c0_26 = arith.constant 0 : index
    %30 = vector.load %arg4[%c2, %c0_25, %c0_26] : memref<9x16x16xbf16, #tpu.memory_space<vmem>>, vector<1x16x16xbf16>
    %31 = vector.shape_cast %30 : vector<1x16x16xbf16> to vector<16x16xbf16>
    %cst_27 = arith.constant dense<0.000000e+00> : vector<78x16xf32>
    %32 = tpu.matmul %29, %31, %cst_27 {dimension_numbers = #tpu.dot_dimension_numbers<[1], [0], [0], [1], [0, 0, 1, 1], [], []>} : vector<78x16xbf16>, vector<16x16xbf16>, vector<78x16xf32> -> vector<78x16xf32>
    %33 = arith.addf %27, %32 : vector<78x16xf32>
    %c15 = arith.constant 15 : index
    %c0_28 = arith.constant 0 : index
    %34 = vector.load %arg12[%c15, %c0_28] : memref<112x16xf32, #tpu.memory_space<vmem>>, vector<78x16xf32>
    %35 = arith.truncf %34 : vector<78x16xf32> to vector<78x16xbf16>
    %c3 = arith.constant 3 : index
    %c0_29 = arith.constant 0 : index
    %c0_30 = arith.constant 0 : index
    %36 = vector.load %arg4[%c3, %c0_29, %c0_30] : memref<9x16x16xbf16, #tpu.memory_space<vmem>>, vector<1x16x16xbf16>
    %37 = vector.shape_cast %36 : vector<1x16x16xbf16> to vector<16x16xbf16>
    %cst_31 = arith.constant dense<0.000000e+00> : vector<78x16xf32>
    %38 = tpu.matmul %35, %37, %cst_31 {dimension_numbers = #tpu.dot_dimension_numbers<[1], [0], [0], [1], [0, 0, 1, 1], [], []>} : vector<78x16xbf16>, vector<16x16xbf16>, vector<78x16xf32> -> vector<78x16xf32>
    %39 = arith.addf %33, %38 : vector<78x16xf32>
    %c16_32 = arith.constant 16 : index
    %c0_33 = arith.constant 0 : index
    %40 = vector.load %arg12[%c16_32, %c0_33] : memref<112x16xf32, #tpu.memory_space<vmem>>, vector<78x16xf32>
    %41 = arith.truncf %40 : vector<78x16xf32> to vector<78x16xbf16>
    %c4 = arith.constant 4 : index
    %c0_34 = arith.constant 0 : index
    %c0_35 = arith.constant 0 : index
    %42 = vector.load %arg4[%c4, %c0_34, %c0_35] : memref<9x16x16xbf16, #tpu.memory_space<vmem>>, vector<1x16x16xbf16>
    %43 = vector.shape_cast %42 : vector<1x16x16xbf16> to vector<16x16xbf16>
    %cst_36 = arith.constant dense<0.000000e+00> : vector<78x16xf32>
    %44 = tpu.matmul %41, %43, %cst_36 {dimension_numbers = #tpu.dot_dimension_numbers<[1], [0], [0], [1], [0, 0, 1, 1], [], []>} : vector<78x16xbf16>, vector<16x16xbf16>, vector<78x16xf32> -> vector<78x16xf32>
    %45 = arith.addf %39, %44 : vector<78x16xf32>
    %c17 = arith.constant 17 : index
    %c0_37 = arith.constant 0 : index
    %46 = vector.load %arg12[%c17, %c0_37] : memref<112x16xf32, #tpu.memory_space<vmem>>, vector<78x16xf32>
    %47 = arith.truncf %46 : vector<78x16xf32> to vector<78x16xbf16>
    %c5_38 = arith.constant 5 : index
    %c0_39 = arith.constant 0 : index
    %c0_40 = arith.constant 0 : index
    %48 = vector.load %arg4[%c5_38, %c0_39, %c0_40] : memref<9x16x16xbf16, #tpu.memory_space<vmem>>, vector<1x16x16xbf16>
    %49 = vector.shape_cast %48 : vector<1x16x16xbf16> to vector<16x16xbf16>
    %cst_41 = arith.constant dense<0.000000e+00> : vector<78x16xf32>
    %50 = tpu.matmul %47, %49, %cst_41 {dimension_numbers = #tpu.dot_dimension_numbers<[1], [0], [0], [1], [0, 0, 1, 1], [], []>} : vector<78x16xbf16>, vector<16x16xbf16>, vector<78x16xf32> -> vector<78x16xf32>
    %51 = arith.addf %45, %50 : vector<78x16xf32>
    %c25 = arith.constant 25 : index
    %c0_42 = arith.constant 0 : index
    %52 = vector.load %arg12[%c25, %c0_42] : memref<112x16xf32, #tpu.memory_space<vmem>>, vector<78x16xf32>
    %53 = arith.truncf %52 : vector<78x16xf32> to vector<78x16xbf16>
    %c6_43 = arith.constant 6 : index
    %c0_44 = arith.constant 0 : index
    %c0_45 = arith.constant 0 : index
    %54 = vector.load %arg4[%c6_43, %c0_44, %c0_45] : memref<9x16x16xbf16, #tpu.memory_space<vmem>>, vector<1x16x16xbf16>
    %55 = vector.shape_cast %54 : vector<1x16x16xbf16> to vector<16x16xbf16>
    %cst_46 = arith.constant dense<0.000000e+00> : vector<78x16xf32>
    %56 = tpu.matmul %53, %55, %cst_46 {dimension_numbers = #tpu.dot_dimension_numbers<[1], [0], [0], [1], [0, 0, 1, 1], [], []>} : vector<78x16xbf16>, vector<16x16xbf16>, vector<78x16xf32> -> vector<78x16xf32>
    %57 = arith.addf %51, %56 : vector<78x16xf32>
    %c26 = arith.constant 26 : index
    %c0_47 = arith.constant 0 : index
    %58 = vector.load %arg12[%c26, %c0_47] : memref<112x16xf32, #tpu.memory_space<vmem>>, vector<78x16xf32>
    %59 = arith.truncf %58 : vector<78x16xf32> to vector<78x16xbf16>
    %c7_48 = arith.constant 7 : index
    %c0_49 = arith.constant 0 : index
    %c0_50 = arith.constant 0 : index
    %60 = vector.load %arg4[%c7_48, %c0_49, %c0_50] : memref<9x16x16xbf16, #tpu.memory_space<vmem>>, vector<1x16x16xbf16>
    %61 = vector.shape_cast %60 : vector<1x16x16xbf16> to vector<16x16xbf16>
    %cst_51 = arith.constant dense<0.000000e+00> : vector<78x16xf32>
    %62 = tpu.matmul %59, %61, %cst_51 {dimension_numbers = #tpu.dot_dimension_numbers<[1], [0], [0], [1], [0, 0, 1, 1], [], []>} : vector<78x16xbf16>, vector<16x16xbf16>, vector<78x16xf32> -> vector<78x16xf32>
    %63 = arith.addf %57, %62 : vector<78x16xf32>
    %c27 = arith.constant 27 : index
    %c0_52 = arith.constant 0 : index
    %64 = vector.load %arg12[%c27, %c0_52] : memref<112x16xf32, #tpu.memory_space<vmem>>, vector<78x16xf32>
    %65 = arith.truncf %64 : vector<78x16xf32> to vector<78x16xbf16>
    %c8 = arith.constant 8 : index
    %c0_53 = arith.constant 0 : index
    %c0_54 = arith.constant 0 : index
    %66 = vector.load %arg4[%c8, %c0_53, %c0_54] : memref<9x16x16xbf16, #tpu.memory_space<vmem>>, vector<1x16x16xbf16>
    %67 = vector.shape_cast %66 : vector<1x16x16xbf16> to vector<16x16xbf16>
    %cst_55 = arith.constant dense<0.000000e+00> : vector<78x16xf32>
    %68 = tpu.matmul %65, %67, %cst_55 {dimension_numbers = #tpu.dot_dimension_numbers<[1], [0], [0], [1], [0, 0, 1, 1], [], []>} : vector<78x16xbf16>, vector<16x16xbf16>, vector<78x16xf32> -> vector<78x16xf32>
    %69 = arith.addf %63, %68 : vector<78x16xf32>
    %c0_56 = arith.constant 0 : index
    %c0_57 = arith.constant 0 : index
    %70 = vector.load %arg5[%c0_56, %c0_57] : memref<1x16xf32, #tpu.memory_space<vmem>>, vector<1x16xf32>
    %71 = vector.broadcast %70 : vector<1x16xf32> to vector<78x16xf32>
    %72 = arith.addf %69, %71 : vector<78x16xf32>
    %cst_58 = arith.constant 0.000000e+00 : f32
    %73 = vector.broadcast %cst_58 : f32 to vector<78x16xf32>
    %74 = arith.maximumf %72, %73 : vector<78x16xf32>
    %75 = arith.truncf %74 : vector<78x16xf32> to vector<78x16xbf16>
    %c0_59 = arith.constant 0 : index
    %c0_60 = arith.constant 0 : index
    %76 = vector.load %arg6[%c0_59, %c0_60] : memref<16x32xbf16, #tpu.memory_space<vmem>>, vector<16x32xbf16>
    %cst_61 = arith.constant dense<0.000000e+00> : vector<78x32xf32>
    %77 = tpu.matmul %75, %76, %cst_61 {dimension_numbers = #tpu.dot_dimension_numbers<[1], [0], [0], [1], [0, 0, 1, 1], [], []>} : vector<78x16xbf16>, vector<16x32xbf16>, vector<78x32xf32> -> vector<78x32xf32>
    %c0_62 = arith.constant 0 : index
    %c0_63 = arith.constant 0 : index
    %78 = vector.load %arg7[%c0_62, %c0_63] : memref<1x32xf32, #tpu.memory_space<vmem>>, vector<1x32xf32>
    %79 = vector.broadcast %78 : vector<1x32xf32> to vector<78x32xf32>
    %80 = arith.addf %77, %79 : vector<78x32xf32>
    %c0_64 = arith.constant 0 : index
    %c0_65 = arith.constant 0 : index
    %81 = vector.load %arg8[%c0_64, %c0_65] : memref<8x32xbf16, #tpu.memory_space<vmem>>, vector<8x32xbf16>
    %cst_66 = arith.constant dense<0.000000e+00> : vector<78x32xf32>
    %82 = tpu.matmul %1, %81, %cst_66 {dimension_numbers = #tpu.dot_dimension_numbers<[1], [0], [0], [1], [0, 0, 1, 1], [], []>} : vector<78x8xbf16>, vector<8x32xbf16>, vector<78x32xf32> -> vector<78x32xf32>
    %83 = arith.addf %80, %82 : vector<78x32xf32>
    %c0_67 = arith.constant 0 : index
    %c0_68 = arith.constant 0 : index
    %84 = vector.load %arg9[%c0_67, %c0_68] : memref<1x32xf32, #tpu.memory_space<vmem>>, vector<1x32xf32>
    %85 = vector.broadcast %84 : vector<1x32xf32> to vector<78x32xf32>
    %86 = arith.addf %83, %85 : vector<78x32xf32>
    %cst_69 = arith.constant 0.000000e+00 : f32
    %87 = vector.broadcast %cst_69 : f32 to vector<78x32xf32>
    %88 = arith.maximumf %86, %87 : vector<78x32xf32>
    %89 = arith.truncf %88 : vector<78x32xf32> to vector<78x32xbf16>
    %c0_70 = arith.constant 0 : index
    %c0_71 = arith.constant 0 : index
    %c0_72 = arith.constant 0 : index
    %90 = vector.load %arg11[%c0_70, %c0_71, %c0_72] : memref<1x78x32xbf16, #tpu.memory_space<vmem>>, vector<1x78x32xbf16>
    %91 = vector.shape_cast %90 : vector<1x78x32xbf16> to vector<78x32xbf16>
    %92 = vector.shape_cast %89 : vector<78x32xbf16> to vector<1x78x32xbf16>
    tpu.vector_store %arg11[%c0_70, %c0_71, %c0_72], %92 {strides = array<i32>} : memref<1x78x32xbf16, #tpu.memory_space<vmem>>, vector<1x78x32xbf16>,
    return
  }
  func.func @transform_0(%arg0: i32) -> (i32, i32, i32) {
    %c0_i32 = arith.constant 0 : i32
    %c0_i32_0 = arith.constant 0 : i32
    %c0_i32_1 = arith.constant 0 : i32
    return %arg0, %c0_i32, %c0_i32_0 : i32, i32, i32
  }
  func.func @transform_1(%arg0: i32) -> (i32, i32) {
    %c0_i32 = arith.constant 0 : i32
    %c0_i32_0 = arith.constant 0 : i32
    %c0_i32_1 = arith.constant 0 : i32
    return %c0_i32, %c0_i32_0 : i32, i32
  }
  func.func @transform_2(%arg0: i32) -> (i32, i32) {
    %c0_i32 = arith.constant 0 : i32
    %c0_i32_0 = arith.constant 0 : i32
    %c0_i32_1 = arith.constant 0 : i32
    return %c0_i32, %c0_i32_0 : i32, i32
  }
  func.func @transform_3(%arg0: i32) -> (i32, i32, i32) {
    %c0_i32 = arith.constant 0 : i32
    %c0_i32_0 = arith.constant 0 : i32
    %c0_i32_1 = arith.constant 0 : i32
    %c0_i32_2 = arith.constant 0 : i32
    return %c0_i32, %c0_i32_0, %c0_i32_1 : i32, i32, i32
  }
  func.func @transform_4(%arg0: i32) -> (i32, i32) {
    %c0_i32 = arith.constant 0 : i32
    %c0_i32_0 = arith.constant 0 : i32
    %c0_i32_1 = arith.constant 0 : i32
    return %c0_i32, %c0_i32_0 : i32, i32
  }
  func.func @transform_5(%arg0: i32) -> (i32, i32) {
    %c0_i32 = arith.constant 0 : i32
    %c0_i32_0 = arith.constant 0 : i32
    %c0_i32_1 = arith.constant 0 : i32
    return %c0_i32, %c0_i32_0 : i32, i32
  }
  func.func @transform_6(%arg0: i32) -> (i32, i32) {
    %c0_i32 = arith.constant 0 : i32
    %c0_i32_0 = arith.constant 0 : i32
    %c0_i32_1 = arith.constant 0 : i32
    return %c0_i32, %c0_i32_0 : i32, i32
  }
  func.func @transform_7(%arg0: i32) -> (i32, i32) {
    %c0_i32 = arith.constant 0 : i32
    %c0_i32_0 = arith.constant 0 : i32
    %c0_i32_1 = arith.constant 0 : i32
    return %c0_i32, %c0_i32_0 : i32, i32
  }
  func.func @transform_8(%arg0: i32) -> (i32, i32) {
    %c0_i32 = arith.constant 0 : i32
    %c0_i32_0 = arith.constant 0 : i32
    %c0_i32_1 = arith.constant 0 : i32
    return %c0_i32, %c0_i32_0 : i32, i32
  }
  func.func @transform_9(%arg0: i32) -> (i32, i32) {
    %c0_i32 = arith.constant 0 : i32
    %c0_i32_0 = arith.constant 0 : i32
    %c0_i32_1 = arith.constant 0 : i32
    return %c0_i32, %c0_i32_0 : i32, i32
  }
  func.func @transform_10(%arg0: i32) -> (i32, i32, i32) {
    %c0_i32 = arith.constant 0 : i32
    %c0_i32_0 = arith.constant 0 : i32
    %c0_i32_1 = arith.constant 0 : i32
    return %arg0, %c0_i32, %c0_i32_0 : i32, i32, i32
  }
}

module attributes {stable_mosaic.version = 11 : i64} {
  func.func @_bottleneck_kernel(%arg0: i32, %arg1: memref<1x78x32xbf16, #tpu.memory_space<vmem>>, %arg2: memref<32x16xbf16, #tpu.memory_space<vmem>>, %arg3: memref<1x16xf32, #tpu.memory_space<vmem>>, %arg4: memref<9x16x16xbf16, #tpu.memory_space<vmem>>, %arg5: memref<1x16xf32, #tpu.memory_space<vmem>>, %arg6: memref<16x32xbf16, #tpu.memory_space<vmem>>, %arg7: memref<1x32xf32, #tpu.memory_space<vmem>>, %arg8: memref<78x1xf32, #tpu.memory_space<vmem>>, %arg9: memref<1x78x32xf32, #tpu.memory_space<vmem>>, %arg10: memref<112x16xf32, #tpu.memory_space<vmem>>) attributes {dimension_semantics = [#tpu.dimension_semantics<parallel>], iteration_bounds = array<i64: 2>, scalar_prefetch = 0 : i64, scratch_operands = 1 : i64, tpu.core_type = #tpu.core_type<tc>, window_params = [{transform_indices = @transform_0, window_bounds = array<i64: 1, 78, 32>}, {pipeline_mode = #tpu.pipeline_mode<synchronous>, transform_indices = @transform_1, window_bounds = array<i64: 32, 16>}, {pipeline_mode = #tpu.pipeline_mode<synchronous>, transform_indices = @transform_2, window_bounds = array<i64: 1, 16>}, {pipeline_mode = #tpu.pipeline_mode<synchronous>, transform_indices = @transform_3, window_bounds = array<i64: 9, 16, 16>}, {pipeline_mode = #tpu.pipeline_mode<synchronous>, transform_indices = @transform_4, window_bounds = array<i64: 1, 16>}, {pipeline_mode = #tpu.pipeline_mode<synchronous>, transform_indices = @transform_5, window_bounds = array<i64: 16, 32>}, {pipeline_mode = #tpu.pipeline_mode<synchronous>, transform_indices = @transform_6, window_bounds = array<i64: 1, 32>}, {pipeline_mode = #tpu.pipeline_mode<synchronous>, transform_indices = @transform_7, window_bounds = array<i64: 78, 1>}, {transform_indices = @transform_8, window_bounds = array<i64: 1, 78, 32>}]} {
    %c0 = arith.constant 0 : index
    %c0_0 = arith.constant 0 : index
    %c0_1 = arith.constant 0 : index
    %0 = vector.load %arg1[%c0, %c0_0, %c0_1] : memref<1x78x32xbf16, #tpu.memory_space<vmem>>, vector<1x78x32xbf16>
    %1 = vector.shape_cast %0 : vector<1x78x32xbf16> to vector<78x32xbf16>
    %c0_2 = arith.constant 0 : index
    %c0_3 = arith.constant 0 : index
    %2 = vector.load %arg2[%c0_2, %c0_3] : memref<32x16xbf16, #tpu.memory_space<vmem>>, vector<32x16xbf16>
    %cst = arith.constant dense<0.000000e+00> : vector<78x16xf32>
    %3 = tpu.matmul %1, %2, %cst {dimension_numbers = #tpu.dot_dimension_numbers<[1], [0], [0], [1], [0, 0, 1, 1], [], []>} : vector<78x32xbf16>, vector<32x16xbf16>, vector<78x16xf32> -> vector<78x16xf32>
    %c0_4 = arith.constant 0 : index
    %c0_5 = arith.constant 0 : index
    %4 = vector.load %arg3[%c0_4, %c0_5] : memref<1x16xf32, #tpu.memory_space<vmem>>, vector<1x16xf32>
    %5 = vector.broadcast %4 : vector<1x16xf32> to vector<78x16xf32>
    %6 = arith.addf %3, %5 : vector<78x16xf32>
    %cst_6 = arith.constant 0.000000e+00 : f32
    %7 = vector.broadcast %cst_6 : f32 to vector<78x16xf32>
    %8 = arith.maximumf %6, %7 : vector<78x16xf32>
    %c0_7 = arith.constant 0 : index
    %c0_8 = arith.constant 0 : index
    %9 = vector.load %arg8[%c0_7, %c0_8] : memref<78x1xf32, #tpu.memory_space<vmem>>, vector<78x1xf32>
    %10 = vector.broadcast %9 : vector<78x1xf32> to vector<78x16xf32>
    %11 = arith.mulf %8, %10 : vector<78x16xf32>
    %cst_9 = arith.constant 0.000000e+00 : f32
    %12 = vector.broadcast %cst_9 : f32 to vector<16x16xf32>
    %c0_10 = arith.constant 0 : index
    %c0_11 = arith.constant 0 : index
    %13 = vector.load %arg10[%c0_10, %c0_11] : memref<112x16xf32, #tpu.memory_space<vmem>>, vector<16x16xf32>
    tpu.vector_store %arg10[%c0_10, %c0_11], %12 {strides = array<i32>} : memref<112x16xf32, #tpu.memory_space<vmem>>, vector<16x16xf32>,
    %c16 = arith.constant 16 : index
    %c0_12 = arith.constant 0 : index
    %14 = vector.load %arg10[%c16, %c0_12] : memref<112x16xf32, #tpu.memory_space<vmem>>, vector<78x16xf32>
    tpu.vector_store %arg10[%c16, %c0_12], %11 {strides = array<i32>} : memref<112x16xf32, #tpu.memory_space<vmem>>, vector<78x16xf32>,
    %cst_13 = arith.constant 0.000000e+00 : f32
    %15 = vector.broadcast %cst_13 : f32 to vector<18x16xf32>
    %c94 = arith.constant 94 : index
    %c0_14 = arith.constant 0 : index
    %16 = vector.load %arg10[%c94, %c0_14] : memref<112x16xf32, #tpu.memory_space<vmem>>, vector<18x16xf32>
    tpu.vector_store %arg10[%c94, %c0_14], %15 {strides = array<i32>} : memref<112x16xf32, #tpu.memory_space<vmem>>, vector<18x16xf32>,
    %c5 = arith.constant 5 : index
    %c0_15 = arith.constant 0 : index
    %17 = vector.load %arg10[%c5, %c0_15] : memref<112x16xf32, #tpu.memory_space<vmem>>, vector<78x16xf32>
    %18 = arith.truncf %17 : vector<78x16xf32> to vector<78x16xbf16>
    %c0_16 = arith.constant 0 : index
    %c0_17 = arith.constant 0 : index
    %c0_18 = arith.constant 0 : index
    %19 = vector.load %arg4[%c0_16, %c0_17, %c0_18] : memref<9x16x16xbf16, #tpu.memory_space<vmem>>, vector<1x16x16xbf16>
    %20 = vector.shape_cast %19 : vector<1x16x16xbf16> to vector<16x16xbf16>
    %cst_19 = arith.constant dense<0.000000e+00> : vector<78x16xf32>
    %21 = tpu.matmul %18, %20, %cst_19 {dimension_numbers = #tpu.dot_dimension_numbers<[1], [0], [0], [1], [0, 0, 1, 1], [], []>} : vector<78x16xbf16>, vector<16x16xbf16>, vector<78x16xf32> -> vector<78x16xf32>
    %c6 = arith.constant 6 : index
    %c0_20 = arith.constant 0 : index
    %22 = vector.load %arg10[%c6, %c0_20] : memref<112x16xf32, #tpu.memory_space<vmem>>, vector<78x16xf32>
    %23 = arith.truncf %22 : vector<78x16xf32> to vector<78x16xbf16>
    %c1 = arith.constant 1 : index
    %c0_21 = arith.constant 0 : index
    %c0_22 = arith.constant 0 : index
    %24 = vector.load %arg4[%c1, %c0_21, %c0_22] : memref<9x16x16xbf16, #tpu.memory_space<vmem>>, vector<1x16x16xbf16>
    %25 = vector.shape_cast %24 : vector<1x16x16xbf16> to vector<16x16xbf16>
    %cst_23 = arith.constant dense<0.000000e+00> : vector<78x16xf32>
    %26 = tpu.matmul %23, %25, %cst_23 {dimension_numbers = #tpu.dot_dimension_numbers<[1], [0], [0], [1], [0, 0, 1, 1], [], []>} : vector<78x16xbf16>, vector<16x16xbf16>, vector<78x16xf32> -> vector<78x16xf32>
    %27 = arith.addf %21, %26 : vector<78x16xf32>
    %c7 = arith.constant 7 : index
    %c0_24 = arith.constant 0 : index
    %28 = vector.load %arg10[%c7, %c0_24] : memref<112x16xf32, #tpu.memory_space<vmem>>, vector<78x16xf32>
    %29 = arith.truncf %28 : vector<78x16xf32> to vector<78x16xbf16>
    %c2 = arith.constant 2 : index
    %c0_25 = arith.constant 0 : index
    %c0_26 = arith.constant 0 : index
    %30 = vector.load %arg4[%c2, %c0_25, %c0_26] : memref<9x16x16xbf16, #tpu.memory_space<vmem>>, vector<1x16x16xbf16>
    %31 = vector.shape_cast %30 : vector<1x16x16xbf16> to vector<16x16xbf16>
    %cst_27 = arith.constant dense<0.000000e+00> : vector<78x16xf32>
    %32 = tpu.matmul %29, %31, %cst_27 {dimension_numbers = #tpu.dot_dimension_numbers<[1], [0], [0], [1], [0, 0, 1, 1], [], []>} : vector<78x16xbf16>, vector<16x16xbf16>, vector<78x16xf32> -> vector<78x16xf32>
    %33 = arith.addf %27, %32 : vector<78x16xf32>
    %c15 = arith.constant 15 : index
    %c0_28 = arith.constant 0 : index
    %34 = vector.load %arg10[%c15, %c0_28] : memref<112x16xf32, #tpu.memory_space<vmem>>, vector<78x16xf32>
    %35 = arith.truncf %34 : vector<78x16xf32> to vector<78x16xbf16>
    %c3 = arith.constant 3 : index
    %c0_29 = arith.constant 0 : index
    %c0_30 = arith.constant 0 : index
    %36 = vector.load %arg4[%c3, %c0_29, %c0_30] : memref<9x16x16xbf16, #tpu.memory_space<vmem>>, vector<1x16x16xbf16>
    %37 = vector.shape_cast %36 : vector<1x16x16xbf16> to vector<16x16xbf16>
    %cst_31 = arith.constant dense<0.000000e+00> : vector<78x16xf32>
    %38 = tpu.matmul %35, %37, %cst_31 {dimension_numbers = #tpu.dot_dimension_numbers<[1], [0], [0], [1], [0, 0, 1, 1], [], []>} : vector<78x16xbf16>, vector<16x16xbf16>, vector<78x16xf32> -> vector<78x16xf32>
    %39 = arith.addf %33, %38 : vector<78x16xf32>
    %c16_32 = arith.constant 16 : index
    %c0_33 = arith.constant 0 : index
    %40 = vector.load %arg10[%c16_32, %c0_33] : memref<112x16xf32, #tpu.memory_space<vmem>>, vector<78x16xf32>
    %41 = arith.truncf %40 : vector<78x16xf32> to vector<78x16xbf16>
    %c4 = arith.constant 4 : index
    %c0_34 = arith.constant 0 : index
    %c0_35 = arith.constant 0 : index
    %42 = vector.load %arg4[%c4, %c0_34, %c0_35] : memref<9x16x16xbf16, #tpu.memory_space<vmem>>, vector<1x16x16xbf16>
    %43 = vector.shape_cast %42 : vector<1x16x16xbf16> to vector<16x16xbf16>
    %cst_36 = arith.constant dense<0.000000e+00> : vector<78x16xf32>
    %44 = tpu.matmul %41, %43, %cst_36 {dimension_numbers = #tpu.dot_dimension_numbers<[1], [0], [0], [1], [0, 0, 1, 1], [], []>} : vector<78x16xbf16>, vector<16x16xbf16>, vector<78x16xf32> -> vector<78x16xf32>
    %45 = arith.addf %39, %44 : vector<78x16xf32>
    %c17 = arith.constant 17 : index
    %c0_37 = arith.constant 0 : index
    %46 = vector.load %arg10[%c17, %c0_37] : memref<112x16xf32, #tpu.memory_space<vmem>>, vector<78x16xf32>
    %47 = arith.truncf %46 : vector<78x16xf32> to vector<78x16xbf16>
    %c5_38 = arith.constant 5 : index
    %c0_39 = arith.constant 0 : index
    %c0_40 = arith.constant 0 : index
    %48 = vector.load %arg4[%c5_38, %c0_39, %c0_40] : memref<9x16x16xbf16, #tpu.memory_space<vmem>>, vector<1x16x16xbf16>
    %49 = vector.shape_cast %48 : vector<1x16x16xbf16> to vector<16x16xbf16>
    %cst_41 = arith.constant dense<0.000000e+00> : vector<78x16xf32>
    %50 = tpu.matmul %47, %49, %cst_41 {dimension_numbers = #tpu.dot_dimension_numbers<[1], [0], [0], [1], [0, 0, 1, 1], [], []>} : vector<78x16xbf16>, vector<16x16xbf16>, vector<78x16xf32> -> vector<78x16xf32>
    %51 = arith.addf %45, %50 : vector<78x16xf32>
    %c25 = arith.constant 25 : index
    %c0_42 = arith.constant 0 : index
    %52 = vector.load %arg10[%c25, %c0_42] : memref<112x16xf32, #tpu.memory_space<vmem>>, vector<78x16xf32>
    %53 = arith.truncf %52 : vector<78x16xf32> to vector<78x16xbf16>
    %c6_43 = arith.constant 6 : index
    %c0_44 = arith.constant 0 : index
    %c0_45 = arith.constant 0 : index
    %54 = vector.load %arg4[%c6_43, %c0_44, %c0_45] : memref<9x16x16xbf16, #tpu.memory_space<vmem>>, vector<1x16x16xbf16>
    %55 = vector.shape_cast %54 : vector<1x16x16xbf16> to vector<16x16xbf16>
    %cst_46 = arith.constant dense<0.000000e+00> : vector<78x16xf32>
    %56 = tpu.matmul %53, %55, %cst_46 {dimension_numbers = #tpu.dot_dimension_numbers<[1], [0], [0], [1], [0, 0, 1, 1], [], []>} : vector<78x16xbf16>, vector<16x16xbf16>, vector<78x16xf32> -> vector<78x16xf32>
    %57 = arith.addf %51, %56 : vector<78x16xf32>
    %c26 = arith.constant 26 : index
    %c0_47 = arith.constant 0 : index
    %58 = vector.load %arg10[%c26, %c0_47] : memref<112x16xf32, #tpu.memory_space<vmem>>, vector<78x16xf32>
    %59 = arith.truncf %58 : vector<78x16xf32> to vector<78x16xbf16>
    %c7_48 = arith.constant 7 : index
    %c0_49 = arith.constant 0 : index
    %c0_50 = arith.constant 0 : index
    %60 = vector.load %arg4[%c7_48, %c0_49, %c0_50] : memref<9x16x16xbf16, #tpu.memory_space<vmem>>, vector<1x16x16xbf16>
    %61 = vector.shape_cast %60 : vector<1x16x16xbf16> to vector<16x16xbf16>
    %cst_51 = arith.constant dense<0.000000e+00> : vector<78x16xf32>
    %62 = tpu.matmul %59, %61, %cst_51 {dimension_numbers = #tpu.dot_dimension_numbers<[1], [0], [0], [1], [0, 0, 1, 1], [], []>} : vector<78x16xbf16>, vector<16x16xbf16>, vector<78x16xf32> -> vector<78x16xf32>
    %63 = arith.addf %57, %62 : vector<78x16xf32>
    %c27 = arith.constant 27 : index
    %c0_52 = arith.constant 0 : index
    %64 = vector.load %arg10[%c27, %c0_52] : memref<112x16xf32, #tpu.memory_space<vmem>>, vector<78x16xf32>
    %65 = arith.truncf %64 : vector<78x16xf32> to vector<78x16xbf16>
    %c8 = arith.constant 8 : index
    %c0_53 = arith.constant 0 : index
    %c0_54 = arith.constant 0 : index
    %66 = vector.load %arg4[%c8, %c0_53, %c0_54] : memref<9x16x16xbf16, #tpu.memory_space<vmem>>, vector<1x16x16xbf16>
    %67 = vector.shape_cast %66 : vector<1x16x16xbf16> to vector<16x16xbf16>
    %cst_55 = arith.constant dense<0.000000e+00> : vector<78x16xf32>
    %68 = tpu.matmul %65, %67, %cst_55 {dimension_numbers = #tpu.dot_dimension_numbers<[1], [0], [0], [1], [0, 0, 1, 1], [], []>} : vector<78x16xbf16>, vector<16x16xbf16>, vector<78x16xf32> -> vector<78x16xf32>
    %69 = arith.addf %63, %68 : vector<78x16xf32>
    %c0_56 = arith.constant 0 : index
    %c0_57 = arith.constant 0 : index
    %70 = vector.load %arg5[%c0_56, %c0_57] : memref<1x16xf32, #tpu.memory_space<vmem>>, vector<1x16xf32>
    %71 = vector.broadcast %70 : vector<1x16xf32> to vector<78x16xf32>
    %72 = arith.addf %69, %71 : vector<78x16xf32>
    %cst_58 = arith.constant 0.000000e+00 : f32
    %73 = vector.broadcast %cst_58 : f32 to vector<78x16xf32>
    %74 = arith.maximumf %72, %73 : vector<78x16xf32>
    %75 = arith.truncf %74 : vector<78x16xf32> to vector<78x16xbf16>
    %c0_59 = arith.constant 0 : index
    %c0_60 = arith.constant 0 : index
    %76 = vector.load %arg6[%c0_59, %c0_60] : memref<16x32xbf16, #tpu.memory_space<vmem>>, vector<16x32xbf16>
    %cst_61 = arith.constant dense<0.000000e+00> : vector<78x32xf32>
    %77 = tpu.matmul %75, %76, %cst_61 {dimension_numbers = #tpu.dot_dimension_numbers<[1], [0], [0], [1], [0, 0, 1, 1], [], []>} : vector<78x16xbf16>, vector<16x32xbf16>, vector<78x32xf32> -> vector<78x32xf32>
    %c0_62 = arith.constant 0 : index
    %c0_63 = arith.constant 0 : index
    %78 = vector.load %arg7[%c0_62, %c0_63] : memref<1x32xf32, #tpu.memory_space<vmem>>, vector<1x32xf32>
    %79 = vector.broadcast %78 : vector<1x32xf32> to vector<78x32xf32>
    %80 = arith.addf %77, %79 : vector<78x32xf32>
    %81 = arith.extf %1 : vector<78x32xbf16> to vector<78x32xf32>
    %82 = arith.addf %80, %81 : vector<78x32xf32>
    %cst_64 = arith.constant 0.000000e+00 : f32
    %83 = vector.broadcast %cst_64 : f32 to vector<78x32xf32>
    %84 = arith.maximumf %82, %83 : vector<78x32xf32>
    %c0_65 = arith.constant 0 : index
    %c0_66 = arith.constant 0 : index
    %c0_67 = arith.constant 0 : index
    %85 = vector.load %arg9[%c0_65, %c0_66, %c0_67] : memref<1x78x32xf32, #tpu.memory_space<vmem>>, vector<1x78x32xf32>
    %86 = vector.shape_cast %85 : vector<1x78x32xf32> to vector<78x32xf32>
    %87 = vector.shape_cast %84 : vector<78x32xf32> to vector<1x78x32xf32>
    tpu.vector_store %arg9[%c0_65, %c0_66, %c0_67], %87 {strides = array<i32>} : memref<1x78x32xf32, #tpu.memory_space<vmem>>, vector<1x78x32xf32>,
    return
  }
  func.func @transform_0(%arg0: i32) -> (i32, i32, i32) {
    %c0_i32 = arith.constant 0 : i32
    %c0_i32_0 = arith.constant 0 : i32
    %c0_i32_1 = arith.constant 0 : i32
    return %arg0, %c0_i32, %c0_i32_0 : i32, i32, i32
  }
  func.func @transform_1(%arg0: i32) -> (i32, i32) {
    %c0_i32 = arith.constant 0 : i32
    %c0_i32_0 = arith.constant 0 : i32
    %c0_i32_1 = arith.constant 0 : i32
    return %c0_i32, %c0_i32_0 : i32, i32
  }
  func.func @transform_2(%arg0: i32) -> (i32, i32) {
    %c0_i32 = arith.constant 0 : i32
    %c0_i32_0 = arith.constant 0 : i32
    %c0_i32_1 = arith.constant 0 : i32
    return %c0_i32, %c0_i32_0 : i32, i32
  }
  func.func @transform_3(%arg0: i32) -> (i32, i32, i32) {
    %c0_i32 = arith.constant 0 : i32
    %c0_i32_0 = arith.constant 0 : i32
    %c0_i32_1 = arith.constant 0 : i32
    %c0_i32_2 = arith.constant 0 : i32
    return %c0_i32, %c0_i32_0, %c0_i32_1 : i32, i32, i32
  }
  func.func @transform_4(%arg0: i32) -> (i32, i32) {
    %c0_i32 = arith.constant 0 : i32
    %c0_i32_0 = arith.constant 0 : i32
    %c0_i32_1 = arith.constant 0 : i32
    return %c0_i32, %c0_i32_0 : i32, i32
  }
  func.func @transform_5(%arg0: i32) -> (i32, i32) {
    %c0_i32 = arith.constant 0 : i32
    %c0_i32_0 = arith.constant 0 : i32
    %c0_i32_1 = arith.constant 0 : i32
    return %c0_i32, %c0_i32_0 : i32, i32
  }
  func.func @transform_6(%arg0: i32) -> (i32, i32) {
    %c0_i32 = arith.constant 0 : i32
    %c0_i32_0 = arith.constant 0 : i32
    %c0_i32_1 = arith.constant 0 : i32
    return %c0_i32, %c0_i32_0 : i32, i32
  }
  func.func @transform_7(%arg0: i32) -> (i32, i32) {
    %c0_i32 = arith.constant 0 : i32
    %c0_i32_0 = arith.constant 0 : i32
    %c0_i32_1 = arith.constant 0 : i32
    return %c0_i32, %c0_i32_0 : i32, i32
  }
  func.func @transform_8(%arg0: i32) -> (i32, i32, i32) {
    %c0_i32 = arith.constant 0 : i32
    %c0_i32_0 = arith.constant 0 : i32
    %c0_i32_1 = arith.constant 0 : i32
    return %arg0, %c0_i32, %c0_i32_0 : i32, i32, i32
  }
}

</mosaic_0001>

<llo_original>
// kernel: _lambda_.3
$region0: #{_lambda_.3}
  #allocation0 [shape = 'u32[]', space=smem, size = 0x4, offset = 0x4, fixed_abs, tag = 'smem constant byte address 0x4 - core index']
  #allocation1 [shape = 'u32[72,128]{1,0:T(1,128)}', space=vmem, size = 0x9000, scoped, tag = 'internal scratch']
  #allocation2 [shape = 'f32[112,16]{1,0:T(8,128)}', space=vmem, size = 0xe000, scoped, tag = 'scratch operand']
  %s0 = inlined_call_operand.vmem [shape: bf16[2,78,32], index: 0, kind: input, shape index: {}]
  %s1 = inlined_call_operand.vmem [shape: bf16[32,16], index: 1, kind: input, shape index: {}]
  %s2 = inlined_call_operand.vmem [shape: f32[1,16], index: 2, kind: input, shape index: {}]
  %s3 = inlined_call_operand.vmem [shape: bf16[9,16,16], index: 3, kind: input, shape index: {}]
  %s4 = inlined_call_operand.vmem [shape: f32[1,16], index: 4, kind: input, shape index: {}]
  %s5 = inlined_call_operand.vmem [shape: bf16[16,32], index: 5, kind: input, shape index: {}]
  %s6 = inlined_call_operand.vmem [shape: f32[1,32], index: 6, kind: input, shape index: {}]
  %s7 = inlined_call_operand.vmem [shape: f32[78,1], index: 7, kind: input, shape index: {}]
  %s8 = inlined_call_operand.vmem [shape: f32[2,78,32], index: 8, kind: output, shape index: {}]
  %s9 = sld [smem:[#allocation0]]
  $region65: #{_lambda_.3} parent=0
    _
  %s11 = ssub.s32 1, %s9
  %s12 = scalar_select 0, %s11, %s9
  loop: start=0, step=1, limit=4
  $region2: #{_lambda_.3} parent=0 // loop_pre_header
    _
  $region3: #{_lambda_.3} parent=0 // loop_header
    %s14 = sphi 0, %s18
    %p15 = scmp.ge.s32.totalorder %s14, 4
    %s24 = sphi 0, %s26
    %s27 = sphi 0, %s24
    %s28 = sphi 0, %s27
    %s44 = sphi 0, %s28
    %s48 = sphi 0, %s48
    %s50 = sphi 0, %s48
    %s51 = sphi 0, %s50
    %s65 = sphi 0, %s51
    %s69 = sphi 0, %s69
    %s71 = sphi 0, %s69
    %s72 = sphi 0, %s71
    %s86 = sphi 0, %s72
    %s90 = sphi 0, %s90
    %s92 = sphi 0, %s90
    %s93 = sphi 0, %s92
    %s107 = sphi 0, %s93
    %s111 = sphi 0, %s111
    %s113 = sphi 0, %s111
    %s114 = sphi 0, %s113
    %s128 = sphi 0, %s114
    %s132 = sphi 0, %s132
    %s134 = sphi 0, %s132
    %s135 = sphi 0, %s134
    %s149 = sphi 0, %s135
    %s153 = sphi 0, %s153
    %s155 = sphi 0, %s153
    %s156 = sphi 0, %s155
    %s170 = sphi 0, %s156
    %s174 = sphi 0, %s174
    %s176 = sphi 0, %s174
    %s177 = sphi 0, %s176
    %s191 = sphi 0, %s177
    %s197 = sphi 0, %s199
    %s200 = sphi 0, %s197
    %s201 = sphi 0, %s200
    %s217 = sphi 0, %s201
  $region4: #{_lambda_.3} parent=0 // loop_header_branch
    %17 = sbr.rel (%p15) target = $region8
  $region5: #{_lambda_.3} parent=0 // loop_body
    %s19 = ssub.s32 %s14, 1
    %s20 = ssub.s32 %s14, 2
    %s21 = sadd.s32 %s14, 1
    %s22 = ssub.s32 %s14, %s21
    %p23 = scmp.eq.s32.totalorder %s22, 0
    %s25 = sadd.s32 %s24, 1
    %s26 = scalar_select %p23, %s24, %s25
    %p29 = pneg %p23
    %p30 = scmp.eq.s32.totalorder %s14, 1
    %p31 = por %p29, %p30
    %p32 = scmp.ne.s32.totalorder %s24, %s27
    %p33 = scmp.eq.s32.totalorder %s14, 0
    %p34 = por %p32, %p33
    %p35 = scmp.ne.s32.totalorder %s24, %s27
    %p36 = scmp.eq.s32.totalorder %s19, 1
    %p37 = por %p35, %p36
    %p38 = scmp.ne.s32.totalorder %s27, %s28
    %p39 = scmp.eq.s32.totalorder %s19, 0
    %p40 = por %p38, %p39
    %p41 = scmp.ne.s32.totalorder %s27, %s28
    %p42 = scmp.eq.s32.totalorder %s20, 1
    %p43 = por %p41, %p42
    %p45 = scmp.ne.s32.totalorder %s28, %s44
    %p46 = scmp.eq.s32.totalorder %s20, 0
    %p47 = por %p45, %p46
    %s49 = sadd.s32 %s48, 1
    %p52 = scmp.eq.s32.totalorder %s14, 1
    %p53 = scmp.ne.s32.totalorder %s48, %s50
    %p54 = scmp.eq.s32.totalorder %s14, 0
    %p55 = por %p53, %p54
    %p56 = scmp.ne.s32.totalorder %s48, %s50
    %p57 = scmp.eq.s32.totalorder %s19, 1
    %p58 = por %p56, %p57
    %p59 = scmp.ne.s32.totalorder %s50, %s51
    %p60 = scmp.eq.s32.totalorder %s19, 0
    %p61 = por %p59, %p60
    %p62 = scmp.ne.s32.totalorder %s50, %s51
    %p63 = scmp.eq.s32.totalorder %s20, 1
    %p64 = por %p62, %p63
    %p66 = scmp.ne.s32.totalorder %s51, %s65
    %p67 = scmp.eq.s32.totalorder %s20, 0
    %p68 = por %p66, %p67
    %s70 = sadd.s32 %s69, 1
    %p73 = scmp.eq.s32.totalorder %s14, 1
    %p74 = scmp.ne.s32.totalorder %s69, %s71
    %p75 = scmp.eq.s32.totalorder %s14, 0
    %p76 = por %p74, %p75
    %p77 = scmp.ne.s32.totalorder %s69, %s71
    %p78 = scmp.eq.s32.totalorder %s19, 1
    %p79 = por %p77, %p78
    %p80 = scmp.ne.s32.totalorder %s71, %s72
    %p81 = scmp.eq.s32.totalorder %s19, 0
    %p82 = por %p80, %p81
    %p83 = scmp.ne.s32.totalorder %s71, %s72
    %p84 = scmp.eq.s32.totalorder %s20, 1
    %p85 = por %p83, %p84
    %p87 = scmp.ne.s32.totalorder %s72, %s86
    %p88 = scmp.eq.s32.totalorder %s20, 0
    %p89 = por %p87, %p88
    %s91 = sadd.s32 %s90, 1
    %p94 = scmp.eq.s32.totalorder %s14, 1
    %p95 = scmp.ne.s32.totalorder %s90, %s92
    %p96 = scmp.eq.s32.totalorder %s14, 0
    %p97 = por %p95, %p96
    %p98 = scmp.ne.s32.totalorder %s90, %s92
    %p99 = scmp.eq.s32.totalorder %s19, 1
    %p100 = por %p98, %p99
    %p101 = scmp.ne.s32.totalorder %s92, %s93
    %p102 = scmp.eq.s32.totalorder %s19, 0
    %p103 = por %p101, %p102
    %p104 = scmp.ne.s32.totalorder %s92, %s93
    %p105 = scmp.eq.s32.totalorder %s20, 1
    %p106 = por %p104, %p105
    %p108 = scmp.ne.s32.totalorder %s93, %s107
    %p109 = scmp.eq.s32.totalorder %s20, 0
    %p110 = por %p108, %p109
    %s112 = sadd.s32 %s111, 1
    %p115 = scmp.eq.s32.totalorder %s14, 1
    %p116 = scmp.ne.s32.totalorder %s111, %s113
    %p117 = scmp.eq.s32.totalorder %s14, 0
    %p118 = por %p116, %p117
    %p119 = scmp.ne.s32.totalorder %s111, %s113
    %p120 = scmp.eq.s32.totalorder %s19, 1
    %p121 = por %p119, %p120
    %p122 = scmp.ne.s32.totalorder %s113, %s114
    %p123 = scmp.eq.s32.totalorder %s19, 0
    %p124 = por %p122, %p123
    %p125 = scmp.ne.s32.totalorder %s113, %s114
    %p126 = scmp.eq.s32.totalorder %s20, 1
    %p127 = por %p125, %p126
    %p129 = scmp.ne.s32.totalorder %s114, %s128
    %p130 = scmp.eq.s32.totalorder %s20, 0
    %p131 = por %p129, %p130
    %s133 = sadd.s32 %s132, 1
    %p136 = scmp.eq.s32.totalorder %s14, 1
    %p137 = scmp.ne.s32.totalorder %s132, %s134
    %p138 = scmp.eq.s32.totalorder %s14, 0
    %p139 = por %p137, %p138
    %p140 = scmp.ne.s32.totalorder %s132, %s134
    %p141 = scmp.eq.s32.totalorder %s19, 1
    %p142 = por %p140, %p141
    %p143 = scmp.ne.s32.totalorder %s134, %s135
    %p144 = scmp.eq.s32.totalorder %s19, 0
    %p145 = por %p143, %p144
    %p146 = scmp.ne.s32.totalorder %s134, %s135
    %p147 = scmp.eq.s32.totalorder %s20, 1
    %p148 = por %p146, %p147
    %p150 = scmp.ne.s32.totalorder %s135, %s149
    %p151 = scmp.eq.s32.totalorder %s20, 0
    %p152 = por %p150, %p151
    %s154 = sadd.s32 %s153, 1
    %p157 = scmp.eq.s32.totalorder %s14, 1
    %p158 = scmp.ne.s32.totalorder %s153, %s155
    %p159 = scmp.eq.s32.totalorder %s14, 0
    %p160 = por %p158, %p159
    %p161 = scmp.ne.s32.totalorder %s153, %s155
    %p162 = scmp.eq.s32.totalorder %s19, 1
    %p163 = por %p161, %p162
    %p164 = scmp.ne.s32.totalorder %s155, %s156
    %p165 = scmp.eq.s32.totalorder %s19, 0
    %p166 = por %p164, %p165
    %p167 = scmp.ne.s32.totalorder %s155, %s156
    %p168 = scmp.eq.s32.totalorder %s20, 1
    %p169 = por %p167, %p168
    %p171 = scmp.ne.s32.totalorder %s156, %s170
    %p172 = scmp.eq.s32.totalorder %s20, 0
    %p173 = por %p171, %p172
    %s175 = sadd.s32 %s174, 1
    %p178 = scmp.eq.s32.totalorder %s14, 1
    %p179 = scmp.ne.s32.totalorder %s174, %s176
    %p180 = scmp.eq.s32.totalorder %s14, 0
    %p181 = por %p179, %p180
    %p182 = scmp.ne.s32.totalorder %s174, %s176
    %p183 = scmp.eq.s32.totalorder %s19, 1
    %p184 = por %p182, %p183
    %p185 = scmp.ne.s32.totalorder %s176, %s177
    %p186 = scmp.eq.s32.totalorder %s19, 0
    %p187 = por %p185, %p186
    %p188 = scmp.ne.s32.totalorder %s176, %s177
    %p189 = scmp.eq.s32.totalorder %s20, 1
    %p190 = por %p188, %p189
    %p192 = scmp.ne.s32.totalorder %s177, %s191
    %p193 = scmp.eq.s32.totalorder %s20, 0
    %p194 = por %p192, %p193
    %s195 = ssub.s32 %s14, %s21
    %p196 = scmp.eq.s32.totalorder %s195, 0
    %s198 = sadd.s32 %s197, 1
    %s199 = scalar_select %p196, %s197, %s198
    %p202 = pneg %p196
    %p203 = scmp.eq.s32.totalorder %s14, 1
    %p204 = por %p202, %p203
    %p205 = scmp.ne.s32.totalorder %s197, %s200
    %p206 = scmp.eq.s32.totalorder %s14, 0
    %p207 = por %p205, %p206
    %p208 = scmp.ne.s32.totalorder %s197, %s200
    %p209 = scmp.eq.s32.totalorder %s19, 1
    %p210 = por %p208, %p209
    %p211 = scmp.ne.s32.totalorder %s200, %s201
    %p212 = scmp.eq.s32.totalorder %s19, 0
    %p213 = por %p211, %p212
    %p214 = scmp.ne.s32.totalorder %s200, %s201
    %p215 = scmp.eq.s32.totalorder %s20, 1
    %p216 = por %p214, %p215
    %p218 = scmp.ne.s32.totalorder %s201, %s217
    %p219 = scmp.eq.s32.totalorder %s20, 0
    %p220 = por %p218, %p219
    %p221 = scmp.le.s32.totalorder 1, %s14
    %p222 = scmp.lt.s32.totalorder %s14, 3
    %p223 = pnand %p221, %p222
    %p224 = pneg %p223
    // Predicated region
    $region9: #{_lambda_.3} parent=5 // pred_check
      _
    $region10: #{_lambda_.3} parent=5 // pred_check_branch
      %226 = sbr.rel (%p223) target = $region12
    $region11: #{_lambda_.3} parent=5 // pred_region
      %s227 = ssub.s32 %s14, 1
      // Predicated region
      $region13: #{_lambda_.3} parent=11 // pred_check
        %p228 = pneg %p61
      $region14: #{_lambda_.3} parent=11 // pred_check_branch
        %230 = sbr.rel (%p228) target = $region16
      $region15: #{_lambda_.3} parent=11 // pred_region
        _
      $region16: #{_lambda_.3} parent=11 // pred_fallthru
        _
      // Predicated region
      $region17: #{_lambda_.3} parent=11 // pred_check
        %p231 = pneg %p82
      $region18: #{_lambda_.3} parent=11 // pred_check_branch
        %233 = sbr.rel (%p231) target = $region20
      $region19: #{_lambda_.3} parent=11 // pred_region
        _
      $region20: #{_lambda_.3} parent=11 // pred_fallthru
        _
      // Predicated region
      $region21: #{_lambda_.3} parent=11 // pred_check
        %p234 = pneg %p103
      $region22: #{_lambda_.3} parent=11 // pred_check_branch
        %236 = sbr.rel (%p234) target = $region24
      $region23: #{_lambda_.3} parent=11 // pred_region
        _
      $region24: #{_lambda_.3} parent=11 // pred_fallthru
        _
      // Predicated region
      $region25: #{_lambda_.3} parent=11 // pred_check
        %p237 = pneg %p124
      $region26: #{_lambda_.3} parent=11 // pred_check_branch
        %239 = sbr.rel (%p237) target = $region28
      $region27: #{_lambda_.3} parent=11 // pred_region
        _
      $region28: #{_lambda_.3} parent=11 // pred_fallthru
        _
      // Predicated region
      $region29: #{_lambda_.3} parent=11 // pred_check
        %p240 = pneg %p145
      $region30: #{_lambda_.3} parent=11 // pred_check_branch
        %242 = sbr.rel (%p240) target = $region32
      $region31: #{_lambda_.3} parent=11 // pred_region
        _
      $region32: #{_lambda_.3} parent=11 // pred_fallthru
        _
      // Predicated region
      $region33: #{_lambda_.3} parent=11 // pred_check
        %p243 = pneg %p166
      $region34: #{_lambda_.3} parent=11 // pred_check_branch
        %245 = sbr.rel (%p243) target = $region36
      $region35: #{_lambda_.3} parent=11 // pred_region
        _
      $region36: #{_lambda_.3} parent=11 // pred_fallthru
        _
      // Predicated region
      $region37: #{_lambda_.3} parent=11 // pred_check
        %p246 = pneg %p187
      $region38: #{_lambda_.3} parent=11 // pred_check_branch
        %248 = sbr.rel (%p246) target = $region40
      $region39: #{_lambda_.3} parent=11 // pred_region
        _
      $region40: #{_lambda_.3} parent=11 // pred_fallthru
        _
    $region12: #{_lambda_.3} parent=5 // pred_fallthru
      _
    %p249 = scmp.lt.s32.totalorder %s14, 2
    // Predicated region
    $region41: #{_lambda_.3} parent=5 // pred_check
      %p250 = pneg %p249
    $region42: #{_lambda_.3} parent=5 // pred_check_branch
      %252 = sbr.rel (%p250) target = $region44
    $region43: #{_lambda_.3} parent=5 // pred_region
      // Predicated region
      $region45: #{_lambda_.3} parent=43 // pred_check
        %p253 = pneg %p34
      $region46: #{_lambda_.3} parent=43 // pred_check_branch
        %255 = sbr.rel (%p253) target = $region48
      $region47: #{_lambda_.3} parent=43 // pred_region
        %p256 = scmp.lt.s32.totalorder %s14, 1
        %s257 = scalar_select %p256, %s14, 1
        %s258 = smul.addr %s257, 10
        %s259 = smul.addr %s258, 4
        %s260 = scalar_lea.vmem %s0, %s259
      $region48: #{_lambda_.3} parent=43 // pred_fallthru
        _
    $region44: #{_lambda_.3} parent=5 // pred_fallthru
      _
    %p261 = scmp.le.s32.totalorder 1, %s14
    %p262 = scmp.lt.s32.totalorder %s14, 3
    %p263 = pnand %p261, %p262
    %p264 = pneg %p263
    // Predicated region
    $region49: #{_lambda_.3} parent=5 // pred_check
      _
    $region50: #{_lambda_.3} parent=5 // pred_check_branch
      %266 = sbr.rel (%p263) target = $region52
    $region51: #{_lambda_.3} parent=5 // pred_region
      %s267 = ssub.s32 %s14, 1
      %p268 = scmp.lt.s32.totalorder %s19, 1
      %s269 = scalar_select %p268, %s19, 1
      %s270 = smul.addr %s269, 10
      %s271 = smul.addr %s270, 4
      %s272 = scalar_lea.vmem %s0, %s271
      %p273 = pneg %p40
      %p274 = pneg %p37
      %p275 = pneg %p61
      %p276 = pneg %p58
      %p277 = pneg %p82
      %p278 = pneg %p79
      %p279 = pneg %p103
      %p280 = pneg %p100
      %p281 = pneg %p124
      %p282 = pneg %p121
      %p283 = pneg %p145
      %p284 = pneg %p142
      %p285 = pneg %p166
      %p286 = pneg %p163
      %p287 = pneg %p187
      %p288 = pneg %p184
      %p289 = pneg %p213
      %p290 = pneg %p210
      %p291 = scmp.lt.s32.totalorder %s19, 1
      %s292 = scalar_select %p291, %s19, 1
      %s293 = smul.addr %s292, 10
      %s294 = smul.addr %s293, 8
      %s295 = scalar_lea.vmem %s8, %s294
      %p296 = scmp.lt.s32.totalorder %s19, 1
      %s297 = scalar_select %p296, %s19, 1
      %s298 = smul.addr %s297, 10
      %s299 = smul.addr %s298, 4
      %s300 = scalar_lea.vmem %s0, %s299
      %p301 = scmp.lt.s32.totalorder %s19, 1
      %s302 = scalar_select %p301, %s19, 1
      %s303 = smul.addr %s302, 10
      %s304 = smul.addr %s303, 8
      %s305 = scalar_lea.vmem %s8, %s304
      %v307 = vld [vmem:[%s300] sm:$0xf]
      %v308 = vld [vmem:[%s300 + $0x4] sm:$0xf]
      %v309 = vld [vmem:[%s300 + $0x8] sm:$0xf]
      %v310 = vld [vmem:[%s300 + $0xc] sm:$0xf]
      %v311 = vld [vmem:[%s300 + $0x10] sm:$0xf]
      %v312 = vld [vmem:[%s300 + $0x14] sm:$0xf]
      %v313 = vld [vmem:[%s300 + $0x18] sm:$0xf]
      %v314 = vld [vmem:[%s300 + $0x1c] sm:$0xf]
      %v315 = vld [vmem:[%s300 + $0x20] sm:$0xf]
      %v316 = vld [vmem:[%s300 + $0x24] sm:$0x7]
      %v317 = vld [vmem:[%s1] sm:$0xf]
      %v318 = vld [vmem:[%s1 + $0x4] sm:$0xf]
      %v319 = vld [vmem:[%s1 + $0x8] sm:$0xf]
      %v320 = vld [vmem:[%s1 + $0xc] sm:$0xf]
      %v321 = vld [vmem:[%s2] sm:$0x1]
      %v323 = vperm.slane %v321, 0
      %v335 = vunpack.c.l.b16 %v307
      %v336 = vunpack.c.l.b16 %v308
      %v337 = vunpack.c.l.b16 %v309
      %v338 = vunpack.c.l.b16 %v310
      %v339 = vunpack.c.l.b16 %v311
      %v340 = vunpack.c.l.b16 %v312
      %v341 = vunpack.c.l.b16 %v313
      %v342 = vunpack.c.l.b16 %v314
      %v343 = vunpack.c.l.b16 %v315
      %v344 = vunpack.c.l.b16 %v316
      %v345 = vpack.c.b16 %v336, %v335
      %v346 = vpack.c.b16 %v338, %v337
      %v347 = vpack.c.b16 %v340, %v339
      %v348 = vpack.c.b16 %v342, %v341
      %v349 = vpack.c.b16 %v344, %v343
      %v354 = vunpack.c.l.b16 %v317
      %v355 = vunpack.c.l.b16 %v318
      %v356 = vunpack.c.l.b16 %v319
      %v357 = vunpack.c.l.b16 %v320
      %v358 = vpack.c.b16 %v355, %v354
      %v359 = vpack.c.b16 %v357, %v356
      %vm362 = vcmask 261120
      %v364 = vsel %vm362, %v345, 0
      %v367 = vsel %vm362, %v346, 0
      %v370 = vsel %vm362, %v347, 0
      %v373 = vsel %vm362, %v348, 0
      %v376 = vsel %vm362, %v349, 0
      %378 = vmatpush.bf16.msra.mxu0 0
      %379 = vmatpush.bf16.msra.mxu0 0
      %380 = vmatpush.bf16.msra.mxu0 0
      %381 = vmatpush.bf16.msra.mxu0 0
      %382 = vmatpush.bf16.msra.mxu0 0
      %383 = vmatpush.bf16.msra.mxu0 0
      %384 = vmatpush.bf16.msra.mxu0 %v359
      %385 = vmatpush.bf16.msra.mxu0 %v358
      %386 = vmatmul.bf16.gmra.mxu0 %v364
      %v387 = vpop.f32.mrf.mxu0
      %v388 = vadd.f32 %v323, %v387
      %v389 = vpop.f32.mrf.mxu0
      %v390 = vadd.f32 %v323, %v389
      %391 = vmatmul.bf16.gmra.mxu0 %v367
      %v392 = vpop.f32.mrf.mxu0
      %v393 = vadd.f32 %v323, %v392
      %v394 = vpop.f32.mrf.mxu0
      %v395 = vadd.f32 %v323, %v394
      %396 = vmatmul.bf16.gmra.mxu0 %v370
      %v397 = vpop.f32.mrf.mxu0
      %v398 = vadd.f32 %v323, %v397
      %v399 = vpop.f32.mrf.mxu0
      %v400 = vadd.f32 %v323, %v399
      %401 = vmatmul.bf16.gmra.mxu0 %v373
      %v402 = vpop.f32.mrf.mxu0
      %v403 = vadd.f32 %v323, %v402
      %v404 = vpop.f32.mrf.mxu0
      %v405 = vadd.f32 %v323, %v404
      %406 = vmatmul.bf16.gmra.mxu0 %v376
      %v407 = vpop.f32.mrf.mxu0
      %v408 = vadd.f32 %v323, %v407
      %v409 = vpop.f32.mrf.mxu0
      %v410 = vadd.f32 %v323, %v409
      %411 = vdwg.mxu0
      %v412 = vmax.f32 %v388, 0.0
      %v413 = vmax.f32 %v390, 0.0
      %v414 = vmax.f32 %v393, 0.0
      %v415 = vmax.f32 %v395, 0.0
      %v416 = vmax.f32 %v398, 0.0
      %v417 = vmax.f32 %v400, 0.0
      %v418 = vmax.f32 %v403, 0.0
      %v419 = vmax.f32 %v405, 0.0
      %v420 = vmax.f32 %v408, 0.0
      %v421 = vmax.f32 %v410, 0.0
      %v422 = vld [vmem:[%s7] sm:$0xff]
      %v423 = vld [vmem:[%s7 + $0x8] sm:$0xff]
      %v424 = vld [vmem:[%s7 + $0x10] sm:$0xff]
      %v425 = vld [vmem:[%s7 + $0x18] sm:$0xff]
      %v426 = vld [vmem:[%s7 + $0x20] sm:$0xff]
      %v427 = vld [vmem:[%s7 + $0x28] sm:$0xff]
      %v428 = vld [vmem:[%s7 + $0x30] sm:$0xff]
      %v429 = vld [vmem:[%s7 + $0x38] sm:$0xff]
      %v430 = vld [vmem:[%s7 + $0x40] sm:$0xff]
      %v431 = vld [vmem:[%s7 + $0x48] sm:$0x3f]
      %433 = vset.pattern.permute.xlu0 0
      %434 = vperm.xlu0 %433, %v422
      %v435 = vpop.permute.xlu0 %434
      %438 = vset.pattern.permute.xlu0 0
      %439 = vperm.xlu0 %438, %v423
      %v440 = vpop.permute.xlu0 %439
      %443 = vset.pattern.permute.xlu0 0
      %444 = vperm.xlu0 %443, %v424
      %v445 = vpop.permute.xlu0 %444
      %448 = vset.pattern.permute.xlu0 0
      %449 = vperm.xlu0 %448, %v425
      %v450 = vpop.permute.xlu0 %449
      %453 = vset.pattern.permute.xlu0 0
      %454 = vperm.xlu0 %453, %v426
      %v455 = vpop.permute.xlu0 %454
      %458 = vset.pattern.permute.xlu0 0
      %459 = vperm.xlu0 %458, %v427
      %v460 = vpop.permute.xlu0 %459
      %463 = vset.pattern.permute.xlu0 0
      %464 = vperm.xlu0 %463, %v428
      %v465 = vpop.permute.xlu0 %464
      %468 = vset.pattern.permute.xlu0 0
      %469 = vperm.xlu0 %468, %v429
      %v470 = vpop.permute.xlu0 %469
      %473 = vset.pattern.permute.xlu0 0
      %474 = vperm.xlu0 %473, %v430
      %v475 = vpop.permute.xlu0 %474
      %478 = vset.pattern.permute.xlu0 0
      %479 = vperm.xlu0 %478, %v431
      %v480 = vpop.permute.xlu0 %479
      %v482 = vmul.f32 %v412, %v435
      %v483 = vmul.f32 %v413, %v440
      %v484 = vmul.f32 %v414, %v445
      %v485 = vmul.f32 %v415, %v450
      %v486 = vmul.f32 %v416, %v455
      %v487 = vmul.f32 %v417, %v460
      %v488 = vmul.f32 %v418, %v465
      %v489 = vmul.f32 %v419, %v470
      %v490 = vmul.f32 %v420, %v475
      %v491 = vmul.f32 %v421, %v480
      %vm492 = vcmask 130048
      %493 = vst.msk [vmem:[#allocation2] sm:$0xff] %vm492, 0.0
      %494 = vst.msk [vmem:[#allocation2 + $0x8] sm:$0xff] %vm492, 0.0
      %495 = vst.msk [vmem:[#allocation2 + $0x10] sm:$0xff] %vm492, %v482
      %496 = vst.msk [vmem:[#allocation2 + $0x18] sm:$0xff] %vm492, %v483
      %497 = vst.msk [vmem:[#allocation2 + $0x20] sm:$0xff] %vm492, %v484
      %498 = vst.msk [vmem:[#allocation2 + $0x28] sm:$0xff] %vm492, %v485
      %499 = vst.msk [vmem:[#allocation2 + $0x30] sm:$0xff] %vm492, %v486
      %500 = vst.msk [vmem:[#allocation2 + $0x38] sm:$0xff] %vm492, %v487
      %501 = vst.msk [vmem:[#allocation2 + $0x40] sm:$0xff] %vm492, %v488
      %502 = vst.msk [vmem:[#allocation2 + $0x48] sm:$0xff] %vm492, %v489
      %503 = vst.msk [vmem:[#allocation2 + $0x50] sm:$0xff] %vm492, %v490
      %vm504 = vcmask 128000
      %505 = vst.msk [vmem:[#allocation2 + $0x58] sm:$0x3f] %vm504, %v491
      %506 = vst.msk [vmem:[#allocation2 + $0x5e] sm:$0xff] %vm492, 0.0
      %507 = vst.msk [vmem:[#allocation2 + $0x66] sm:$0xff] %vm492, 0.0
      %vm508 = vcmask 123904
      %509 = vst.msk [vmem:[#allocation2 + $0x6e] sm:$0x3] %vm508, 0.0
      %v510 = vld [vmem:[#allocation2 + $0x5] sm:$0xff]
      %v511 = vld [vmem:[#allocation2 + $0xd] sm:$0xff]
      %v512 = vld [vmem:[#allocation2 + $0x15] sm:$0xff]
      %v513 = vld [vmem:[#allocation2 + $0x1d] sm:$0xff]
      %v514 = vld [vmem:[#allocation2 + $0x25] sm:$0xff]
      %v515 = vld [vmem:[#allocation2 + $0x2d] sm:$0xff]
      %v516 = vld [vmem:[#allocation2 + $0x35] sm:$0xff]
      %v517 = vld [vmem:[#allocation2 + $0x3d] sm:$0xff]
      %v518 = vld [vmem:[#allocation2 + $0x45] sm:$0xff]
      %v519 = vld [vmem:[#allocation2 + $0x4d] sm:$0x3f]
      %v520 = vpack.c.bf16 %v511, %v510
      %v521 = vpack.c.bf16 %v513, %v512
      %v522 = vpack.c.bf16 %v515, %v514
      %v523 = vpack.c.bf16 %v517, %v516
      %v524 = vpack.c.bf16 %v519, %v518
      %v525 = vld [vmem:[%s3] sm:$0xf]
      %v526 = vld [vmem:[%s3 + $0x4] sm:$0xf]
      %v527 = vld [vmem:[#allocation2 + $0x6] sm:$0xff]
      %v528 = vld [vmem:[#allocation2 + $0xe] sm:$0xff]
      %v529 = vld [vmem:[#allocation2 + $0x16] sm:$0xff]
      %v530 = vld [vmem:[#allocation2 + $0x1e] sm:$0xff]
      %v531 = vld [vmem:[#allocation2 + $0x26] sm:$0xff]
      %v532 = vld [vmem:[#allocation2 + $0x2e] sm:$0xff]
      %v533 = vld [vmem:[#allocation2 + $0x36] sm:$0xff]
      %v534 = vld [vmem:[#allocation2 + $0x3e] sm:$0xff]
      %v535 = vld [vmem:[#allocation2 + $0x46] sm:$0xff]
      %v536 = vld [vmem:[#allocation2 + $0x4e] sm:$0x3f]
      %v537 = vpack.c.bf16 %v528, %v527
      %v538 = vpack.c.bf16 %v530, %v529
      %v539 = vpack.c.bf16 %v532, %v531
      %v540 = vpack.c.bf16 %v534, %v533
      %v541 = vpack.c.bf16 %v536, %v535
      %s542 = scalar_lea.vmem %s3, 8
      %v543 = vld [vmem:[%s542] sm:$0xf]
      %v544 = vld [vmem:[%s542 + $0x4] sm:$0xf]
      %v547 = vunpack.c.l.b16 %v543
      %v548 = vunpack.c.l.b16 %v544
      %v549 = vpack.c.b16 %v548, %v547
      %v552 = vsel %vm492, %v537, 0
      %v555 = vsel %vm492, %v538, 0
      %v558 = vsel %vm492, %v539, 0
      %v561 = vsel %vm492, %v540, 0
      %v564 = vsel %vm492, %v541, 0
      %566 = vmatpush.bf16.msra.mxu0 0
      %567 = vmatpush.bf16.msra.mxu0 0
      %568 = vmatpush.bf16.msra.mxu0 0
      %569 = vmatpush.bf16.msra.mxu0 0
      %570 = vmatpush.bf16.msra.mxu0 0
      %571 = vmatpush.bf16.msra.mxu0 0
      %572 = vmatpush.bf16.msra.mxu0 0
      %573 = vmatpush.bf16.msra.mxu0 %v549
      %574 = vmatmul.bf16.gmra.mxu0 %v552
      %v575 = vpop.f32.mrf.mxu0
      %v576 = vadd.f32 0.0, %v575
      %v577 = vpop.f32.mrf.mxu0
      %v578 = vadd.f32 0.0, %v577
      %579 = vmatmul.bf16.gmra.mxu0 %v555
      %v580 = vpop.f32.mrf.mxu0
      %v581 = vadd.f32 0.0, %v580
      %v582 = vpop.f32.mrf.mxu0
      %v583 = vadd.f32 0.0, %v582
      %584 = vmatmul.bf16.gmra.mxu0 %v558
      %v585 = vpop.f32.mrf.mxu0
      %v586 = vadd.f32 0.0, %v585
      %v587 = vpop.f32.mrf.mxu0
      %v588 = vadd.f32 0.0, %v587
      %589 = vmatmul.bf16.gmra.mxu0 %v561
      %v590 = vpop.f32.mrf.mxu0
      %v591 = vadd.f32 0.0, %v590
      %v592 = vpop.f32.mrf.mxu0
      %v593 = vadd.f32 0.0, %v592
      %594 = vmatmul.bf16.gmra.mxu0 %v564
      %v595 = vpop.f32.mrf.mxu0
      %v596 = vadd.f32 0.0, %v595
      %v597 = vpop.f32.mrf.mxu0
      %v598 = vadd.f32 0.0, %v597
      %599 = vdwg.mxu0
      %v602 = vunpack.c.l.b16 %v525
      %v603 = vunpack.c.l.b16 %v526
      %v604 = vpack.c.b16 %v603, %v602
      %v607 = vsel %vm492, %v520, 0
      %v610 = vsel %vm492, %v521, 0
      %v613 = vsel %vm492, %v522, 0
      %v616 = vsel %vm492, %v523, 0
      %v619 = vsel %vm492, %v524, 0
      %621 = vmatpush.bf16.msra.mxu0 0
      %622 = vmatpush.bf16.msra.mxu0 0
      %623 = vmatpush.bf16.msra.mxu0 0
      %624 = vmatpush.bf16.msra.mxu0 0
      %625 = vmatpush.bf16.msra.mxu0 0
      %626 = vmatpush.bf16.msra.mxu0 0
      %627 = vmatpush.bf16.msra.mxu0 0
      %628 = vmatpush.bf16.msra.mxu0 %v604
      %629 = vmatmul.bf16.gmra.mxu0 %v607
      %v630 = vpop.f32.mrf.mxu0
      %v631 = vadd.f32 %v576, %v630
      %v632 = vpop.f32.mrf.mxu0
      %v633 = vadd.f32 %v578, %v632
      %634 = vmatmul.bf16.gmra.mxu0 %v610
      %v635 = vpop.f32.mrf.mxu0
      %v636 = vadd.f32 %v581, %v635
      %v637 = vpop.f32.mrf.mxu0
      %v638 = vadd.f32 %v583, %v637
      %639 = vmatmul.bf16.gmra.mxu0 %v613
      %v640 = vpop.f32.mrf.mxu0
      %v641 = vadd.f32 %v586, %v640
      %v642 = vpop.f32.mrf.mxu0
      %v643 = vadd.f32 %v588, %v642
      %644 = vmatmul.bf16.gmra.mxu0 %v616
      %v645 = vpop.f32.mrf.mxu0
      %v646 = vadd.f32 %v591, %v645
      %v647 = vpop.f32.mrf.mxu0
      %v648 = vadd.f32 %v593, %v647
      %649 = vmatmul.bf16.gmra.mxu0 %v619
      %v650 = vpop.f32.mrf.mxu0
      %v651 = vadd.f32 %v596, %v650
      %v652 = vpop.f32.mrf.mxu0
      %v653 = vadd.f32 %v598, %v652
      %654 = vdwg.mxu0
      %v655 = vld [vmem:[#allocation2 + $0x7] sm:$0xff]
      %v656 = vld [vmem:[#allocation2 + $0xf] sm:$0xff]
      %v657 = vld [vmem:[#allocation2 + $0x17] sm:$0xff]
      %v658 = vld [vmem:[#allocation2 + $0x1f] sm:$0xff]
      %v659 = vld [vmem:[#allocation2 + $0x27] sm:$0xff]
      %v660 = vld [vmem:[#allocation2 + $0x2f] sm:$0xff]
      %v661 = vld [vmem:[#allocation2 + $0x37] sm:$0xff]
      %v662 = vld [vmem:[#allocation2 + $0x3f] sm:$0xff]
      %v663 = vld [vmem:[#allocation2 + $0x47] sm:$0xff]
      %v664 = vld [vmem:[#allocation2 + $0x4f] sm:$0x3f]
      %v665 = vpack.c.bf16 %v656, %v655
      %v666 = vpack.c.bf16 %v658, %v657
      %v667 = vpack.c.bf16 %v660, %v659
      %v668 = vpack.c.bf16 %v662, %v661
      %v669 = vpack.c.bf16 %v664, %v663
      %s670 = scalar_lea.vmem %s3, 16
      %v671 = vld [vmem:[%s670] sm:$0xf]
      %v672 = vld [vmem:[%s670 + $0x4] sm:$0xf]
      %v675 = vunpack.c.l.b16 %v671
      %v676 = vunpack.c.l.b16 %v672
      %v677 = vpack.c.b16 %v676, %v675
      %v680 = vsel %vm492, %v665, 0
      %v683 = vsel %vm492, %v666, 0
      %v686 = vsel %vm492, %v667, 0
      %v689 = vsel %vm492, %v668, 0
      %v692 = vsel %vm492, %v669, 0
      %694 = vmatpush.bf16.msra.mxu0 0
      %695 = vmatpush.bf16.msra.mxu0 0
      %696 = vmatpush.bf16.msra.mxu0 0
      %697 = vmatpush.bf16.msra.mxu0 0
      %698 = vmatpush.bf16.msra.mxu0 0
      %699 = vmatpush.bf16.msra.mxu0 0
      %700 = vmatpush.bf16.msra.mxu0 0
      %701 = vmatpush.bf16.msra.mxu0 %v677
      %702 = vmatmul.bf16.gmra.mxu0 %v680
      %v703 = vpop.f32.mrf.mxu0
      %v704 = vadd.f32 0.0, %v703
      %v705 = vpop.f32.mrf.mxu0
      %v706 = vadd.f32 0.0, %v705
      %707 = vmatmul.bf16.gmra.mxu0 %v683
      %v708 = vpop.f32.mrf.mxu0
      %v709 = vadd.f32 0.0, %v708
      %v710 = vpop.f32.mrf.mxu0
      %v711 = vadd.f32 0.0, %v710
      %712 = vmatmul.bf16.gmra.mxu0 %v686
      %v713 = vpop.f32.mrf.mxu0
      %v714 = vadd.f32 0.0, %v713
      %v715 = vpop.f32.mrf.mxu0
      %v716 = vadd.f32 0.0, %v715
      %717 = vmatmul.bf16.gmra.mxu0 %v689
      %v718 = vpop.f32.mrf.mxu0
      %v719 = vadd.f32 0.0, %v718
      %v720 = vpop.f32.mrf.mxu0
      %v721 = vadd.f32 0.0, %v720
      %722 = vmatmul.bf16.gmra.mxu0 %v692
      %v723 = vpop.f32.mrf.mxu0
      %v724 = vadd.f32 0.0, %v723
      %v725 = vpop.f32.mrf.mxu0
      %v726 = vadd.f32 0.0, %v725
      %727 = vdwg.mxu0
      %v728 = vadd.f32 %v631, %v704
      %v729 = vadd.f32 %v633, %v706
      %v730 = vadd.f32 %v636, %v709
      %v731 = vadd.f32 %v638, %v711
      %v732 = vadd.f32 %v641, %v714
      %v733 = vadd.f32 %v643, %v716
      %v734 = vadd.f32 %v646, %v719
      %v735 = vadd.f32 %v648, %v721
      %v736 = vadd.f32 %v651, %v724
      %v737 = vadd.f32 %v653, %v726
      %v738 = vld [vmem:[#allocation2 + $0xf] sm:$0xff]
      %v739 = vld [vmem:[#allocation2 + $0x17] sm:$0xff]
      %v740 = vld [vmem:[#allocation2 + $0x1f] sm:$0xff]
      %v741 = vld [vmem:[#allocation2 + $0x27] sm:$0xff]
      %v742 = vld [vmem:[#allocation2 + $0x2f] sm:$0xff]
      %v743 = vld [vmem:[#allocation2 + $0x37] sm:$0xff]
      %v744 = vld [vmem:[#allocation2 + $0x3f] sm:$0xff]
      %v745 = vld [vmem:[#allocation2 + $0x47] sm:$0xff]
      %v746 = vld [vmem:[#allocation2 + $0x4f] sm:$0xff]
      %v747 = vld [vmem:[#allocation2 + $0x57] sm:$0x3f]
      %v748 = vpack.c.bf16 %v739, %v738
      %v749 = vpack.c.bf16 %v741, %v740
      %v750 = vpack.c.bf16 %v743, %v742
      %v751 = vpack.c.bf16 %v745, %v744
      %v752 = vpack.c.bf16 %v747, %v746
      %s753 = scalar_lea.vmem %s3, 24
      %v754 = vld [vmem:[%s753] sm:$0xf]
      %v755 = vld [vmem:[%s753 + $0x4] sm:$0xf]
      %v758 = vunpack.c.l.b16 %v754
      %v759 = vunpack.c.l.b16 %v755
      %v760 = vpack.c.b16 %v759, %v758
      %v763 = vsel %vm492, %v748, 0
      %v766 = vsel %vm492, %v749, 0
      %v769 = vsel %vm492, %v750, 0
      %v772 = vsel %vm492, %v751, 0
      %v775 = vsel %vm492, %v752, 0
      %777 = vmatpush.bf16.msra.mxu0 0
      %778 = vmatpush.bf16.msra.mxu0 0
      %779 = vmatpush.bf16.msra.mxu0 0
      %780 = vmatpush.bf16.msra.mxu0 0
      %781 = vmatpush.bf16.msra.mxu0 0
      %782 = vmatpush.bf16.msra.mxu0 0
      %783 = vmatpush.bf16.msra.mxu0 0
      %784 = vmatpush.bf16.msra.mxu0 %v760
      %785 = vmatmul.bf16.gmra.mxu0 %v763
      %v786 = vpop.f32.mrf.mxu0
      %v787 = vadd.f32 0.0, %v786
      %v788 = vpop.f32.mrf.mxu0
      %v789 = vadd.f32 0.0, %v788
      %790 = vmatmul.bf16.gmra.mxu0 %v766
      %v791 = vpop.f32.mrf.mxu0
      %v792 = vadd.f32 0.0, %v791
      %v793 = vpop.f32.mrf.mxu0
      %v794 = vadd.f32 0.0, %v793
      %795 = vmatmul.bf16.gmra.mxu0 %v769
      %v796 = vpop.f32.mrf.mxu0
      %v797 = vadd.f32 0.0, %v796
      %v798 = vpop.f32.mrf.mxu0
      %v799 = vadd.f32 0.0, %v798
      %800 = vmatmul.bf16.gmra.mxu0 %v772
      %v801 = vpop.f32.mrf.mxu0
      %v802 = vadd.f32 0.0, %v801
      %v803 = vpop.f32.mrf.mxu0
      %v804 = vadd.f32 0.0, %v803
      %805 = vmatmul.bf16.gmra.mxu0 %v775
      %v806 = vpop.f32.mrf.mxu0
      %v807 = vadd.f32 0.0, %v806
      %v808 = vpop.f32.mrf.mxu0
      %v809 = vadd.f32 0.0, %v808
      %810 = vdwg.mxu0
      %v811 = vadd.f32 %v728, %v787
      %v812 = vadd.f32 %v729, %v789
      %v813 = vadd.f32 %v730, %v792
      %v814 = vadd.f32 %v731, %v794
      %v815 = vadd.f32 %v732, %v797
      %v816 = vadd.f32 %v733, %v799
      %v817 = vadd.f32 %v734, %v802
      %v818 = vadd.f32 %v735, %v804
      %v819 = vadd.f32 %v736, %v807
      %v820 = vadd.f32 %v737, %v809
      %v821 = vld [vmem:[#allocation2 + $0x10] sm:$0xff]
      %v822 = vld [vmem:[#allocation2 + $0x18] sm:$0xff]
      %v823 = vld [vmem:[#allocation2 + $0x20] sm:$0xff]
      %v824 = vld [vmem:[#allocation2 + $0x28] sm:$0xff]
      %v825 = vld [vmem:[#allocation2 + $0x30] sm:$0xff]
      %v826 = vld [vmem:[#allocation2 + $0x38] sm:$0xff]
      %v827 = vld [vmem:[#allocation2 + $0x40] sm:$0xff]
      %v828 = vld [vmem:[#allocation2 + $0x48] sm:$0xff]
      %v829 = vld [vmem:[#allocation2 + $0x50] sm:$0xff]
      %v830 = vld [vmem:[#allocation2 + $0x58] sm:$0x3f]
      %v831 = vpack.c.bf16 %v822, %v821
      %v832 = vpack.c.bf16 %v824, %v823
      %v833 = vpack.c.bf16 %v826, %v825
      %v834 = vpack.c.bf16 %v828, %v827
      %v835 = vpack.c.bf16 %v830, %v829
      %s836 = scalar_lea.vmem %s3, 32
      %v837 = vld [vmem:[%s836] sm:$0xf]
      %v838 = vld [vmem:[%s836 + $0x4] sm:$0xf]
      %v841 = vunpack.c.l.b16 %v837
      %v842 = vunpack.c.l.b16 %v838
      %v843 = vpack.c.b16 %v842, %v841
      %v846 = vsel %vm492, %v831, 0
      %v849 = vsel %vm492, %v832, 0
      %v852 = vsel %vm492, %v833, 0
      %v855 = vsel %vm492, %v834, 0
      %v858 = vsel %vm492, %v835, 0
      %860 = vmatpush.bf16.msra.mxu0 0
      %861 = vmatpush.bf16.msra.mxu0 0
      %862 = vmatpush.bf16.msra.mxu0 0
      %863 = vmatpush.bf16.msra.mxu0 0
      %864 = vmatpush.bf16.msra.mxu0 0
      %865 = vmatpush.bf16.msra.mxu0 0
      %866 = vmatpush.bf16.msra.mxu0 0
      %867 = vmatpush.bf16.msra.mxu0 %v843
      %868 = vmatmul.bf16.gmra.mxu0 %v846
      %v869 = vpop.f32.mrf.mxu0
      %v870 = vadd.f32 0.0, %v869
      %v871 = vpop.f32.mrf.mxu0
      %v872 = vadd.f32 0.0, %v871
      %873 = vmatmul.bf16.gmra.mxu0 %v849
      %v874 = vpop.f32.mrf.mxu0
      %v875 = vadd.f32 0.0, %v874
      %v876 = vpop.f32.mrf.mxu0
      %v877 = vadd.f32 0.0, %v876
      %878 = vmatmul.bf16.gmra.mxu0 %v852
      %v879 = vpop.f32.mrf.mxu0
      %v880 = vadd.f32 0.0, %v879
      %v881 = vpop.f32.mrf.mxu0
      %v882 = vadd.f32 0.0, %v881
      %883 = vmatmul.bf16.gmra.mxu0 %v855
      %v884 = vpop.f32.mrf.mxu0
      %v885 = vadd.f32 0.0, %v884
      %v886 = vpop.f32.mrf.mxu0
      %v887 = vadd.f32 0.0, %v886
      %888 = vmatmul.bf16.gmra.mxu0 %v858
      %v889 = vpop.f32.mrf.mxu0
      %v890 = vadd.f32 0.0, %v889
      %v891 = vpop.f32.mrf.mxu0
      %v892 = vadd.f32 0.0, %v891
      %893 = vdwg.mxu0
      %v894 = vadd.f32 %v811, %v870
      %v895 = vadd.f32 %v812, %v872
      %v896 = vadd.f32 %v813, %v875
      %v897 = vadd.f32 %v814, %v877
      %v898 = vadd.f32 %v815, %v880
      %v899 = vadd.f32 %v816, %v882
      %v900 = vadd.f32 %v817, %v885
      %v901 = vadd.f32 %v818, %v887
      %v902 = vadd.f32 %v819, %v890
      %v903 = vadd.f32 %v820, %v892
      %v904 = vld [vmem:[#allocation2 + $0x11] sm:$0xff]
      %v905 = vld [vmem:[#allocation2 + $0x19] sm:$0xff]
      %v906 = vld [vmem:[#allocation2 + $0x21] sm:$0xff]
      %v907 = vld [vmem:[#allocation2 + $0x29] sm:$0xff]
      %v908 = vld [vmem:[#allocation2 + $0x31] sm:$0xff]
      %v909 = vld [vmem:[#allocation2 + $0x39] sm:$0xff]
      %v910 = vld [vmem:[#allocation2 + $0x41] sm:$0xff]
      %v911 = vld [vmem:[#allocation2 + $0x49] sm:$0xff]
      %v912 = vld [vmem:[#allocation2 + $0x51] sm:$0xff]
      %v913 = vld [vmem:[#allocation2 + $0x59] sm:$0x3f]
      %v914 = vpack.c.bf16 %v905, %v904
      %v915 = vpack.c.bf16 %v907, %v906
      %v916 = vpack.c.bf16 %v909, %v908
      %v917 = vpack.c.bf16 %v911, %v910
      %v918 = vpack.c.bf16 %v913, %v912
      %s919 = scalar_lea.vmem %s3, 40
      %v920 = vld [vmem:[%s919] sm:$0xf]
      %v921 = vld [vmem:[%s919 + $0x4] sm:$0xf]
      %v924 = vunpack.c.l.b16 %v920
      %v925 = vunpack.c.l.b16 %v921
      %v926 = vpack.c.b16 %v925, %v924
      %v929 = vsel %vm492, %v914, 0
      %v932 = vsel %vm492, %v915, 0
      %v935 = vsel %vm492, %v916, 0
      %v938 = vsel %vm492, %v917, 0
      %v941 = vsel %vm492, %v918, 0
      %943 = vmatpush.bf16.msra.mxu0 0
      %944 = vmatpush.bf16.msra.mxu0 0
      %945 = vmatpush.bf16.msra.mxu0 0
      %946 = vmatpush.bf16.msra.mxu0 0
      %947 = vmatpush.bf16.msra.mxu0 0
      %948 = vmatpush.bf16.msra.mxu0 0
      %949 = vmatpush.bf16.msra.mxu0 0
      %950 = vmatpush.bf16.msra.mxu0 %v926
      %951 = vmatmul.bf16.gmra.mxu0 %v929
      %v952 = vpop.f32.mrf.mxu0
      %v953 = vadd.f32 0.0, %v952
      %v954 = vpop.f32.mrf.mxu0
      %v955 = vadd.f32 0.0, %v954
      %956 = vmatmul.bf16.gmra.mxu0 %v932
      %v957 = vpop.f32.mrf.mxu0
      %v958 = vadd.f32 0.0, %v957
      %v959 = vpop.f32.mrf.mxu0
      %v960 = vadd.f32 0.0, %v959
      %961 = vmatmul.bf16.gmra.mxu0 %v935
      %v962 = vpop.f32.mrf.mxu0
      %v963 = vadd.f32 0.0, %v962
      %v964 = vpop.f32.mrf.mxu0
      %v965 = vadd.f32 0.0, %v964
      %966 = vmatmul.bf16.gmra.mxu0 %v938
      %v967 = vpop.f32.mrf.mxu0
      %v968 = vadd.f32 0.0, %v967
      %v969 = vpop.f32.mrf.mxu0
      %v970 = vadd.f32 0.0, %v969
      %971 = vmatmul.bf16.gmra.mxu0 %v941
      %v972 = vpop.f32.mrf.mxu0
      %v973 = vadd.f32 0.0, %v972
      %v974 = vpop.f32.mrf.mxu0
      %v975 = vadd.f32 0.0, %v974
      %976 = vdwg.mxu0
      %v977 = vadd.f32 %v894, %v953
      %v978 = vadd.f32 %v895, %v955
      %v979 = vadd.f32 %v896, %v958
      %v980 = vadd.f32 %v897, %v960
      %v981 = vadd.f32 %v898, %v963
      %v982 = vadd.f32 %v899, %v965
      %v983 = vadd.f32 %v900, %v968
      %v984 = vadd.f32 %v901, %v970
      %v985 = vadd.f32 %v902, %v973
      %v986 = vadd.f32 %v903, %v975
      %v987 = vld [vmem:[#allocation2 + $0x19] sm:$0xff]
      %v988 = vld [vmem:[#allocation2 + $0x21] sm:$0xff]
      %v989 = vld [vmem:[#allocation2 + $0x29] sm:$0xff]
      %v990 = vld [vmem:[#allocation2 + $0x31] sm:$0xff]
      %v991 = vld [vmem:[#allocation2 + $0x39] sm:$0xff]
      %v992 = vld [vmem:[#allocation2 + $0x41] sm:$0xff]
      %v993 = vld [vmem:[#allocation2 + $0x49] sm:$0xff]
      %v994 = vld [vmem:[#allocation2 + $0x51] sm:$0xff]
      %v995 = vld [vmem:[#allocation2 + $0x59] sm:$0xff]
      %v996 = vld [vmem:[#allocation2 + $0x61] sm:$0x3f]
      %v997 = vpack.c.bf16 %v988, %v987
      %v998 = vpack.c.bf16 %v990, %v989
      %v999 = vpack.c.bf16 %v992, %v991
      %v1000 = vpack.c.bf16 %v994, %v993
      %v1001 = vpack.c.bf16 %v996, %v995
      %s1002 = scalar_lea.vmem %s3, 48
      %v1003 = vld [vmem:[%s1002] sm:$0xf]
      %v1004 = vld [vmem:[%s1002 + $0x4] sm:$0xf]
      %v1007 = vunpack.c.l.b16 %v1003
      %v1008 = vunpack.c.l.b16 %v1004
      %v1009 = vpack.c.b16 %v1008, %v1007
      %v1012 = vsel %vm492, %v997, 0
      %v1015 = vsel %vm492, %v998, 0
      %v1018 = vsel %vm492, %v999, 0
      %v1021 = vsel %vm492, %v1000, 0
      %v1024 = vsel %vm492, %v1001, 0
      %1026 = vmatpush.bf16.msra.mxu0 0
      %1027 = vmatpush.bf16.msra.mxu0 0
      %1028 = vmatpush.bf16.msra.mxu0 0
      %1029 = vmatpush.bf16.msra.mxu0 0
      %1030 = vmatpush.bf16.msra.mxu0 0
      %1031 = vmatpush.bf16.msra.mxu0 0
      %1032 = vmatpush.bf16.msra.mxu0 0
      %1033 = vmatpush.bf16.msra.mxu0 %v1009
      %1034 = vmatmul.bf16.gmra.mxu0 %v1012
      %v1035 = vpop.f32.mrf.mxu0
      %v1036 = vadd.f32 0.0, %v1035
      %v1037 = vpop.f32.mrf.mxu0
      %v1038 = vadd.f32 0.0, %v1037
      %1039 = vmatmul.bf16.gmra.mxu0 %v1015
      %v1040 = vpop.f32.mrf.mxu0
      %v1041 = vadd.f32 0.0, %v1040
      %v1042 = vpop.f32.mrf.mxu0
      %v1043 = vadd.f32 0.0, %v1042
      %1044 = vmatmul.bf16.gmra.mxu0 %v1018
      %v1045 = vpop.f32.mrf.mxu0
      %v1046 = vadd.f32 0.0, %v1045
      %v1047 = vpop.f32.mrf.mxu0
      %v1048 = vadd.f32 0.0, %v1047
      %1049 = vmatmul.bf16.gmra.mxu0 %v1021
      %v1050 = vpop.f32.mrf.mxu0
      %v1051 = vadd.f32 0.0, %v1050
      %v1052 = vpop.f32.mrf.mxu0
      %v1053 = vadd.f32 0.0, %v1052
      %1054 = vmatmul.bf16.gmra.mxu0 %v1024
      %v1055 = vpop.f32.mrf.mxu0
      %v1056 = vadd.f32 0.0, %v1055
      %v1057 = vpop.f32.mrf.mxu0
      %v1058 = vadd.f32 0.0, %v1057
      %1059 = vdwg.mxu0
      %v1060 = vadd.f32 %v977, %v1036
      %v1061 = vadd.f32 %v978, %v1038
      %v1062 = vadd.f32 %v979, %v1041
      %v1063 = vadd.f32 %v980, %v1043
      %v1064 = vadd.f32 %v981, %v1046
      %v1065 = vadd.f32 %v982, %v1048
      %v1066 = vadd.f32 %v983, %v1051
      %v1067 = vadd.f32 %v984, %v1053
      %v1068 = vadd.f32 %v985, %v1056
      %v1069 = vadd.f32 %v986, %v1058
      %v1070 = vld [vmem:[#allocation2 + $0x1a] sm:$0xff]
      %v1071 = vld [vmem:[#allocation2 + $0x22] sm:$0xff]
      %v1072 = vld [vmem:[#allocation2 + $0x2a] sm:$0xff]
      %v1073 = vld [vmem:[#allocation2 + $0x32] sm:$0xff]
      %v1074 = vld [vmem:[#allocation2 + $0x3a] sm:$0xff]
      %v1075 = vld [vmem:[#allocation2 + $0x42] sm:$0xff]
      %v1076 = vld [vmem:[#allocation2 + $0x4a] sm:$0xff]
      %v1077 = vld [vmem:[#allocation2 + $0x52] sm:$0xff]
      %v1078 = vld [vmem:[#allocation2 + $0x5a] sm:$0xff]
      %v1079 = vld [vmem:[#allocation2 + $0x62] sm:$0x3f]
      %v1080 = vpack.c.bf16 %v1071, %v1070
      %v1081 = vpack.c.bf16 %v1073, %v1072
      %v1082 = vpack.c.bf16 %v1075, %v1074
      %v1083 = vpack.c.bf16 %v1077, %v1076
      %v1084 = vpack.c.bf16 %v1079, %v1078
      %s1085 = scalar_lea.vmem %s3, 56
      %v1086 = vld [vmem:[%s1085] sm:$0xf]
      %v1087 = vld [vmem:[%s1085 + $0x4] sm:$0xf]
      %v1090 = vunpack.c.l.b16 %v1086
      %v1091 = vunpack.c.l.b16 %v1087
      %v1092 = vpack.c.b16 %v1091, %v1090
      %v1095 = vsel %vm492, %v1080, 0
      %v1098 = vsel %vm492, %v1081, 0
      %v1101 = vsel %vm492, %v1082, 0
      %v1104 = vsel %vm492, %v1083, 0
      %v1107 = vsel %vm492, %v1084, 0
      %1109 = vmatpush.bf16.msra.mxu0 0
      %1110 = vmatpush.bf16.msra.mxu0 0
      %1111 = vmatpush.bf16.msra.mxu0 0
      %1112 = vmatpush.bf16.msra.mxu0 0
      %1113 = vmatpush.bf16.msra.mxu0 0
      %1114 = vmatpush.bf16.msra.mxu0 0
      %1115 = vmatpush.bf16.msra.mxu0 0
      %1116 = vmatpush.bf16.msra.mxu0 %v1092
      %1117 = vmatmul.bf16.gmra.mxu0 %v1095
      %v1118 = vpop.f32.mrf.mxu0
      %v1119 = vadd.f32 0.0, %v1118
      %v1120 = vpop.f32.mrf.mxu0
      %v1121 = vadd.f32 0.0, %v1120
      %1122 = vmatmul.bf16.gmra.mxu0 %v1098
      %v1123 = vpop.f32.mrf.mxu0
      %v1124 = vadd.f32 0.0, %v1123
      %v1125 = vpop.f32.mrf.mxu0
      %v1126 = vadd.f32 0.0, %v1125
      %1127 = vmatmul.bf16.gmra.mxu0 %v1101
      %v1128 = vpop.f32.mrf.mxu0
      %v1129 = vadd.f32 0.0, %v1128
      %v1130 = vpop.f32.mrf.mxu0
      %v1131 = vadd.f32 0.0, %v1130
      %1132 = vmatmul.bf16.gmra.mxu0 %v1104
      %v1133 = vpop.f32.mrf.mxu0
      %v1134 = vadd.f32 0.0, %v1133
      %v1135 = vpop.f32.mrf.mxu0
      %v1136 = vadd.f32 0.0, %v1135
      %1137 = vmatmul.bf16.gmra.mxu0 %v1107
      %v1138 = vpop.f32.mrf.mxu0
      %v1139 = vadd.f32 0.0, %v1138
      %v1140 = vpop.f32.mrf.mxu0
      %v1141 = vadd.f32 0.0, %v1140
      %1142 = vdwg.mxu0
      %v1143 = vadd.f32 %v1060, %v1119
      %v1144 = vadd.f32 %v1061, %v1121
      %v1145 = vadd.f32 %v1062, %v1124
      %v1146 = vadd.f32 %v1063, %v1126
      %v1147 = vadd.f32 %v1064, %v1129
      %v1148 = vadd.f32 %v1065, %v1131
      %v1149 = vadd.f32 %v1066, %v1134
      %v1150 = vadd.f32 %v1067, %v1136
      %v1151 = vadd.f32 %v1068, %v1139
      %v1152 = vadd.f32 %v1069, %v1141
      %v1153 = vld [vmem:[#allocation2 + $0x1b] sm:$0xff]
      %v1154 = vld [vmem:[#allocation2 + $0x23] sm:$0xff]
      %v1155 = vld [vmem:[#allocation2 + $0x2b] sm:$0xff]
      %v1156 = vld [vmem:[#allocation2 + $0x33] sm:$0xff]
      %v1157 = vld [vmem:[#allocation2 + $0x3b] sm:$0xff]
      %v1158 = vld [vmem:[#allocation2 + $0x43] sm:$0xff]
      %v1159 = vld [vmem:[#allocation2 + $0x4b] sm:$0xff]
      %v1160 = vld [vmem:[#allocation2 + $0x53] sm:$0xff]
      %v1161 = vld [vmem:[#allocation2 + $0x5b] sm:$0xff]
      %v1162 = vld [vmem:[#allocation2 + $0x63] sm:$0x3f]
      %v1163 = vpack.c.bf16 %v1154, %v1153
      %v1164 = vpack.c.bf16 %v1156, %v1155
      %v1165 = vpack.c.bf16 %v1158, %v1157
      %v1166 = vpack.c.bf16 %v1160, %v1159
      %v1167 = vpack.c.bf16 %v1162, %v1161
      %s1168 = scalar_lea.vmem %s3, 64
      %v1169 = vld [vmem:[%s1168] sm:$0xf]
      %v1170 = vld [vmem:[%s1168 + $0x4] sm:$0xf]
      %v1173 = vunpack.c.l.b16 %v1169
      %v1174 = vunpack.c.l.b16 %v1170
      %v1175 = vpack.c.b16 %v1174, %v1173
      %v1178 = vsel %vm492, %v1163, 0
      %v1181 = vsel %vm492, %v1164, 0
      %v1184 = vsel %vm492, %v1165, 0
      %v1187 = vsel %vm492, %v1166, 0
      %v1190 = vsel %vm492, %v1167, 0
      %1192 = vmatpush.bf16.msra.mxu0 0
      %1193 = vmatpush.bf16.msra.mxu0 0
      %1194 = vmatpush.bf16.msra.mxu0 0
      %1195 = vmatpush.bf16.msra.mxu0 0
      %1196 = vmatpush.bf16.msra.mxu0 0
      %1197 = vmatpush.bf16.msra.mxu0 0
      %1198 = vmatpush.bf16.msra.mxu0 0
      %1199 = vmatpush.bf16.msra.mxu0 %v1175
      %1200 = vmatmul.bf16.gmra.mxu0 %v1178
      %v1201 = vpop.f32.mrf.mxu0
      %v1202 = vadd.f32 0.0, %v1201
      %v1203 = vpop.f32.mrf.mxu0
      %v1204 = vadd.f32 0.0, %v1203
      %1205 = vmatmul.bf16.gmra.mxu0 %v1181
      %v1206 = vpop.f32.mrf.mxu0
      %v1207 = vadd.f32 0.0, %v1206
      %v1208 = vpop.f32.mrf.mxu0
      %v1209 = vadd.f32 0.0, %v1208
      %1210 = vmatmul.bf16.gmra.mxu0 %v1184
      %v1211 = vpop.f32.mrf.mxu0
      %v1212 = vadd.f32 0.0, %v1211
      %v1213 = vpop.f32.mrf.mxu0
      %v1214 = vadd.f32 0.0, %v1213
      %1215 = vmatmul.bf16.gmra.mxu0 %v1187
      %v1216 = vpop.f32.mrf.mxu0
      %v1217 = vadd.f32 0.0, %v1216
      %v1218 = vpop.f32.mrf.mxu0
      %v1219 = vadd.f32 0.0, %v1218
      %1220 = vmatmul.bf16.gmra.mxu0 %v1190
      %v1221 = vpop.f32.mrf.mxu0
      %v1222 = vadd.f32 0.0, %v1221
      %v1223 = vpop.f32.mrf.mxu0
      %v1224 = vadd.f32 0.0, %v1223
      %1225 = vdwg.mxu0
      %v1226 = vadd.f32 %v1143, %v1202
      %v1227 = vadd.f32 %v1144, %v1204
      %v1228 = vadd.f32 %v1145, %v1207
      %v1229 = vadd.f32 %v1146, %v1209
      %v1230 = vadd.f32 %v1147, %v1212
      %v1231 = vadd.f32 %v1148, %v1214
      %v1232 = vadd.f32 %v1149, %v1217
      %v1233 = vadd.f32 %v1150, %v1219
      %v1234 = vadd.f32 %v1151, %v1222
      %v1235 = vadd.f32 %v1152, %v1224
      %v1236 = vld [vmem:[%s4] sm:$0x1]
      %v1238 = vperm.slane %v1236, 0
      %v1240 = vadd.f32 %v1226, %v1238
      %v1241 = vadd.f32 %v1227, %v1238
      %v1242 = vadd.f32 %v1228, %v1238
      %v1243 = vadd.f32 %v1229, %v1238
      %v1244 = vadd.f32 %v1230, %v1238
      %v1245 = vadd.f32 %v1231, %v1238
      %v1246 = vadd.f32 %v1232, %v1238
      %v1247 = vadd.f32 %v1233, %v1238
      %v1248 = vadd.f32 %v1234, %v1238
      %v1249 = vadd.f32 %v1235, %v1238
      %v1250 = vmax.f32 %v1240, 0.0
      %v1251 = vmax.f32 %v1241, 0.0
      %v1252 = vmax.f32 %v1242, 0.0
      %v1253 = vmax.f32 %v1243, 0.0
      %v1254 = vmax.f32 %v1244, 0.0
      %v1255 = vmax.f32 %v1245, 0.0
      %v1256 = vmax.f32 %v1246, 0.0
      %v1257 = vmax.f32 %v1247, 0.0
      %v1258 = vmax.f32 %v1248, 0.0
      %v1259 = vmax.f32 %v1249, 0.0
      %v1260 = vpack.c.bf16 %v1251, %v1250
      %v1261 = vpack.c.bf16 %v1253, %v1252
      %v1262 = vpack.c.bf16 %v1255, %v1254
      %v1263 = vpack.c.bf16 %v1257, %v1256
      %v1264 = vpack.c.bf16 %v1259, %v1258
      %v1265 = vld [vmem:[%s5] sm:$0xf]
      %v1266 = vld [vmem:[%s5 + $0x4] sm:$0xf]
      %v1267 = vld [vmem:[%s6] sm:$0x1]
      %v1269 = vperm.slane %v1267, 0
      %v1273 = vunpack.c.l.b16 %v1265
      %v1274 = vunpack.c.l.b16 %v1266
      %v1275 = vpack.c.b16 %v1274, %v1273
      %v1278 = vsel %vm492, %v1260, 0
      %v1281 = vsel %vm492, %v1261, 0
      %v1284 = vsel %vm492, %v1262, 0
      %v1287 = vsel %vm492, %v1263, 0
      %v1290 = vsel %vm492, %v1264, 0
      %1292 = vmatpush.bf16.msra.mxu0 0
      %1293 = vmatpush.bf16.msra.mxu0 0
      %1294 = vmatpush.bf16.msra.mxu0 0
      %1295 = vmatpush.bf16.msra.mxu0 0
      %1296 = vmatpush.bf16.msra.mxu0 0
      %1297 = vmatpush.bf16.msra.mxu0 0
      %1298 = vmatpush.bf16.msra.mxu0 0
      %1299 = vmatpush.bf16.msra.mxu0 %v1275
      %1300 = vmatmul.bf16.gmra.mxu0 %v1278
      %v1301 = vpop.f32.mrf.mxu0
      %v1302 = vadd.f32 %v1269, %v1301
      %v1303 = vpop.f32.mrf.mxu0
      %v1304 = vadd.f32 %v1269, %v1303
      %1305 = vmatmul.bf16.gmra.mxu0 %v1281
      %v1306 = vpop.f32.mrf.mxu0
      %v1307 = vadd.f32 %v1269, %v1306
      %v1308 = vpop.f32.mrf.mxu0
      %v1309 = vadd.f32 %v1269, %v1308
      %1310 = vmatmul.bf16.gmra.mxu0 %v1284
      %v1311 = vpop.f32.mrf.mxu0
      %v1312 = vadd.f32 %v1269, %v1311
      %v1313 = vpop.f32.mrf.mxu0
      %v1314 = vadd.f32 %v1269, %v1313
      %1315 = vmatmul.bf16.gmra.mxu0 %v1287
      %v1316 = vpop.f32.mrf.mxu0
      %v1317 = vadd.f32 %v1269, %v1316
      %v1318 = vpop.f32.mrf.mxu0
      %v1319 = vadd.f32 %v1269, %v1318
      %1320 = vmatmul.bf16.gmra.mxu0 %v1290
      %v1321 = vpop.f32.mrf.mxu0
      %v1322 = vadd.f32 %v1269, %v1321
      %v1323 = vpop.f32.mrf.mxu0
      %v1324 = vadd.f32 %v1269, %v1323
      %1325 = vdwg.mxu0
      %v1326 = vunpack.c.l.bf16 %v307
      %v1327 = vunpack.c.l.bf16 %v308
      %v1328 = vunpack.c.l.bf16 %v309
      %v1329 = vunpack.c.l.bf16 %v310
      %v1330 = vunpack.c.l.bf16 %v311
      %v1331 = vunpack.c.l.bf16 %v312
      %v1332 = vunpack.c.l.bf16 %v313
      %v1333 = vunpack.c.l.bf16 %v314
      %v1334 = vunpack.c.l.bf16 %v315
      %v1335 = vunpack.c.l.bf16 %v316
      %v1336 = vadd.f32 %v1302, %v1326
      %v1337 = vadd.f32 %v1304, %v1327
      %v1338 = vadd.f32 %v1307, %v1328
      %v1339 = vadd.f32 %v1309, %v1329
      %v1340 = vadd.f32 %v1312, %v1330
      %v1341 = vadd.f32 %v1314, %v1331
      %v1342 = vadd.f32 %v1317, %v1332
      %v1343 = vadd.f32 %v1319, %v1333
      %v1344 = vadd.f32 %v1322, %v1334
      %v1345 = vadd.f32 %v1324, %v1335
      %v1346 = vmax.f32 %v1336, 0.0
      %v1347 = vmax.f32 %v1337, 0.0
      %v1348 = vmax.f32 %v1338, 0.0
      %v1349 = vmax.f32 %v1339, 0.0
      %v1350 = vmax.f32 %v1340, 0.0
      %v1351 = vmax.f32 %v1341, 0.0
      %v1352 = vmax.f32 %v1342, 0.0
      %v1353 = vmax.f32 %v1343, 0.0
      %v1354 = vmax.f32 %v1344, 0.0
      %v1355 = vmax.f32 %v1345, 0.0
      %1356 = vst.msk [vmem:[%s305] sm:$0xff] %vm362, %v1346
      %1357 = vst.msk [vmem:[%s305 + $0x8] sm:$0xff] %vm362, %v1347
      %1358 = vst.msk [vmem:[%s305 + $0x10] sm:$0xff] %vm362, %v1348
      %1359 = vst.msk [vmem:[%s305 + $0x18] sm:$0xff] %vm362, %v1349
      %1360 = vst.msk [vmem:[%s305 + $0x20] sm:$0xff] %vm362, %v1350
      %1361 = vst.msk [vmem:[%s305 + $0x28] sm:$0xff] %vm362, %v1351
      %1362 = vst.msk [vmem:[%s305 + $0x30] sm:$0xff] %vm362, %v1352
      %1363 = vst.msk [vmem:[%s305 + $0x38] sm:$0xff] %vm362, %v1353
      %1364 = vst.msk [vmem:[%s305 + $0x40] sm:$0xff] %vm362, %v1354
      %vm1365 = vcmask 259072
      %1366 = vst.msk [vmem:[%s305 + $0x48] sm:$0x3f] %vm1365, %v1355
      %p1367 = scmp.lt.s32.totalorder %s19, 1
      %s1368 = scalar_select %p1367, %s19, 1
      %s1369 = smul.addr %s1368, 10
      %s1370 = smul.addr %s1369, 8
      %s1371 = scalar_lea.vmem %s8, %s1370
      // Predicated region
      $region53: #{_lambda_.3} parent=51 // pred_check
        %p1372 = pneg %p210
      $region54: #{_lambda_.3} parent=51 // pred_check_branch
        %1374 = sbr.rel (%p1372) target = $region56
      $region55: #{_lambda_.3} parent=51 // pred_region
        _
      $region56: #{_lambda_.3} parent=51 // pred_fallthru
        _
    $region52: #{_lambda_.3} parent=5 // pred_fallthru
      _
    %p1375 = scmp.le.s32.totalorder 2, %s14
    // Predicated region
    $region57: #{_lambda_.3} parent=5 // pred_check
      %p1376 = pneg %p1375
    $region58: #{_lambda_.3} parent=5 // pred_check_branch
      %1378 = sbr.rel (%p1376) target = $region60
    $region59: #{_lambda_.3} parent=5 // pred_region
      %s1379 = ssub.s32 %s14, 2
      // Predicated region
      $region61: #{_lambda_.3} parent=59 // pred_check
        %p1380 = pneg %p216
      $region62: #{_lambda_.3} parent=59 // pred_check_branch
        %1382 = sbr.rel (%p1380) target = $region64
      $region63: #{_lambda_.3} parent=59 // pred_region
        %p1383 = scmp.lt.s32.totalorder %s20, 1
        %s1384 = scalar_select %p1383, %s20, 1
        %s1385 = smul.addr %s1384, 10
        %s1386 = smul.addr %s1385, 8
        %s1387 = scalar_lea.vmem %s8, %s1386
      $region64: #{_lambda_.3} parent=59 // pred_fallthru
        _
    $region60: #{_lambda_.3} parent=5 // pred_fallthru
      _
  $region6: #{_lambda_.3} parent=0 // loop_footer
    %s18 = sadd.s32 1, %s14
  $region7: #{_lambda_.3} parent=0 // loop_footer_branch
    %13 = sbr.rel target = $region3
  $region8: #{_lambda_.3} parent=0 // loop_exit
    _

// kernel: _lambda_.2
$region0: #{_lambda_.2}
  #allocation0 [shape = 'u32[]', space=smem, size = 0x4, offset = 0x4, fixed_abs, tag = 'smem constant byte address 0x4 - core index']
  #allocation1 [shape = 'u32[72,128]{1,0:T(1,128)}', space=vmem, size = 0x9000, scoped, tag = 'internal scratch']
  #allocation2 [shape = 'f32[112,16]{1,0:T(8,128)}', space=vmem, size = 0xe000, scoped, tag = 'scratch operand']
  %s0 = inlined_call_operand.vmem [shape: bf16[2,78,8], index: 0, kind: input, shape index: {}]
  %s1 = inlined_call_operand.vmem [shape: bf16[8,16], index: 1, kind: input, shape index: {}]
  %s2 = inlined_call_operand.vmem [shape: f32[1,16], index: 2, kind: input, shape index: {}]
  %s3 = inlined_call_operand.vmem [shape: bf16[9,16,16], index: 3, kind: input, shape index: {}]
  %s4 = inlined_call_operand.vmem [shape: f32[1,16], index: 4, kind: input, shape index: {}]
  %s5 = inlined_call_operand.vmem [shape: bf16[16,32], index: 5, kind: input, shape index: {}]
  %s6 = inlined_call_operand.vmem [shape: f32[1,32], index: 6, kind: input, shape index: {}]
  %s7 = inlined_call_operand.vmem [shape: bf16[8,32], index: 7, kind: input, shape index: {}]
  %s8 = inlined_call_operand.vmem [shape: f32[1,32], index: 8, kind: input, shape index: {}]
  %s9 = inlined_call_operand.vmem [shape: f32[78,1], index: 9, kind: input, shape index: {}]
  %s10 = inlined_call_operand.vmem [shape: bf16[2,78,32], index: 10, kind: output, shape index: {}]
  %s11 = sld [smem:[#allocation0]]
  $region73: #{_lambda_.2} parent=0
    _
  %s13 = ssub.s32 1, %s11
  %s14 = scalar_select 0, %s13, %s11
  loop: start=0, step=1, limit=4
  $region2: #{_lambda_.2} parent=0 // loop_pre_header
    _
  $region3: #{_lambda_.2} parent=0 // loop_header
    %s16 = sphi 0, %s20
    %p17 = scmp.ge.s32.totalorder %s16, 4
    %s26 = sphi 0, %s28
    %s29 = sphi 0, %s26
    %s30 = sphi 0, %s29
    %s46 = sphi 0, %s30
    %s50 = sphi 0, %s50
    %s52 = sphi 0, %s50
    %s53 = sphi 0, %s52
    %s67 = sphi 0, %s53
    %s71 = sphi 0, %s71
    %s73 = sphi 0, %s71
    %s74 = sphi 0, %s73
    %s88 = sphi 0, %s74
    %s92 = sphi 0, %s92
    %s94 = sphi 0, %s92
    %s95 = sphi 0, %s94
    %s109 = sphi 0, %s95
    %s113 = sphi 0, %s113
    %s115 = sphi 0, %s113
    %s116 = sphi 0, %s115
    %s130 = sphi 0, %s116
    %s134 = sphi 0, %s134
    %s136 = sphi 0, %s134
    %s137 = sphi 0, %s136
    %s151 = sphi 0, %s137
    %s155 = sphi 0, %s155
    %s157 = sphi 0, %s155
    %s158 = sphi 0, %s157
    %s172 = sphi 0, %s158
    %s176 = sphi 0, %s176
    %s178 = sphi 0, %s176
    %s179 = sphi 0, %s178
    %s193 = sphi 0, %s179
    %s197 = sphi 0, %s197
    %s199 = sphi 0, %s197
    %s200 = sphi 0, %s199
    %s214 = sphi 0, %s200
    %s218 = sphi 0, %s218
    %s220 = sphi 0, %s218
    %s221 = sphi 0, %s220
    %s235 = sphi 0, %s221
    %s241 = sphi 0, %s243
    %s244 = sphi 0, %s241
    %s245 = sphi 0, %s244
    %s261 = sphi 0, %s245
  $region4: #{_lambda_.2} parent=0 // loop_header_branch
    %19 = sbr.rel (%p17) target = $region8
  $region5: #{_lambda_.2} parent=0 // loop_body
    %s21 = ssub.s32 %s16, 1
    %s22 = ssub.s32 %s16, 2
    %s23 = sadd.s32 %s16, 1
    %s24 = ssub.s32 %s16, %s23
    %p25 = scmp.eq.s32.totalorder %s24, 0
    %s27 = sadd.s32 %s26, 1
    %s28 = scalar_select %p25, %s26, %s27
    %p31 = pneg %p25
    %p32 = scmp.eq.s32.totalorder %s16, 1
    %p33 = por %p31, %p32
    %p34 = scmp.ne.s32.totalorder %s26, %s29
    %p35 = scmp.eq.s32.totalorder %s16, 0
    %p36 = por %p34, %p35
    %p37 = scmp.ne.s32.totalorder %s26, %s29
    %p38 = scmp.eq.s32.totalorder %s21, 1
    %p39 = por %p37, %p38
    %p40 = scmp.ne.s32.totalorder %s29, %s30
    %p41 = scmp.eq.s32.totalorder %s21, 0
    %p42 = por %p40, %p41
    %p43 = scmp.ne.s32.totalorder %s29, %s30
    %p44 = scmp.eq.s32.totalorder %s22, 1
    %p45 = por %p43, %p44
    %p47 = scmp.ne.s32.totalorder %s30, %s46
    %p48 = scmp.eq.s32.totalorder %s22, 0
    %p49 = por %p47, %p48
    %s51 = sadd.s32 %s50, 1
    %p54 = scmp.eq.s32.totalorder %s16, 1
    %p55 = scmp.ne.s32.totalorder %s50, %s52
    %p56 = scmp.eq.s32.totalorder %s16, 0
    %p57 = por %p55, %p56
    %p58 = scmp.ne.s32.totalorder %s50, %s52
    %p59 = scmp.eq.s32.totalorder %s21, 1
    %p60 = por %p58, %p59
    %p61 = scmp.ne.s32.totalorder %s52, %s53
    %p62 = scmp.eq.s32.totalorder %s21, 0
    %p63 = por %p61, %p62
    %p64 = scmp.ne.s32.totalorder %s52, %s53
    %p65 = scmp.eq.s32.totalorder %s22, 1
    %p66 = por %p64, %p65
    %p68 = scmp.ne.s32.totalorder %s53, %s67
    %p69 = scmp.eq.s32.totalorder %s22, 0
    %p70 = por %p68, %p69
    %s72 = sadd.s32 %s71, 1
    %p75 = scmp.eq.s32.totalorder %s16, 1
    %p76 = scmp.ne.s32.totalorder %s71, %s73
    %p77 = scmp.eq.s32.totalorder %s16, 0
    %p78 = por %p76, %p77
    %p79 = scmp.ne.s32.totalorder %s71, %s73
    %p80 = scmp.eq.s32.totalorder %s21, 1
    %p81 = por %p79, %p80
    %p82 = scmp.ne.s32.totalorder %s73, %s74
    %p83 = scmp.eq.s32.totalorder %s21, 0
    %p84 = por %p82, %p83
    %p85 = scmp.ne.s32.totalorder %s73, %s74
    %p86 = scmp.eq.s32.totalorder %s22, 1
    %p87 = por %p85, %p86
    %p89 = scmp.ne.s32.totalorder %s74, %s88
    %p90 = scmp.eq.s32.totalorder %s22, 0
    %p91 = por %p89, %p90
    %s93 = sadd.s32 %s92, 1
    %p96 = scmp.eq.s32.totalorder %s16, 1
    %p97 = scmp.ne.s32.totalorder %s92, %s94
    %p98 = scmp.eq.s32.totalorder %s16, 0
    %p99 = por %p97, %p98
    %p100 = scmp.ne.s32.totalorder %s92, %s94
    %p101 = scmp.eq.s32.totalorder %s21, 1
    %p102 = por %p100, %p101
    %p103 = scmp.ne.s32.totalorder %s94, %s95
    %p104 = scmp.eq.s32.totalorder %s21, 0
    %p105 = por %p103, %p104
    %p106 = scmp.ne.s32.totalorder %s94, %s95
    %p107 = scmp.eq.s32.totalorder %s22, 1
    %p108 = por %p106, %p107
    %p110 = scmp.ne.s32.totalorder %s95, %s109
    %p111 = scmp.eq.s32.totalorder %s22, 0
    %p112 = por %p110, %p111
    %s114 = sadd.s32 %s113, 1
    %p117 = scmp.eq.s32.totalorder %s16, 1
    %p118 = scmp.ne.s32.totalorder %s113, %s115
    %p119 = scmp.eq.s32.totalorder %s16, 0
    %p120 = por %p118, %p119
    %p121 = scmp.ne.s32.totalorder %s113, %s115
    %p122 = scmp.eq.s32.totalorder %s21, 1
    %p123 = por %p121, %p122
    %p124 = scmp.ne.s32.totalorder %s115, %s116
    %p125 = scmp.eq.s32.totalorder %s21, 0
    %p126 = por %p124, %p125
    %p127 = scmp.ne.s32.totalorder %s115, %s116
    %p128 = scmp.eq.s32.totalorder %s22, 1
    %p129 = por %p127, %p128
    %p131 = scmp.ne.s32.totalorder %s116, %s130
    %p132 = scmp.eq.s32.totalorder %s22, 0
    %p133 = por %p131, %p132
    %s135 = sadd.s32 %s134, 1
    %p138 = scmp.eq.s32.totalorder %s16, 1
    %p139 = scmp.ne.s32.totalorder %s134, %s136
    %p140 = scmp.eq.s32.totalorder %s16, 0
    %p141 = por %p139, %p140
    %p142 = scmp.ne.s32.totalorder %s134, %s136
    %p143 = scmp.eq.s32.totalorder %s21, 1
    %p144 = por %p142, %p143
    %p145 = scmp.ne.s32.totalorder %s136, %s137
    %p146 = scmp.eq.s32.totalorder %s21, 0
    %p147 = por %p145, %p146
    %p148 = scmp.ne.s32.totalorder %s136, %s137
    %p149 = scmp.eq.s32.totalorder %s22, 1
    %p150 = por %p148, %p149
    %p152 = scmp.ne.s32.totalorder %s137, %s151
    %p153 = scmp.eq.s32.totalorder %s22, 0
    %p154 = por %p152, %p153
    %s156 = sadd.s32 %s155, 1
    %p159 = scmp.eq.s32.totalorder %s16, 1
    %p160 = scmp.ne.s32.totalorder %s155, %s157
    %p161 = scmp.eq.s32.totalorder %s16, 0
    %p162 = por %p160, %p161
    %p163 = scmp.ne.s32.totalorder %s155, %s157
    %p164 = scmp.eq.s32.totalorder %s21, 1
    %p165 = por %p163, %p164
    %p166 = scmp.ne.s32.totalorder %s157, %s158
    %p167 = scmp.eq.s32.totalorder %s21, 0
    %p168 = por %p166, %p167
    %p169 = scmp.ne.s32.totalorder %s157, %s158
    %p170 = scmp.eq.s32.totalorder %s22, 1
    %p171 = por %p169, %p170
    %p173 = scmp.ne.s32.totalorder %s158, %s172
    %p174 = scmp.eq.s32.totalorder %s22, 0
    %p175 = por %p173, %p174
    %s177 = sadd.s32 %s176, 1
    %p180 = scmp.eq.s32.totalorder %s16, 1
    %p181 = scmp.ne.s32.totalorder %s176, %s178
    %p182 = scmp.eq.s32.totalorder %s16, 0
    %p183 = por %p181, %p182
    %p184 = scmp.ne.s32.totalorder %s176, %s178
    %p185 = scmp.eq.s32.totalorder %s21, 1
    %p186 = por %p184, %p185
    %p187 = scmp.ne.s32.totalorder %s178, %s179
    %p188 = scmp.eq.s32.totalorder %s21, 0
    %p189 = por %p187, %p188
    %p190 = scmp.ne.s32.totalorder %s178, %s179
    %p191 = scmp.eq.s32.totalorder %s22, 1
    %p192 = por %p190, %p191
    %p194 = scmp.ne.s32.totalorder %s179, %s193
    %p195 = scmp.eq.s32.totalorder %s22, 0
    %p196 = por %p194, %p195
    %s198 = sadd.s32 %s197, 1
    %p201 = scmp.eq.s32.totalorder %s16, 1
    %p202 = scmp.ne.s32.totalorder %s197, %s199
    %p203 = scmp.eq.s32.totalorder %s16, 0
    %p204 = por %p202, %p203
    %p205 = scmp.ne.s32.totalorder %s197, %s199
    %p206 = scmp.eq.s32.totalorder %s21, 1
    %p207 = por %p205, %p206
    %p208 = scmp.ne.s32.totalorder %s199, %s200
    %p209 = scmp.eq.s32.totalorder %s21, 0
    %p210 = por %p208, %p209
    %p211 = scmp.ne.s32.totalorder %s199, %s200
    %p212 = scmp.eq.s32.totalorder %s22, 1
    %p213 = por %p211, %p212
    %p215 = scmp.ne.s32.totalorder %s200, %s214
    %p216 = scmp.eq.s32.totalorder %s22, 0
    %p217 = por %p215, %p216
    %s219 = sadd.s32 %s218, 1
    %p222 = scmp.eq.s32.totalorder %s16, 1
    %p223 = scmp.ne.s32.totalorder %s218, %s220
    %p224 = scmp.eq.s32.totalorder %s16, 0
    %p225 = por %p223, %p224
    %p226 = scmp.ne.s32.totalorder %s218, %s220
    %p227 = scmp.eq.s32.totalorder %s21, 1
    %p228 = por %p226, %p227
    %p229 = scmp.ne.s32.totalorder %s220, %s221
    %p230 = scmp.eq.s32.totalorder %s21, 0
    %p231 = por %p229, %p230
    %p232 = scmp.ne.s32.totalorder %s220, %s221
    %p233 = scmp.eq.s32.totalorder %s22, 1
    %p234 = por %p232, %p233
    %p236 = scmp.ne.s32.totalorder %s221, %s235
    %p237 = scmp.eq.s32.totalorder %s22, 0
    %p238 = por %p236, %p237
    %s239 = ssub.s32 %s16, %s23
    %p240 = scmp.eq.s32.totalorder %s239, 0
    %s242 = sadd.s32 %s241, 1
    %s243 = scalar_select %p240, %s241, %s242
    %p246 = pneg %p240
    %p247 = scmp.eq.s32.totalorder %s16, 1
    %p248 = por %p246, %p247
    %p249 = scmp.ne.s32.totalorder %s241, %s244
    %p250 = scmp.eq.s32.totalorder %s16, 0
    %p251 = por %p249, %p250
    %p252 = scmp.ne.s32.totalorder %s241, %s244
    %p253 = scmp.eq.s32.totalorder %s21, 1
    %p254 = por %p252, %p253
    %p255 = scmp.ne.s32.totalorder %s244, %s245
    %p256 = scmp.eq.s32.totalorder %s21, 0
    %p257 = por %p255, %p256
    %p258 = scmp.ne.s32.totalorder %s244, %s245
    %p259 = scmp.eq.s32.totalorder %s22, 1
    %p260 = por %p258, %p259
    %p262 = scmp.ne.s32.totalorder %s245, %s261
    %p263 = scmp.eq.s32.totalorder %s22, 0
    %p264 = por %p262, %p263
    %p265 = scmp.le.s32.totalorder 1, %s16
    %p266 = scmp.lt.s32.totalorder %s16, 3
    %p267 = pnand %p265, %p266
    %p268 = pneg %p267
    // Predicated region
    $region9: #{_lambda_.2} parent=5 // pred_check
      _
    $region10: #{_lambda_.2} parent=5 // pred_check_branch
      %270 = sbr.rel (%p267) target = $region12
    $region11: #{_lambda_.2} parent=5 // pred_region
      %s271 = ssub.s32 %s16, 1
      // Predicated region
      $region13: #{_lambda_.2} parent=11 // pred_check
        %p272 = pneg %p63
      $region14: #{_lambda_.2} parent=11 // pred_check_branch
        %274 = sbr.rel (%p272) target = $region16
      $region15: #{_lambda_.2} parent=11 // pred_region
        _
      $region16: #{_lambda_.2} parent=11 // pred_fallthru
        _
      // Predicated region
      $region17: #{_lambda_.2} parent=11 // pred_check
        %p275 = pneg %p84
      $region18: #{_lambda_.2} parent=11 // pred_check_branch
        %277 = sbr.rel (%p275) target = $region20
      $region19: #{_lambda_.2} parent=11 // pred_region
        _
      $region20: #{_lambda_.2} parent=11 // pred_fallthru
        _
      // Predicated region
      $region21: #{_lambda_.2} parent=11 // pred_check
        %p278 = pneg %p105
      $region22: #{_lambda_.2} parent=11 // pred_check_branch
        %280 = sbr.rel (%p278) target = $region24
      $region23: #{_lambda_.2} parent=11 // pred_region
        _
      $region24: #{_lambda_.2} parent=11 // pred_fallthru
        _
      // Predicated region
      $region25: #{_lambda_.2} parent=11 // pred_check
        %p281 = pneg %p126
      $region26: #{_lambda_.2} parent=11 // pred_check_branch
        %283 = sbr.rel (%p281) target = $region28
      $region27: #{_lambda_.2} parent=11 // pred_region
        _
      $region28: #{_lambda_.2} parent=11 // pred_fallthru
        _
      // Predicated region
      $region29: #{_lambda_.2} parent=11 // pred_check
        %p284 = pneg %p147
      $region30: #{_lambda_.2} parent=11 // pred_check_branch
        %286 = sbr.rel (%p284) target = $region32
      $region31: #{_lambda_.2} parent=11 // pred_region
        _
      $region32: #{_lambda_.2} parent=11 // pred_fallthru
        _
      // Predicated region
      $region33: #{_lambda_.2} parent=11 // pred_check
        %p287 = pneg %p168
      $region34: #{_lambda_.2} parent=11 // pred_check_branch
        %289 = sbr.rel (%p287) target = $region36
      $region35: #{_lambda_.2} parent=11 // pred_region
        _
      $region36: #{_lambda_.2} parent=11 // pred_fallthru
        _
      // Predicated region
      $region37: #{_lambda_.2} parent=11 // pred_check
        %p290 = pneg %p189
      $region38: #{_lambda_.2} parent=11 // pred_check_branch
        %292 = sbr.rel (%p290) target = $region40
      $region39: #{_lambda_.2} parent=11 // pred_region
        _
      $region40: #{_lambda_.2} parent=11 // pred_fallthru
        _
      // Predicated region
      $region41: #{_lambda_.2} parent=11 // pred_check
        %p293 = pneg %p210
      $region42: #{_lambda_.2} parent=11 // pred_check_branch
        %295 = sbr.rel (%p293) target = $region44
      $region43: #{_lambda_.2} parent=11 // pred_region
        _
      $region44: #{_lambda_.2} parent=11 // pred_fallthru
        _
      // Predicated region
      $region45: #{_lambda_.2} parent=11 // pred_check
        %p296 = pneg %p231
      $region46: #{_lambda_.2} parent=11 // pred_check_branch
        %298 = sbr.rel (%p296) target = $region48
      $region47: #{_lambda_.2} parent=11 // pred_region
        _
      $region48: #{_lambda_.2} parent=11 // pred_fallthru
        _
    $region12: #{_lambda_.2} parent=5 // pred_fallthru
      _
    %p299 = scmp.lt.s32.totalorder %s16, 2
    // Predicated region
    $region49: #{_lambda_.2} parent=5 // pred_check
      %p300 = pneg %p299
    $region50: #{_lambda_.2} parent=5 // pred_check_branch
      %302 = sbr.rel (%p300) target = $region52
    $region51: #{_lambda_.2} parent=5 // pred_region
      // Predicated region
      $region53: #{_lambda_.2} parent=51 // pred_check
        %p303 = pneg %p36
      $region54: #{_lambda_.2} parent=51 // pred_check_branch
        %305 = sbr.rel (%p303) target = $region56
      $region55: #{_lambda_.2} parent=51 // pred_region
        %p306 = scmp.lt.s32.totalorder %s16, 1
        %s307 = scalar_select %p306, %s16, 1
        %s308 = smul.addr %s307, 10
        %s309 = smul.addr %s308, 4
        %s310 = scalar_lea.vmem %s0, %s309
      $region56: #{_lambda_.2} parent=51 // pred_fallthru
        _
    $region52: #{_lambda_.2} parent=5 // pred_fallthru
      _
    %p311 = scmp.le.s32.totalorder 1, %s16
    %p312 = scmp.lt.s32.totalorder %s16, 3
    %p313 = pnand %p311, %p312
    %p314 = pneg %p313
    // Predicated region
    $region57: #{_lambda_.2} parent=5 // pred_check
      _
    $region58: #{_lambda_.2} parent=5 // pred_check_branch
      %316 = sbr.rel (%p313) target = $region60
    $region59: #{_lambda_.2} parent=5 // pred_region
      %s317 = ssub.s32 %s16, 1
      %p318 = scmp.lt.s32.totalorder %s21, 1
      %s319 = scalar_select %p318, %s21, 1
      %s320 = smul.addr %s319, 10
      %s321 = smul.addr %s320, 4
      %s322 = scalar_lea.vmem %s0, %s321
      %p323 = pneg %p42
      %p324 = pneg %p39
      %p325 = pneg %p63
      %p326 = pneg %p60
      %p327 = pneg %p84
      %p328 = pneg %p81
      %p329 = pneg %p105
      %p330 = pneg %p102
      %p331 = pneg %p126
      %p332 = pneg %p123
      %p333 = pneg %p147
      %p334 = pneg %p144
      %p335 = pneg %p168
      %p336 = pneg %p165
      %p337 = pneg %p189
      %p338 = pneg %p186
      %p339 = pneg %p210
      %p340 = pneg %p207
      %p341 = pneg %p231
      %p342 = pneg %p228
      %p343 = pneg %p257
      %p344 = pneg %p254
      %p345 = scmp.lt.s32.totalorder %s21, 1
      %s346 = scalar_select %p345, %s21, 1
      %s347 = smul.addr %s346, 10
      %s348 = smul.addr %s347, 4
      %s349 = scalar_lea.vmem %s10, %s348
      %p350 = scmp.lt.s32.totalorder %s21, 1
      %s351 = scalar_select %p350, %s21, 1
      %s352 = smul.addr %s351, 10
      %s353 = smul.addr %s352, 4
      %s354 = scalar_lea.vmem %s0, %s353
      %p355 = scmp.lt.s32.totalorder %s21, 1
      %s356 = scalar_select %p355, %s21, 1
      %s357 = smul.addr %s356, 10
      %s358 = smul.addr %s357, 4
      %s359 = scalar_lea.vmem %s10, %s358
      %v361 = vld [vmem:[%s354] sm:$0xf]
      %v362 = vld [vmem:[%s354 + $0x4] sm:$0xf]
      %v363 = vld [vmem:[%s354 + $0x8] sm:$0xf]
      %v364 = vld [vmem:[%s354 + $0xc] sm:$0xf]
      %v365 = vld [vmem:[%s354 + $0x10] sm:$0xf]
      %v366 = vld [vmem:[%s354 + $0x14] sm:$0xf]
      %v367 = vld [vmem:[%s354 + $0x18] sm:$0xf]
      %v368 = vld [vmem:[%s354 + $0x1c] sm:$0xf]
      %v369 = vld [vmem:[%s354 + $0x20] sm:$0xf]
      %v370 = vld [vmem:[%s354 + $0x24] sm:$0x7]
      %v371 = vld [vmem:[%s1] sm:$0xf]
      %v372 = vld [vmem:[%s2] sm:$0x1]
      %v374 = vperm.slane %v372, 0
      %v386 = vunpack.c.l.b16 %v361
      %v387 = vunpack.c.l.b16 %v362
      %v388 = vunpack.c.l.b16 %v363
      %v389 = vunpack.c.l.b16 %v364
      %v390 = vunpack.c.l.b16 %v365
      %v391 = vunpack.c.l.b16 %v366
      %v392 = vunpack.c.l.b16 %v367
      %v393 = vunpack.c.l.b16 %v368
      %v394 = vunpack.c.l.b16 %v369
      %v395 = vunpack.c.l.b16 %v370
      %v396 = vpack.c.b16 %v387, %v386
      %v397 = vpack.c.b16 %v389, %v388
      %v398 = vpack.c.b16 %v391, %v390
      %v399 = vpack.c.b16 %v393, %v392
      %v400 = vpack.c.b16 %v395, %v394
      %vm401 = vcmask 64512
      %v403 = vsel %vm401, %v396, 0
      %v406 = vsel %vm401, %v397, 0
      %v409 = vsel %vm401, %v398, 0
      %v412 = vsel %vm401, %v399, 0
      %v415 = vsel %vm401, %v400, 0
      %vm417 = vcmask 1043456
      %v419 = vsel %vm417, %v371, 0
      %421 = vmatpush.bf16.msra.mxu0 0
      %422 = vmatpush.bf16.msra.mxu0 0
      %423 = vmatpush.bf16.msra.mxu0 0
      %424 = vmatpush.bf16.msra.mxu0 0
      %425 = vmatpush.bf16.msra.mxu0 0
      %426 = vmatpush.bf16.msra.mxu0 0
      %427 = vmatpush.bf16.msra.mxu0 0
      %428 = vmatpush.bf16.msra.mxu0 %v419
      %429 = vmatmul.bf16.gmra.mxu0 %v403
      %v430 = vpop.f32.mrf.mxu0
      %v431 = vadd.f32 %v374, %v430
      %v432 = vpop.f32.mrf.mxu0
      %v433 = vadd.f32 %v374, %v432
      %434 = vmatmul.bf16.gmra.mxu0 %v406
      %v435 = vpop.f32.mrf.mxu0
      %v436 = vadd.f32 %v374, %v435
      %v437 = vpop.f32.mrf.mxu0
      %v438 = vadd.f32 %v374, %v437
      %439 = vmatmul.bf16.gmra.mxu0 %v409
      %v440 = vpop.f32.mrf.mxu0
      %v441 = vadd.f32 %v374, %v440
      %v442 = vpop.f32.mrf.mxu0
      %v443 = vadd.f32 %v374, %v442
      %444 = vmatmul.bf16.gmra.mxu0 %v412
      %v445 = vpop.f32.mrf.mxu0
      %v446 = vadd.f32 %v374, %v445
      %v447 = vpop.f32.mrf.mxu0
      %v448 = vadd.f32 %v374, %v447
      %449 = vmatmul.bf16.gmra.mxu0 %v415
      %v450 = vpop.f32.mrf.mxu0
      %v451 = vadd.f32 %v374, %v450
      %v452 = vpop.f32.mrf.mxu0
      %v453 = vadd.f32 %v374, %v452
      %454 = vdwg.mxu0
      %v455 = vmax.f32 %v431, 0.0
      %v456 = vmax.f32 %v433, 0.0
      %v457 = vmax.f32 %v436, 0.0
      %v458 = vmax.f32 %v438, 0.0
      %v459 = vmax.f32 %v441, 0.0
      %v460 = vmax.f32 %v443, 0.0
      %v461 = vmax.f32 %v446, 0.0
      %v462 = vmax.f32 %v448, 0.0
      %v463 = vmax.f32 %v451, 0.0
      %v464 = vmax.f32 %v453, 0.0
      %v465 = vld [vmem:[%s9] sm:$0xff]
      %v466 = vld [vmem:[%s9 + $0x8] sm:$0xff]
      %v467 = vld [vmem:[%s9 + $0x10] sm:$0xff]
      %v468 = vld [vmem:[%s9 + $0x18] sm:$0xff]
      %v469 = vld [vmem:[%s9 + $0x20] sm:$0xff]
      %v470 = vld [vmem:[%s9 + $0x28] sm:$0xff]
      %v471 = vld [vmem:[%s9 + $0x30] sm:$0xff]
      %v472 = vld [vmem:[%s9 + $0x38] sm:$0xff]
      %v473 = vld [vmem:[%s9 + $0x40] sm:$0xff]
      %v474 = vld [vmem:[%s9 + $0x48] sm:$0x3f]
      %476 = vset.pattern.permute.xlu0 0
      %477 = vperm.xlu0 %476, %v465
      %v478 = vpop.permute.xlu0 %477
      %481 = vset.pattern.permute.xlu0 0
      %482 = vperm.xlu0 %481, %v466
      %v483 = vpop.permute.xlu0 %482
      %486 = vset.pattern.permute.xlu0 0
      %487 = vperm.xlu0 %486, %v467
      %v488 = vpop.permute.xlu0 %487
      %491 = vset.pattern.permute.xlu0 0
      %492 = vperm.xlu0 %491, %v468
      %v493 = vpop.permute.xlu0 %492
      %496 = vset.pattern.permute.xlu0 0
      %497 = vperm.xlu0 %496, %v469
      %v498 = vpop.permute.xlu0 %497
      %501 = vset.pattern.permute.xlu0 0
      %502 = vperm.xlu0 %501, %v470
      %v503 = vpop.permute.xlu0 %502
      %506 = vset.pattern.permute.xlu0 0
      %507 = vperm.xlu0 %506, %v471
      %v508 = vpop.permute.xlu0 %507
      %511 = vset.pattern.permute.xlu0 0
      %512 = vperm.xlu0 %511, %v472
      %v513 = vpop.permute.xlu0 %512
      %516 = vset.pattern.permute.xlu0 0
      %517 = vperm.xlu0 %516, %v473
      %v518 = vpop.permute.xlu0 %517
      %521 = vset.pattern.permute.xlu0 0
      %522 = vperm.xlu0 %521, %v474
      %v523 = vpop.permute.xlu0 %522
      %v525 = vmul.f32 %v455, %v478
      %v526 = vmul.f32 %v456, %v483
      %v527 = vmul.f32 %v457, %v488
      %v528 = vmul.f32 %v458, %v493
      %v529 = vmul.f32 %v459, %v498
      %v530 = vmul.f32 %v460, %v503
      %v531 = vmul.f32 %v461, %v508
      %v532 = vmul.f32 %v462, %v513
      %v533 = vmul.f32 %v463, %v518
      %v534 = vmul.f32 %v464, %v523
      %vm535 = vcmask 130048
      %536 = vst.msk [vmem:[#allocation2] sm:$0xff] %vm535, 0.0
      %537 = vst.msk [vmem:[#allocation2 + $0x8] sm:$0xff] %vm535, 0.0
      %538 = vst.msk [vmem:[#allocation2 + $0x10] sm:$0xff] %vm535, %v525
      %539 = vst.msk [vmem:[#allocation2 + $0x18] sm:$0xff] %vm535, %v526
      %540 = vst.msk [vmem:[#allocation2 + $0x20] sm:$0xff] %vm535, %v527
      %541 = vst.msk [vmem:[#allocation2 + $0x28] sm:$0xff] %vm535, %v528
      %542 = vst.msk [vmem:[#allocation2 + $0x30] sm:$0xff] %vm535, %v529
      %543 = vst.msk [vmem:[#allocation2 + $0x38] sm:$0xff] %vm535, %v530
      %544 = vst.msk [vmem:[#allocation2 + $0x40] sm:$0xff] %vm535, %v531
      %545 = vst.msk [vmem:[#allocation2 + $0x48] sm:$0xff] %vm535, %v532
      %546 = vst.msk [vmem:[#allocation2 + $0x50] sm:$0xff] %vm535, %v533
      %vm547 = vcmask 128000
      %548 = vst.msk [vmem:[#allocation2 + $0x58] sm:$0x3f] %vm547, %v534
      %549 = vst.msk [vmem:[#allocation2 + $0x5e] sm:$0xff] %vm535, 0.0
      %550 = vst.msk [vmem:[#allocation2 + $0x66] sm:$0xff] %vm535, 0.0
      %vm551 = vcmask 123904
      %552 = vst.msk [vmem:[#allocation2 + $0x6e] sm:$0x3] %vm551, 0.0
      %v553 = vld [vmem:[#allocation2 + $0x5] sm:$0xff]
      %v554 = vld [vmem:[#allocation2 + $0xd] sm:$0xff]
      %v555 = vld [vmem:[#allocation2 + $0x15] sm:$0xff]
      %v556 = vld [vmem:[#allocation2 + $0x1d] sm:$0xff]
      %v557 = vld [vmem:[#allocation2 + $0x25] sm:$0xff]
      %v558 = vld [vmem:[#allocation2 + $0x2d] sm:$0xff]
      %v559 = vld [vmem:[#allocation2 + $0x35] sm:$0xff]
      %v560 = vld [vmem:[#allocation2 + $0x3d] sm:$0xff]
      %v561 = vld [vmem:[#allocation2 + $0x45] sm:$0xff]
      %v562 = vld [vmem:[#allocation2 + $0x4d] sm:$0x3f]
      %v563 = vpack.c.bf16 %v554, %v553
      %v564 = vpack.c.bf16 %v556, %v555
      %v565 = vpack.c.bf16 %v558, %v557
      %v566 = vpack.c.bf16 %v560, %v559
      %v567 = vpack.c.bf16 %v562, %v561
      %v568 = vld [vmem:[%s3] sm:$0xf]
      %v569 = vld [vmem:[%s3 + $0x4] sm:$0xf]
      %v570 = vld [vmem:[#allocation2 + $0x6] sm:$0xff]
      %v571 = vld [vmem:[#allocation2 + $0xe] sm:$0xff]
      %v572 = vld [vmem:[#allocation2 + $0x16] sm:$0xff]
      %v573 = vld [vmem:[#allocation2 + $0x1e] sm:$0xff]
      %v574 = vld [vmem:[#allocation2 + $0x26] sm:$0xff]
      %v575 = vld [vmem:[#allocation2 + $0x2e] sm:$0xff]
      %v576 = vld [vmem:[#allocation2 + $0x36] sm:$0xff]
      %v577 = vld [vmem:[#allocation2 + $0x3e] sm:$0xff]
      %v578 = vld [vmem:[#allocation2 + $0x46] sm:$0xff]
      %v579 = vld [vmem:[#allocation2 + $0x4e] sm:$0x3f]
      %v580 = vpack.c.bf16 %v571, %v570
      %v581 = vpack.c.bf16 %v573, %v572
      %v582 = vpack.c.bf16 %v575, %v574
      %v583 = vpack.c.bf16 %v577, %v576
      %v584 = vpack.c.bf16 %v579, %v578
      %s585 = scalar_lea.vmem %s3, 8
      %v586 = vld [vmem:[%s585] sm:$0xf]
      %v587 = vld [vmem:[%s585 + $0x4] sm:$0xf]
      %v590 = vunpack.c.l.b16 %v586
      %v591 = vunpack.c.l.b16 %v587
      %v592 = vpack.c.b16 %v591, %v590
      %v595 = vsel %vm535, %v580, 0
      %v598 = vsel %vm535, %v581, 0
      %v601 = vsel %vm535, %v582, 0
      %v604 = vsel %vm535, %v583, 0
      %v607 = vsel %vm535, %v584, 0
      %609 = vmatpush.bf16.msra.mxu0 0
      %610 = vmatpush.bf16.msra.mxu0 0
      %611 = vmatpush.bf16.msra.mxu0 0
      %612 = vmatpush.bf16.msra.mxu0 0
      %613 = vmatpush.bf16.msra.mxu0 0
      %614 = vmatpush.bf16.msra.mxu0 0
      %615 = vmatpush.bf16.msra.mxu0 0
      %616 = vmatpush.bf16.msra.mxu0 %v592
      %617 = vmatmul.bf16.gmra.mxu0 %v595
      %v618 = vpop.f32.mrf.mxu0
      %v619 = vadd.f32 0.0, %v618
      %v620 = vpop.f32.mrf.mxu0
      %v621 = vadd.f32 0.0, %v620
      %622 = vmatmul.bf16.gmra.mxu0 %v598
      %v623 = vpop.f32.mrf.mxu0
      %v624 = vadd.f32 0.0, %v623
      %v625 = vpop.f32.mrf.mxu0
      %v626 = vadd.f32 0.0, %v625
      %627 = vmatmul.bf16.gmra.mxu0 %v601
      %v628 = vpop.f32.mrf.mxu0
      %v629 = vadd.f32 0.0, %v628
      %v630 = vpop.f32.mrf.mxu0
      %v631 = vadd.f32 0.0, %v630
      %632 = vmatmul.bf16.gmra.mxu0 %v604
      %v633 = vpop.f32.mrf.mxu0
      %v634 = vadd.f32 0.0, %v633
      %v635 = vpop.f32.mrf.mxu0
      %v636 = vadd.f32 0.0, %v635
      %637 = vmatmul.bf16.gmra.mxu0 %v607
      %v638 = vpop.f32.mrf.mxu0
      %v639 = vadd.f32 0.0, %v638
      %v640 = vpop.f32.mrf.mxu0
      %v641 = vadd.f32 0.0, %v640
      %642 = vdwg.mxu0
      %v645 = vunpack.c.l.b16 %v568
      %v646 = vunpack.c.l.b16 %v569
      %v647 = vpack.c.b16 %v646, %v645
      %v650 = vsel %vm535, %v563, 0
      %v653 = vsel %vm535, %v564, 0
      %v656 = vsel %vm535, %v565, 0
      %v659 = vsel %vm535, %v566, 0
      %v662 = vsel %vm535, %v567, 0
      %664 = vmatpush.bf16.msra.mxu0 0
      %665 = vmatpush.bf16.msra.mxu0 0
      %666 = vmatpush.bf16.msra.mxu0 0
      %667 = vmatpush.bf16.msra.mxu0 0
      %668 = vmatpush.bf16.msra.mxu0 0
      %669 = vmatpush.bf16.msra.mxu0 0
      %670 = vmatpush.bf16.msra.mxu0 0
      %671 = vmatpush.bf16.msra.mxu0 %v647
      %672 = vmatmul.bf16.gmra.mxu0 %v650
      %v673 = vpop.f32.mrf.mxu0
      %v674 = vadd.f32 %v619, %v673
      %v675 = vpop.f32.mrf.mxu0
      %v676 = vadd.f32 %v621, %v675
      %677 = vmatmul.bf16.gmra.mxu0 %v653
      %v678 = vpop.f32.mrf.mxu0
      %v679 = vadd.f32 %v624, %v678
      %v680 = vpop.f32.mrf.mxu0
      %v681 = vadd.f32 %v626, %v680
      %682 = vmatmul.bf16.gmra.mxu0 %v656
      %v683 = vpop.f32.mrf.mxu0
      %v684 = vadd.f32 %v629, %v683
      %v685 = vpop.f32.mrf.mxu0
      %v686 = vadd.f32 %v631, %v685
      %687 = vmatmul.bf16.gmra.mxu0 %v659
      %v688 = vpop.f32.mrf.mxu0
      %v689 = vadd.f32 %v634, %v688
      %v690 = vpop.f32.mrf.mxu0
      %v691 = vadd.f32 %v636, %v690
      %692 = vmatmul.bf16.gmra.mxu0 %v662
      %v693 = vpop.f32.mrf.mxu0
      %v694 = vadd.f32 %v639, %v693
      %v695 = vpop.f32.mrf.mxu0
      %v696 = vadd.f32 %v641, %v695
      %697 = vdwg.mxu0
      %v698 = vld [vmem:[#allocation2 + $0x7] sm:$0xff]
      %v699 = vld [vmem:[#allocation2 + $0xf] sm:$0xff]
      %v700 = vld [vmem:[#allocation2 + $0x17] sm:$0xff]
      %v701 = vld [vmem:[#allocation2 + $0x1f] sm:$0xff]
      %v702 = vld [vmem:[#allocation2 + $0x27] sm:$0xff]
      %v703 = vld [vmem:[#allocation2 + $0x2f] sm:$0xff]
      %v704 = vld [vmem:[#allocation2 + $0x37] sm:$0xff]
      %v705 = vld [vmem:[#allocation2 + $0x3f] sm:$0xff]
      %v706 = vld [vmem:[#allocation2 + $0x47] sm:$0xff]
      %v707 = vld [vmem:[#allocation2 + $0x4f] sm:$0x3f]
      %v708 = vpack.c.bf16 %v699, %v698
      %v709 = vpack.c.bf16 %v701, %v700
      %v710 = vpack.c.bf16 %v703, %v702
      %v711 = vpack.c.bf16 %v705, %v704
      %v712 = vpack.c.bf16 %v707, %v706
      %s713 = scalar_lea.vmem %s3, 16
      %v714 = vld [vmem:[%s713] sm:$0xf]
      %v715 = vld [vmem:[%s713 + $0x4] sm:$0xf]
      %v718 = vunpack.c.l.b16 %v714
      %v719 = vunpack.c.l.b16 %v715
      %v720 = vpack.c.b16 %v719, %v718
      %v723 = vsel %vm535, %v708, 0
      %v726 = vsel %vm535, %v709, 0
      %v729 = vsel %vm535, %v710, 0
      %v732 = vsel %vm535, %v711, 0
      %v735 = vsel %vm535, %v712, 0
      %737 = vmatpush.bf16.msra.mxu0 0
      %738 = vmatpush.bf16.msra.mxu0 0
      %739 = vmatpush.bf16.msra.mxu0 0
      %740 = vmatpush.bf16.msra.mxu0 0
      %741 = vmatpush.bf16.msra.mxu0 0
      %742 = vmatpush.bf16.msra.mxu0 0
      %743 = vmatpush.bf16.msra.mxu0 0
      %744 = vmatpush.bf16.msra.mxu0 %v720
      %745 = vmatmul.bf16.gmra.mxu0 %v723
      %v746 = vpop.f32.mrf.mxu0
      %v747 = vadd.f32 0.0, %v746
      %v748 = vpop.f32.mrf.mxu0
      %v749 = vadd.f32 0.0, %v748
      %750 = vmatmul.bf16.gmra.mxu0 %v726
      %v751 = vpop.f32.mrf.mxu0
      %v752 = vadd.f32 0.0, %v751
      %v753 = vpop.f32.mrf.mxu0
      %v754 = vadd.f32 0.0, %v753
      %755 = vmatmul.bf16.gmra.mxu0 %v729
      %v756 = vpop.f32.mrf.mxu0
      %v757 = vadd.f32 0.0, %v756
      %v758 = vpop.f32.mrf.mxu0
      %v759 = vadd.f32 0.0, %v758
      %760 = vmatmul.bf16.gmra.mxu0 %v732
      %v761 = vpop.f32.mrf.mxu0
      %v762 = vadd.f32 0.0, %v761
      %v763 = vpop.f32.mrf.mxu0
      %v764 = vadd.f32 0.0, %v763
      %765 = vmatmul.bf16.gmra.mxu0 %v735
      %v766 = vpop.f32.mrf.mxu0
      %v767 = vadd.f32 0.0, %v766
      %v768 = vpop.f32.mrf.mxu0
      %v769 = vadd.f32 0.0, %v768
      %770 = vdwg.mxu0
      %v771 = vadd.f32 %v674, %v747
      %v772 = vadd.f32 %v676, %v749
      %v773 = vadd.f32 %v679, %v752
      %v774 = vadd.f32 %v681, %v754
      %v775 = vadd.f32 %v684, %v757
      %v776 = vadd.f32 %v686, %v759
      %v777 = vadd.f32 %v689, %v762
      %v778 = vadd.f32 %v691, %v764
      %v779 = vadd.f32 %v694, %v767
      %v780 = vadd.f32 %v696, %v769
      %v781 = vld [vmem:[#allocation2 + $0xf] sm:$0xff]
      %v782 = vld [vmem:[#allocation2 + $0x17] sm:$0xff]
      %v783 = vld [vmem:[#allocation2 + $0x1f] sm:$0xff]
      %v784 = vld [vmem:[#allocation2 + $0x27] sm:$0xff]
      %v785 = vld [vmem:[#allocation2 + $0x2f] sm:$0xff]
      %v786 = vld [vmem:[#allocation2 + $0x37] sm:$0xff]
      %v787 = vld [vmem:[#allocation2 + $0x3f] sm:$0xff]
      %v788 = vld [vmem:[#allocation2 + $0x47] sm:$0xff]
      %v789 = vld [vmem:[#allocation2 + $0x4f] sm:$0xff]
      %v790 = vld [vmem:[#allocation2 + $0x57] sm:$0x3f]
      %v791 = vpack.c.bf16 %v782, %v781
      %v792 = vpack.c.bf16 %v784, %v783
      %v793 = vpack.c.bf16 %v786, %v785
      %v794 = vpack.c.bf16 %v788, %v787
      %v795 = vpack.c.bf16 %v790, %v789
      %s796 = scalar_lea.vmem %s3, 24
      %v797 = vld [vmem:[%s796] sm:$0xf]
      %v798 = vld [vmem:[%s796 + $0x4] sm:$0xf]
      %v801 = vunpack.c.l.b16 %v797
      %v802 = vunpack.c.l.b16 %v798
      %v803 = vpack.c.b16 %v802, %v801
      %v806 = vsel %vm535, %v791, 0
      %v809 = vsel %vm535, %v792, 0
      %v812 = vsel %vm535, %v793, 0
      %v815 = vsel %vm535, %v794, 0
      %v818 = vsel %vm535, %v795, 0
      %820 = vmatpush.bf16.msra.mxu0 0
      %821 = vmatpush.bf16.msra.mxu0 0
      %822 = vmatpush.bf16.msra.mxu0 0
      %823 = vmatpush.bf16.msra.mxu0 0
      %824 = vmatpush.bf16.msra.mxu0 0
      %825 = vmatpush.bf16.msra.mxu0 0
      %826 = vmatpush.bf16.msra.mxu0 0
      %827 = vmatpush.bf16.msra.mxu0 %v803
      %828 = vmatmul.bf16.gmra.mxu0 %v806
      %v829 = vpop.f32.mrf.mxu0
      %v830 = vadd.f32 0.0, %v829
      %v831 = vpop.f32.mrf.mxu0
      %v832 = vadd.f32 0.0, %v831
      %833 = vmatmul.bf16.gmra.mxu0 %v809
      %v834 = vpop.f32.mrf.mxu0
      %v835 = vadd.f32 0.0, %v834
      %v836 = vpop.f32.mrf.mxu0
      %v837 = vadd.f32 0.0, %v836
      %838 = vmatmul.bf16.gmra.mxu0 %v812
      %v839 = vpop.f32.mrf.mxu0
      %v840 = vadd.f32 0.0, %v839
      %v841 = vpop.f32.mrf.mxu0
      %v842 = vadd.f32 0.0, %v841
      %843 = vmatmul.bf16.gmra.mxu0 %v815
      %v844 = vpop.f32.mrf.mxu0
      %v845 = vadd.f32 0.0, %v844
      %v846 = vpop.f32.mrf.mxu0
      %v847 = vadd.f32 0.0, %v846
      %848 = vmatmul.bf16.gmra.mxu0 %v818
      %v849 = vpop.f32.mrf.mxu0
      %v850 = vadd.f32 0.0, %v849
      %v851 = vpop.f32.mrf.mxu0
      %v852 = vadd.f32 0.0, %v851
      %853 = vdwg.mxu0
      %v854 = vadd.f32 %v771, %v830
      %v855 = vadd.f32 %v772, %v832
      %v856 = vadd.f32 %v773, %v835
      %v857 = vadd.f32 %v774, %v837
      %v858 = vadd.f32 %v775, %v840
      %v859 = vadd.f32 %v776, %v842
      %v860 = vadd.f32 %v777, %v845
      %v861 = vadd.f32 %v778, %v847
      %v862 = vadd.f32 %v779, %v850
      %v863 = vadd.f32 %v780, %v852
      %v864 = vld [vmem:[#allocation2 + $0x10] sm:$0xff]
      %v865 = vld [vmem:[#allocation2 + $0x18] sm:$0xff]
      %v866 = vld [vmem:[#allocation2 + $0x20] sm:$0xff]
      %v867 = vld [vmem:[#allocation2 + $0x28] sm:$0xff]
      %v868 = vld [vmem:[#allocation2 + $0x30] sm:$0xff]
      %v869 = vld [vmem:[#allocation2 + $0x38] sm:$0xff]
      %v870 = vld [vmem:[#allocation2 + $0x40] sm:$0xff]
      %v871 = vld [vmem:[#allocation2 + $0x48] sm:$0xff]
      %v872 = vld [vmem:[#allocation2 + $0x50] sm:$0xff]
      %v873 = vld [vmem:[#allocation2 + $0x58] sm:$0x3f]
      %v874 = vpack.c.bf16 %v865, %v864
      %v875 = vpack.c.bf16 %v867, %v866
      %v876 = vpack.c.bf16 %v869, %v868
      %v877 = vpack.c.bf16 %v871, %v870
      %v878 = vpack.c.bf16 %v873, %v872
      %s879 = scalar_lea.vmem %s3, 32
      %v880 = vld [vmem:[%s879] sm:$0xf]
      %v881 = vld [vmem:[%s879 + $0x4] sm:$0xf]
      %v884 = vunpack.c.l.b16 %v880
      %v885 = vunpack.c.l.b16 %v881
      %v886 = vpack.c.b16 %v885, %v884
      %v889 = vsel %vm535, %v874, 0
      %v892 = vsel %vm535, %v875, 0
      %v895 = vsel %vm535, %v876, 0
      %v898 = vsel %vm535, %v877, 0
      %v901 = vsel %vm535, %v878, 0
      %903 = vmatpush.bf16.msra.mxu0 0
      %904 = vmatpush.bf16.msra.mxu0 0
      %905 = vmatpush.bf16.msra.mxu0 0
      %906 = vmatpush.bf16.msra.mxu0 0
      %907 = vmatpush.bf16.msra.mxu0 0
      %908 = vmatpush.bf16.msra.mxu0 0
      %909 = vmatpush.bf16.msra.mxu0 0
      %910 = vmatpush.bf16.msra.mxu0 %v886
      %911 = vmatmul.bf16.gmra.mxu0 %v889
      %v912 = vpop.f32.mrf.mxu0
      %v913 = vadd.f32 0.0, %v912
      %v914 = vpop.f32.mrf.mxu0
      %v915 = vadd.f32 0.0, %v914
      %916 = vmatmul.bf16.gmra.mxu0 %v892
      %v917 = vpop.f32.mrf.mxu0
      %v918 = vadd.f32 0.0, %v917
      %v919 = vpop.f32.mrf.mxu0
      %v920 = vadd.f32 0.0, %v919
      %921 = vmatmul.bf16.gmra.mxu0 %v895
      %v922 = vpop.f32.mrf.mxu0
      %v923 = vadd.f32 0.0, %v922
      %v924 = vpop.f32.mrf.mxu0
      %v925 = vadd.f32 0.0, %v924
      %926 = vmatmul.bf16.gmra.mxu0 %v898
      %v927 = vpop.f32.mrf.mxu0
      %v928 = vadd.f32 0.0, %v927
      %v929 = vpop.f32.mrf.mxu0
      %v930 = vadd.f32 0.0, %v929
      %931 = vmatmul.bf16.gmra.mxu0 %v901
      %v932 = vpop.f32.mrf.mxu0
      %v933 = vadd.f32 0.0, %v932
      %v934 = vpop.f32.mrf.mxu0
      %v935 = vadd.f32 0.0, %v934
      %936 = vdwg.mxu0
      %v937 = vadd.f32 %v854, %v913
      %v938 = vadd.f32 %v855, %v915
      %v939 = vadd.f32 %v856, %v918
      %v940 = vadd.f32 %v857, %v920
      %v941 = vadd.f32 %v858, %v923
      %v942 = vadd.f32 %v859, %v925
      %v943 = vadd.f32 %v860, %v928
      %v944 = vadd.f32 %v861, %v930
      %v945 = vadd.f32 %v862, %v933
      %v946 = vadd.f32 %v863, %v935
      %v947 = vld [vmem:[#allocation2 + $0x11] sm:$0xff]
      %v948 = vld [vmem:[#allocation2 + $0x19] sm:$0xff]
      %v949 = vld [vmem:[#allocation2 + $0x21] sm:$0xff]
      %v950 = vld [vmem:[#allocation2 + $0x29] sm:$0xff]
      %v951 = vld [vmem:[#allocation2 + $0x31] sm:$0xff]
      %v952 = vld [vmem:[#allocation2 + $0x39] sm:$0xff]
      %v953 = vld [vmem:[#allocation2 + $0x41] sm:$0xff]
      %v954 = vld [vmem:[#allocation2 + $0x49] sm:$0xff]
      %v955 = vld [vmem:[#allocation2 + $0x51] sm:$0xff]
      %v956 = vld [vmem:[#allocation2 + $0x59] sm:$0x3f]
      %v957 = vpack.c.bf16 %v948, %v947
      %v958 = vpack.c.bf16 %v950, %v949
      %v959 = vpack.c.bf16 %v952, %v951
      %v960 = vpack.c.bf16 %v954, %v953
      %v961 = vpack.c.bf16 %v956, %v955
      %s962 = scalar_lea.vmem %s3, 40
      %v963 = vld [vmem:[%s962] sm:$0xf]
      %v964 = vld [vmem:[%s962 + $0x4] sm:$0xf]
      %v967 = vunpack.c.l.b16 %v963
      %v968 = vunpack.c.l.b16 %v964
      %v969 = vpack.c.b16 %v968, %v967
      %v972 = vsel %vm535, %v957, 0
      %v975 = vsel %vm535, %v958, 0
      %v978 = vsel %vm535, %v959, 0
      %v981 = vsel %vm535, %v960, 0
      %v984 = vsel %vm535, %v961, 0
      %986 = vmatpush.bf16.msra.mxu0 0
      %987 = vmatpush.bf16.msra.mxu0 0
      %988 = vmatpush.bf16.msra.mxu0 0
      %989 = vmatpush.bf16.msra.mxu0 0
      %990 = vmatpush.bf16.msra.mxu0 0
      %991 = vmatpush.bf16.msra.mxu0 0
      %992 = vmatpush.bf16.msra.mxu0 0
      %993 = vmatpush.bf16.msra.mxu0 %v969
      %994 = vmatmul.bf16.gmra.mxu0 %v972
      %v995 = vpop.f32.mrf.mxu0
      %v996 = vadd.f32 0.0, %v995
      %v997 = vpop.f32.mrf.mxu0
      %v998 = vadd.f32 0.0, %v997
      %999 = vmatmul.bf16.gmra.mxu0 %v975
      %v1000 = vpop.f32.mrf.mxu0
      %v1001 = vadd.f32 0.0, %v1000
      %v1002 = vpop.f32.mrf.mxu0
      %v1003 = vadd.f32 0.0, %v1002
      %1004 = vmatmul.bf16.gmra.mxu0 %v978
      %v1005 = vpop.f32.mrf.mxu0
      %v1006 = vadd.f32 0.0, %v1005
      %v1007 = vpop.f32.mrf.mxu0
      %v1008 = vadd.f32 0.0, %v1007
      %1009 = vmatmul.bf16.gmra.mxu0 %v981
      %v1010 = vpop.f32.mrf.mxu0
      %v1011 = vadd.f32 0.0, %v1010
      %v1012 = vpop.f32.mrf.mxu0
      %v1013 = vadd.f32 0.0, %v1012
      %1014 = vmatmul.bf16.gmra.mxu0 %v984
      %v1015 = vpop.f32.mrf.mxu0
      %v1016 = vadd.f32 0.0, %v1015
      %v1017 = vpop.f32.mrf.mxu0
      %v1018 = vadd.f32 0.0, %v1017
      %1019 = vdwg.mxu0
      %v1020 = vadd.f32 %v937, %v996
      %v1021 = vadd.f32 %v938, %v998
      %v1022 = vadd.f32 %v939, %v1001
      %v1023 = vadd.f32 %v940, %v1003
      %v1024 = vadd.f32 %v941, %v1006
      %v1025 = vadd.f32 %v942, %v1008
      %v1026 = vadd.f32 %v943, %v1011
      %v1027 = vadd.f32 %v944, %v1013
      %v1028 = vadd.f32 %v945, %v1016
      %v1029 = vadd.f32 %v946, %v1018
      %v1030 = vld [vmem:[#allocation2 + $0x19] sm:$0xff]
      %v1031 = vld [vmem:[#allocation2 + $0x21] sm:$0xff]
      %v1032 = vld [vmem:[#allocation2 + $0x29] sm:$0xff]
      %v1033 = vld [vmem:[#allocation2 + $0x31] sm:$0xff]
      %v1034 = vld [vmem:[#allocation2 + $0x39] sm:$0xff]
      %v1035 = vld [vmem:[#allocation2 + $0x41] sm:$0xff]
      %v1036 = vld [vmem:[#allocation2 + $0x49] sm:$0xff]
      %v1037 = vld [vmem:[#allocation2 + $0x51] sm:$0xff]
      %v1038 = vld [vmem:[#allocation2 + $0x59] sm:$0xff]
      %v1039 = vld [vmem:[#allocation2 + $0x61] sm:$0x3f]
      %v1040 = vpack.c.bf16 %v1031, %v1030
      %v1041 = vpack.c.bf16 %v1033, %v1032
      %v1042 = vpack.c.bf16 %v1035, %v1034
      %v1043 = vpack.c.bf16 %v1037, %v1036
      %v1044 = vpack.c.bf16 %v1039, %v1038
      %s1045 = scalar_lea.vmem %s3, 48
      %v1046 = vld [vmem:[%s1045] sm:$0xf]
      %v1047 = vld [vmem:[%s1045 + $0x4] sm:$0xf]
      %v1050 = vunpack.c.l.b16 %v1046
      %v1051 = vunpack.c.l.b16 %v1047
      %v1052 = vpack.c.b16 %v1051, %v1050
      %v1055 = vsel %vm535, %v1040, 0
      %v1058 = vsel %vm535, %v1041, 0
      %v1061 = vsel %vm535, %v1042, 0
      %v1064 = vsel %vm535, %v1043, 0
      %v1067 = vsel %vm535, %v1044, 0
      %1069 = vmatpush.bf16.msra.mxu0 0
      %1070 = vmatpush.bf16.msra.mxu0 0
      %1071 = vmatpush.bf16.msra.mxu0 0
      %1072 = vmatpush.bf16.msra.mxu0 0
      %1073 = vmatpush.bf16.msra.mxu0 0
      %1074 = vmatpush.bf16.msra.mxu0 0
      %1075 = vmatpush.bf16.msra.mxu0 0
      %1076 = vmatpush.bf16.msra.mxu0 %v1052
      %1077 = vmatmul.bf16.gmra.mxu0 %v1055
      %v1078 = vpop.f32.mrf.mxu0
      %v1079 = vadd.f32 0.0, %v1078
      %v1080 = vpop.f32.mrf.mxu0
      %v1081 = vadd.f32 0.0, %v1080
      %1082 = vmatmul.bf16.gmra.mxu0 %v1058
      %v1083 = vpop.f32.mrf.mxu0
      %v1084 = vadd.f32 0.0, %v1083
      %v1085 = vpop.f32.mrf.mxu0
      %v1086 = vadd.f32 0.0, %v1085
      %1087 = vmatmul.bf16.gmra.mxu0 %v1061
      %v1088 = vpop.f32.mrf.mxu0
      %v1089 = vadd.f32 0.0, %v1088
      %v1090 = vpop.f32.mrf.mxu0
      %v1091 = vadd.f32 0.0, %v1090
      %1092 = vmatmul.bf16.gmra.mxu0 %v1064
      %v1093 = vpop.f32.mrf.mxu0
      %v1094 = vadd.f32 0.0, %v1093
      %v1095 = vpop.f32.mrf.mxu0
      %v1096 = vadd.f32 0.0, %v1095
      %1097 = vmatmul.bf16.gmra.mxu0 %v1067
      %v1098 = vpop.f32.mrf.mxu0
      %v1099 = vadd.f32 0.0, %v1098
      %v1100 = vpop.f32.mrf.mxu0
      %v1101 = vadd.f32 0.0, %v1100
      %1102 = vdwg.mxu0
      %v1103 = vadd.f32 %v1020, %v1079
      %v1104 = vadd.f32 %v1021, %v1081
      %v1105 = vadd.f32 %v1022, %v1084
      %v1106 = vadd.f32 %v1023, %v1086
      %v1107 = vadd.f32 %v1024, %v1089
      %v1108 = vadd.f32 %v1025, %v1091
      %v1109 = vadd.f32 %v1026, %v1094
      %v1110 = vadd.f32 %v1027, %v1096
      %v1111 = vadd.f32 %v1028, %v1099
      %v1112 = vadd.f32 %v1029, %v1101
      %v1113 = vld [vmem:[#allocation2 + $0x1a] sm:$0xff]
      %v1114 = vld [vmem:[#allocation2 + $0x22] sm:$0xff]
      %v1115 = vld [vmem:[#allocation2 + $0x2a] sm:$0xff]
      %v1116 = vld [vmem:[#allocation2 + $0x32] sm:$0xff]
      %v1117 = vld [vmem:[#allocation2 + $0x3a] sm:$0xff]
      %v1118 = vld [vmem:[#allocation2 + $0x42] sm:$0xff]
      %v1119 = vld [vmem:[#allocation2 + $0x4a] sm:$0xff]
      %v1120 = vld [vmem:[#allocation2 + $0x52] sm:$0xff]
      %v1121 = vld [vmem:[#allocation2 + $0x5a] sm:$0xff]
      %v1122 = vld [vmem:[#allocation2 + $0x62] sm:$0x3f]
      %v1123 = vpack.c.bf16 %v1114, %v1113
      %v1124 = vpack.c.bf16 %v1116, %v1115
      %v1125 = vpack.c.bf16 %v1118, %v1117
      %v1126 = vpack.c.bf16 %v1120, %v1119
      %v1127 = vpack.c.bf16 %v1122, %v1121
      %s1128 = scalar_lea.vmem %s3, 56
      %v1129 = vld [vmem:[%s1128] sm:$0xf]
      %v1130 = vld [vmem:[%s1128 + $0x4] sm:$0xf]
      %v1133 = vunpack.c.l.b16 %v1129
      %v1134 = vunpack.c.l.b16 %v1130
      %v1135 = vpack.c.b16 %v1134, %v1133
      %v1138 = vsel %vm535, %v1123, 0
      %v1141 = vsel %vm535, %v1124, 0
      %v1144 = vsel %vm535, %v1125, 0
      %v1147 = vsel %vm535, %v1126, 0
      %v1150 = vsel %vm535, %v1127, 0
      %1152 = vmatpush.bf16.msra.mxu0 0
      %1153 = vmatpush.bf16.msra.mxu0 0
      %1154 = vmatpush.bf16.msra.mxu0 0
      %1155 = vmatpush.bf16.msra.mxu0 0
      %1156 = vmatpush.bf16.msra.mxu0 0
      %1157 = vmatpush.bf16.msra.mxu0 0
      %1158 = vmatpush.bf16.msra.mxu0 0
      %1159 = vmatpush.bf16.msra.mxu0 %v1135
      %1160 = vmatmul.bf16.gmra.mxu0 %v1138
      %v1161 = vpop.f32.mrf.mxu0
      %v1162 = vadd.f32 0.0, %v1161
      %v1163 = vpop.f32.mrf.mxu0
      %v1164 = vadd.f32 0.0, %v1163
      %1165 = vmatmul.bf16.gmra.mxu0 %v1141
      %v1166 = vpop.f32.mrf.mxu0
      %v1167 = vadd.f32 0.0, %v1166
      %v1168 = vpop.f32.mrf.mxu0
      %v1169 = vadd.f32 0.0, %v1168
      %1170 = vmatmul.bf16.gmra.mxu0 %v1144
      %v1171 = vpop.f32.mrf.mxu0
      %v1172 = vadd.f32 0.0, %v1171
      %v1173 = vpop.f32.mrf.mxu0
      %v1174 = vadd.f32 0.0, %v1173
      %1175 = vmatmul.bf16.gmra.mxu0 %v1147
      %v1176 = vpop.f32.mrf.mxu0
      %v1177 = vadd.f32 0.0, %v1176
      %v1178 = vpop.f32.mrf.mxu0
      %v1179 = vadd.f32 0.0, %v1178
      %1180 = vmatmul.bf16.gmra.mxu0 %v1150
      %v1181 = vpop.f32.mrf.mxu0
      %v1182 = vadd.f32 0.0, %v1181
      %v1183 = vpop.f32.mrf.mxu0
      %v1184 = vadd.f32 0.0, %v1183
      %1185 = vdwg.mxu0
      %v1186 = vadd.f32 %v1103, %v1162
      %v1187 = vadd.f32 %v1104, %v1164
      %v1188 = vadd.f32 %v1105, %v1167
      %v1189 = vadd.f32 %v1106, %v1169
      %v1190 = vadd.f32 %v1107, %v1172
      %v1191 = vadd.f32 %v1108, %v1174
      %v1192 = vadd.f32 %v1109, %v1177
      %v1193 = vadd.f32 %v1110, %v1179
      %v1194 = vadd.f32 %v1111, %v1182
      %v1195 = vadd.f32 %v1112, %v1184
      %v1196 = vld [vmem:[#allocation2 + $0x1b] sm:$0xff]
      %v1197 = vld [vmem:[#allocation2 + $0x23] sm:$0xff]
      %v1198 = vld [vmem:[#allocation2 + $0x2b] sm:$0xff]
      %v1199 = vld [vmem:[#allocation2 + $0x33] sm:$0xff]
      %v1200 = vld [vmem:[#allocation2 + $0x3b] sm:$0xff]
      %v1201 = vld [vmem:[#allocation2 + $0x43] sm:$0xff]
      %v1202 = vld [vmem:[#allocation2 + $0x4b] sm:$0xff]
      %v1203 = vld [vmem:[#allocation2 + $0x53] sm:$0xff]
      %v1204 = vld [vmem:[#allocation2 + $0x5b] sm:$0xff]
      %v1205 = vld [vmem:[#allocation2 + $0x63] sm:$0x3f]
      %v1206 = vpack.c.bf16 %v1197, %v1196
      %v1207 = vpack.c.bf16 %v1199, %v1198
      %v1208 = vpack.c.bf16 %v1201, %v1200
      %v1209 = vpack.c.bf16 %v1203, %v1202
      %v1210 = vpack.c.bf16 %v1205, %v1204
      %s1211 = scalar_lea.vmem %s3, 64
      %v1212 = vld [vmem:[%s1211] sm:$0xf]
      %v1213 = vld [vmem:[%s1211 + $0x4] sm:$0xf]
      %v1216 = vunpack.c.l.b16 %v1212
      %v1217 = vunpack.c.l.b16 %v1213
      %v1218 = vpack.c.b16 %v1217, %v1216
      %v1221 = vsel %vm535, %v1206, 0
      %v1224 = vsel %vm535, %v1207, 0
      %v1227 = vsel %vm535, %v1208, 0
      %v1230 = vsel %vm535, %v1209, 0
      %v1233 = vsel %vm535, %v1210, 0
      %1235 = vmatpush.bf16.msra.mxu0 0
      %1236 = vmatpush.bf16.msra.mxu0 0
      %1237 = vmatpush.bf16.msra.mxu0 0
      %1238 = vmatpush.bf16.msra.mxu0 0
      %1239 = vmatpush.bf16.msra.mxu0 0
      %1240 = vmatpush.bf16.msra.mxu0 0
      %1241 = vmatpush.bf16.msra.mxu0 0
      %1242 = vmatpush.bf16.msra.mxu0 %v1218
      %1243 = vmatmul.bf16.gmra.mxu0 %v1221
      %v1244 = vpop.f32.mrf.mxu0
      %v1245 = vadd.f32 0.0, %v1244
      %v1246 = vpop.f32.mrf.mxu0
      %v1247 = vadd.f32 0.0, %v1246
      %1248 = vmatmul.bf16.gmra.mxu0 %v1224
      %v1249 = vpop.f32.mrf.mxu0
      %v1250 = vadd.f32 0.0, %v1249
      %v1251 = vpop.f32.mrf.mxu0
      %v1252 = vadd.f32 0.0, %v1251
      %1253 = vmatmul.bf16.gmra.mxu0 %v1227
      %v1254 = vpop.f32.mrf.mxu0
      %v1255 = vadd.f32 0.0, %v1254
      %v1256 = vpop.f32.mrf.mxu0
      %v1257 = vadd.f32 0.0, %v1256
      %1258 = vmatmul.bf16.gmra.mxu0 %v1230
      %v1259 = vpop.f32.mrf.mxu0
      %v1260 = vadd.f32 0.0, %v1259
      %v1261 = vpop.f32.mrf.mxu0
      %v1262 = vadd.f32 0.0, %v1261
      %1263 = vmatmul.bf16.gmra.mxu0 %v1233
      %v1264 = vpop.f32.mrf.mxu0
      %v1265 = vadd.f32 0.0, %v1264
      %v1266 = vpop.f32.mrf.mxu0
      %v1267 = vadd.f32 0.0, %v1266
      %1268 = vdwg.mxu0
      %v1269 = vadd.f32 %v1186, %v1245
      %v1270 = vadd.f32 %v1187, %v1247
      %v1271 = vadd.f32 %v1188, %v1250
      %v1272 = vadd.f32 %v1189, %v1252
      %v1273 = vadd.f32 %v1190, %v1255
      %v1274 = vadd.f32 %v1191, %v1257
      %v1275 = vadd.f32 %v1192, %v1260
      %v1276 = vadd.f32 %v1193, %v1262
      %v1277 = vadd.f32 %v1194, %v1265
      %v1278 = vadd.f32 %v1195, %v1267
      %v1279 = vld [vmem:[%s4] sm:$0x1]
      %v1281 = vperm.slane %v1279, 0
      %v1283 = vadd.f32 %v1269, %v1281
      %v1284 = vadd.f32 %v1270, %v1281
      %v1285 = vadd.f32 %v1271, %v1281
      %v1286 = vadd.f32 %v1272, %v1281
      %v1287 = vadd.f32 %v1273, %v1281
      %v1288 = vadd.f32 %v1274, %v1281
      %v1289 = vadd.f32 %v1275, %v1281
      %v1290 = vadd.f32 %v1276, %v1281
      %v1291 = vadd.f32 %v1277, %v1281
      %v1292 = vadd.f32 %v1278, %v1281
      %v1293 = vmax.f32 %v1283, 0.0
      %v1294 = vmax.f32 %v1284, 0.0
      %v1295 = vmax.f32 %v1285, 0.0
      %v1296 = vmax.f32 %v1286, 0.0
      %v1297 = vmax.f32 %v1287, 0.0
      %v1298 = vmax.f32 %v1288, 0.0
      %v1299 = vmax.f32 %v1289, 0.0
      %v1300 = vmax.f32 %v1290, 0.0
      %v1301 = vmax.f32 %v1291, 0.0
      %v1302 = vmax.f32 %v1292, 0.0
      %v1303 = vpack.c.bf16 %v1294, %v1293
      %v1304 = vpack.c.bf16 %v1296, %v1295
      %v1305 = vpack.c.bf16 %v1298, %v1297
      %v1306 = vpack.c.bf16 %v1300, %v1299
      %v1307 = vpack.c.bf16 %v1302, %v1301
      %v1308 = vld [vmem:[%s5] sm:$0xf]
      %v1309 = vld [vmem:[%s5 + $0x4] sm:$0xf]
      %v1310 = vld [vmem:[%s6] sm:$0x1]
      %v1312 = vperm.slane %v1310, 0
      %v1316 = vunpack.c.l.b16 %v1308
      %v1317 = vunpack.c.l.b16 %v1309
      %v1318 = vpack.c.b16 %v1317, %v1316
      %v1321 = vsel %vm535, %v1303, 0
      %v1324 = vsel %vm535, %v1304, 0
      %v1327 = vsel %vm535, %v1305, 0
      %v1330 = vsel %vm535, %v1306, 0
      %v1333 = vsel %vm535, %v1307, 0
      %1335 = vmatpush.bf16.msra.mxu0 0
      %1336 = vmatpush.bf16.msra.mxu0 0
      %1337 = vmatpush.bf16.msra.mxu0 0
      %1338 = vmatpush.bf16.msra.mxu0 0
      %1339 = vmatpush.bf16.msra.mxu0 0
      %1340 = vmatpush.bf16.msra.mxu0 0
      %1341 = vmatpush.bf16.msra.mxu0 0
      %1342 = vmatpush.bf16.msra.mxu0 %v1318
      %1343 = vmatmul.bf16.gmra.mxu0 %v1321
      %v1344 = vpop.f32.mrf.mxu0
      %v1345 = vadd.f32 %v1312, %v1344
      %v1346 = vpop.f32.mrf.mxu0
      %v1347 = vadd.f32 %v1312, %v1346
      %1348 = vmatmul.bf16.gmra.mxu0 %v1324
      %v1349 = vpop.f32.mrf.mxu0
      %v1350 = vadd.f32 %v1312, %v1349
      %v1351 = vpop.f32.mrf.mxu0
      %v1352 = vadd.f32 %v1312, %v1351
      %1353 = vmatmul.bf16.gmra.mxu0 %v1327
      %v1354 = vpop.f32.mrf.mxu0
      %v1355 = vadd.f32 %v1312, %v1354
      %v1356 = vpop.f32.mrf.mxu0
      %v1357 = vadd.f32 %v1312, %v1356
      %1358 = vmatmul.bf16.gmra.mxu0 %v1330
      %v1359 = vpop.f32.mrf.mxu0
      %v1360 = vadd.f32 %v1312, %v1359
      %v1361 = vpop.f32.mrf.mxu0
      %v1362 = vadd.f32 %v1312, %v1361
      %1363 = vmatmul.bf16.gmra.mxu0 %v1333
      %v1364 = vpop.f32.mrf.mxu0
      %v1365 = vadd.f32 %v1312, %v1364
      %v1366 = vpop.f32.mrf.mxu0
      %v1367 = vadd.f32 %v1312, %v1366
      %1368 = vdwg.mxu0
      %v1369 = vld [vmem:[%s7] sm:$0xf]
      %v1371 = vsel %vm417, %v1369, 0
      %1373 = vmatpush.bf16.msra.mxu0 0
      %1374 = vmatpush.bf16.msra.mxu0 0
      %1375 = vmatpush.bf16.msra.mxu0 0
      %1376 = vmatpush.bf16.msra.mxu0 0
      %1377 = vmatpush.bf16.msra.mxu0 0
      %1378 = vmatpush.bf16.msra.mxu0 0
      %1379 = vmatpush.bf16.msra.mxu0 0
      %1380 = vmatpush.bf16.msra.mxu0 %v1371
      %1381 = vmatmul.bf16.gmra.mxu0 %v403
      %v1382 = vpop.f32.mrf.mxu0
      %v1383 = vadd.f32 0.0, %v1382
      %v1384 = vpop.f32.mrf.mxu0
      %v1385 = vadd.f32 0.0, %v1384
      %1386 = vmatmul.bf16.gmra.mxu0 %v406
      %v1387 = vpop.f32.mrf.mxu0
      %v1388 = vadd.f32 0.0, %v1387
      %v1389 = vpop.f32.mrf.mxu0
      %v1390 = vadd.f32 0.0, %v1389
      %1391 = vmatmul.bf16.gmra.mxu0 %v409
      %v1392 = vpop.f32.mrf.mxu0
      %v1393 = vadd.f32 0.0, %v1392
      %v1394 = vpop.f32.mrf.mxu0
      %v1395 = vadd.f32 0.0, %v1394
      %1396 = vmatmul.bf16.gmra.mxu0 %v412
      %v1397 = vpop.f32.mrf.mxu0
      %v1398 = vadd.f32 0.0, %v1397
      %v1399 = vpop.f32.mrf.mxu0
      %v1400 = vadd.f32 0.0, %v1399
      %1401 = vmatmul.bf16.gmra.mxu0 %v415
      %v1402 = vpop.f32.mrf.mxu0
      %v1403 = vadd.f32 0.0, %v1402
      %v1404 = vpop.f32.mrf.mxu0
      %v1405 = vadd.f32 0.0, %v1404
      %1406 = vdwg.mxu0
      %v1407 = vadd.f32 %v1345, %v1383
      %v1408 = vadd.f32 %v1347, %v1385
      %v1409 = vadd.f32 %v1350, %v1388
      %v1410 = vadd.f32 %v1352, %v1390
      %v1411 = vadd.f32 %v1355, %v1393
      %v1412 = vadd.f32 %v1357, %v1395
      %v1413 = vadd.f32 %v1360, %v1398
      %v1414 = vadd.f32 %v1362, %v1400
      %v1415 = vadd.f32 %v1365, %v1403
      %v1416 = vadd.f32 %v1367, %v1405
      %v1417 = vld [vmem:[%s8] sm:$0x1]
      %v1419 = vperm.slane %v1417, 0
      %v1421 = vadd.f32 %v1407, %v1419
      %v1422 = vadd.f32 %v1408, %v1419
      %v1423 = vadd.f32 %v1409, %v1419
      %v1424 = vadd.f32 %v1410, %v1419
      %v1425 = vadd.f32 %v1411, %v1419
      %v1426 = vadd.f32 %v1412, %v1419
      %v1427 = vadd.f32 %v1413, %v1419
      %v1428 = vadd.f32 %v1414, %v1419
      %v1429 = vadd.f32 %v1415, %v1419
      %v1430 = vadd.f32 %v1416, %v1419
      %v1431 = vmax.f32 %v1421, 0.0
      %v1432 = vmax.f32 %v1422, 0.0
      %v1433 = vmax.f32 %v1423, 0.0
      %v1434 = vmax.f32 %v1424, 0.0
      %v1435 = vmax.f32 %v1425, 0.0
      %v1436 = vmax.f32 %v1426, 0.0
      %v1437 = vmax.f32 %v1427, 0.0
      %v1438 = vmax.f32 %v1428, 0.0
      %v1439 = vmax.f32 %v1429, 0.0
      %v1440 = vmax.f32 %v1430, 0.0
      %v1441 = vpack.c.bf16 %v1431, %v1431
      %v1442 = vpack.c.bf16 %v1432, %v1432
      %v1443 = vpack.c.bf16 %v1433, %v1433
      %v1444 = vpack.c.bf16 %v1434, %v1434
      %v1445 = vpack.c.bf16 %v1435, %v1435
      %v1446 = vpack.c.bf16 %v1436, %v1436
      %v1447 = vpack.c.bf16 %v1437, %v1437
      %v1448 = vpack.c.bf16 %v1438, %v1438
      %v1449 = vpack.c.bf16 %v1439, %v1439
      %v1450 = vpack.c.bf16 %v1440, %v1440
      %vm1451 = vcmask 257024
      %1452 = vst.msk [vmem:[%s359] sm:$0xf] %vm1451, %v1441
      %1453 = vst.msk [vmem:[%s359 + $0x4] sm:$0xf] %vm1451, %v1442
      %1454 = vst.msk [vmem:[%s359 + $0x8] sm:$0xf] %vm1451, %v1443
      %1455 = vst.msk [vmem:[%s359 + $0xc] sm:$0xf] %vm1451, %v1444
      %1456 = vst.msk [vmem:[%s359 + $0x10] sm:$0xf] %vm1451, %v1445
      %1457 = vst.msk [vmem:[%s359 + $0x14] sm:$0xf] %vm1451, %v1446
      %1458 = vst.msk [vmem:[%s359 + $0x18] sm:$0xf] %vm1451, %v1447
      %1459 = vst.msk [vmem:[%s359 + $0x1c] sm:$0xf] %vm1451, %v1448
      %1460 = vst.msk [vmem:[%s359 + $0x20] sm:$0xf] %vm1451, %v1449
      %vm1461 = vcmask 256000
      %1462 = vst.msk [vmem:[%s359 + $0x24] sm:$0x7] %vm1461, %v1450
      %p1463 = scmp.lt.s32.totalorder %s21, 1
      %s1464 = scalar_select %p1463, %s21, 1
      %s1465 = smul.addr %s1464, 10
      %s1466 = smul.addr %s1465, 4
      %s1467 = scalar_lea.vmem %s10, %s1466
      // Predicated region
      $region61: #{_lambda_.2} parent=59 // pred_check
        %p1468 = pneg %p254
      $region62: #{_lambda_.2} parent=59 // pred_check_branch
        %1470 = sbr.rel (%p1468) target = $region64
      $region63: #{_lambda_.2} parent=59 // pred_region
        _
      $region64: #{_lambda_.2} parent=59 // pred_fallthru
        _
    $region60: #{_lambda_.2} parent=5 // pred_fallthru
      _
    %p1471 = scmp.le.s32.totalorder 2, %s16
    // Predicated region
    $region65: #{_lambda_.2} parent=5 // pred_check
      %p1472 = pneg %p1471
    $region66: #{_lambda_.2} parent=5 // pred_check_branch
      %1474 = sbr.rel (%p1472) target = $region68
    $region67: #{_lambda_.2} parent=5 // pred_region
      %s1475 = ssub.s32 %s16, 2
      // Predicated region
      $region69: #{_lambda_.2} parent=67 // pred_check
        %p1476 = pneg %p260
      $region70: #{_lambda_.2} parent=67 // pred_check_branch
        %1478 = sbr.rel (%p1476) target = $region72
      $region71: #{_lambda_.2} parent=67 // pred_region
        %p1479 = scmp.lt.s32.totalorder %s22, 1
        %s1480 = scalar_select %p1479, %s22, 1
        %s1481 = smul.addr %s1480, 10
        %s1482 = smul.addr %s1481, 4
        %s1483 = scalar_lea.vmem %s10, %s1482
      $region72: #{_lambda_.2} parent=67 // pred_fallthru
        _
    $region68: #{_lambda_.2} parent=5 // pred_fallthru
      _
  $region6: #{_lambda_.2} parent=0 // loop_footer
    %s20 = sadd.s32 1, %s16
  $region7: #{_lambda_.2} parent=0 // loop_footer_branch
    %15 = sbr.rel target = $region3
  $region8: #{_lambda_.2} parent=0 // loop_exit
    _

</llo_original>
